<compile_context>
chip_gen: v6e
topology: v6e:2x2x1
jax: 0.10.0
libtpu: 0.0.40
codegen_flags: <defaults>
</compile_context>

<pallas_src>
import functools

import numpy as np
import jax
import jax.numpy as jnp
from jax import lax
from jax.experimental import pallas as pl
from jax.experimental.pallas import tpu as pltpu

LRELU_SLOPE = 0.1   # modules.LRELU_SLOPE
_HALO = 16          # halo rows (decimated time) >= q_steps-1 for every layer

# Try to single-buffer the resident packed weight; flipped off at runtime if the
# installed Pallas rejects pipeline_mode=pl.Buffered(1).
_SINGLE_BUFFER_RESIDENT = True


def _round_up(x, m):
    return ((x + m - 1) // m) * m


def _pick_m_len(t_tile, b):
    """Largest power-of-two divisor of t_tile keeping B*m_len <= 128 rows so the
    f32 accumulator stays register-resident."""
    if b * t_tile <= 128:
        return t_tile
    for cand in (128, 64, 32, 16, 8):
        if cand < t_tile and t_tile % cand == 0 and b * cand <= 128:
            return cand
    return t_tile


def _default_tiling():
    max_t_tile, vmem_limit = 256, 48 * 1024 * 1024      # v7x (64 MiB) / unknown
    try:
        info = pltpu.get_tpu_info()
        vmem_cap = getattr(info, "vmem_capacity_bytes", 0) or 0
        if vmem_cap >= 100 * 1024 * 1024:                # v5e / v6e (128 MiB)
            max_t_tile, vmem_limit = 512, 96 * 1024 * 1024
    except Exception:
        pass
    return max_t_tile, vmem_limit


def _gconv_kernel(a_ref, b_ref, w_ref, bias_ref, o_ref, xw_ref, *,
                  t_tile, halo, n_ct, co_t, k_fold, lane_step, q_steps,
                  m_len, apply_lrelu, slope):
    """One (B, t_tile, C_out) output tile of grouped Conv1d (+bias, +LeakyReLU).

    a_ref   : (B, t_tile, C_in*s) bf16 -- tile rows, lane = c*s + r
    b_ref   : (B, halo,   C_in*s) bf16 -- halo rows following the tile
    w_ref   : (q_steps*n_ct, k_fold, co_t) bf16 packed weight (resident)
    bias_ref: (1, C_out) f32 (resident)
    o_ref   : (B, t_tile, C_out)
    xw_ref  : VMEM scratch (B, t_tile+halo, C_in*s) bf16
    """
    bdim = a_ref.shape[0]

    if q_steps > 1:
        # Assemble the haloed window once per tile.
        xw_ref[:, 0:t_tile, :] = a_ref[...]
        xw_ref[:, t_tile:t_tile + halo, :] = b_ref[...]
        src = xw_ref
    else:
        src = a_ref

    n_m = t_tile // m_len
    for mi in range(n_m):                       # M sub-tiles (static)
        m0 = mi * m_len
        for j in range(n_ct):                   # output-channel tiles (static)
            lane0 = j * lane_step
            acc = None
            for q in range(q_steps):            # tap groups, K = ci_t*s per dot
                xk = src[:, m0 + q:m0 + q + m_len, lane0:lane0 + k_fold]
                xk2 = xk.reshape(bdim * m_len, k_fold)
                d = jnp.dot(xk2, w_ref[q * n_ct + j],
                            preferred_element_type=jnp.float32)
                acc = d if acc is None else acc + d
            y = acc + bias_ref[0:1, j * co_t:(j + 1) * co_t]
            if apply_lrelu:
                y = jnp.where(y >= 0, y, slope * y)
            o_ref[:, m0:m0 + m_len, j * co_t:(j + 1) * co_t] = (
                y.reshape(bdim, m_len, co_t).astype(o_ref.dtype))


def gconv1d_pallas(x, w_packed, bias, *, kernel_size, stride, padding, groups,
                   n_ct, c_out, apply_lrelu, out_dtype=jnp.bfloat16,
                   slope=LRELU_SLOPE, max_t_tile=256,
                   vmem_limit=48 * 1024 * 1024):
    """Grouped Conv1d + optional LeakyReLU.

    x        : (B, T, C_in) channels-last (cast to bf16 internally).
    w_packed : (ceil(K/stride)*n_ct, ci_t*stride, co_t) bf16 (see pack_weight).
    bias     : (C_out,) float.
    Returns  : (B, T_out, C_out) in out_dtype.
    """
    global _SINGLE_BUFFER_RESIDENT
    B, T, c_in = x.shape
    s, K = stride, kernel_size
    T_out = (T + 2 * padding - K) // s + 1
    assert T_out >= 1
    q_steps = -(-K // s)
    halo = _HALO
    assert q_steps - 1 <= halo, "halo too small for this kernel size / stride"
    assert c_out % n_ct == 0
    co_t = c_out // n_ct

    if groups > 1:                               # group-diagonal channel tiles
        assert n_ct <= groups and groups % n_ct == 0 and c_in % n_ct == 0
        ci_t = c_in // n_ct
        lane_step = ci_t * s
    else:                                        # dense layer, split along C_out
        ci_t = c_in
        lane_step = 0
    k_fold = ci_t * s
    assert w_packed.shape == (q_steps * n_ct, k_fold, co_t), (
        w_packed.shape, (q_steps * n_ct, k_fold, co_t))

    t_tile = min(max_t_tile, _round_up(T_out, halo))
    n_t = -(-T_out // t_tile)
    l_rows = n_t * t_tile + halo                 # decimated-time rows touched
    l_in = l_rows * s                            # padded input length
    pad_right = l_in - padding - T
    assert pad_right >= padding

    m_len = _pick_m_len(t_tile, B)
    lanes = c_in * s

    xb = x.astype(jnp.bfloat16)
    x_pad = jnp.pad(xb, ((0, 0), (padding, pad_right), (0, 0)))
    # channel-major / phase-minor decimation: x3[b, u, c*s + r] = x_pad[b, u*s + r, c]
    if s == 1:
        x3 = x_pad
    else:
        x3 = x_pad.reshape(B, l_rows, s, c_in).transpose(0, 1, 3, 2)
        x3 = x3.reshape(B, l_rows, lanes)
    bias2 = bias.reshape(1, c_out).astype(jnp.float32)

    kernel = functools.partial(
        _gconv_kernel, t_tile=t_tile, halo=halo, n_ct=n_ct, co_t=co_t,
        k_fold=k_fold, lane_step=lane_step, q_steps=q_steps, m_len=m_len,
        apply_lrelu=apply_lrelu, slope=slope)

    blk = t_tile // halo

    def build_call(single_buffer):
        w_kwargs = dict(pipeline_mode=pl.Buffered(1)) if single_buffer else {}
        return pl.pallas_call(
            kernel,
            out_shape=jax.ShapeDtypeStruct((B, n_t * t_tile, c_out), out_dtype),
            grid_spec=pltpu.PrefetchScalarGridSpec(
                num_scalar_prefetch=0,
                grid=(n_t,),
                in_specs=[
                    pl.BlockSpec((B, t_tile, lanes), lambda i: (0, i, 0)),
                    pl.BlockSpec((B, halo, lanes),
                                 lambda i: (0, (i + 1) * blk, 0)),
                    pl.BlockSpec(w_packed.shape, lambda i: (0, 0, 0),
                                 **w_kwargs),                       # resident
                    pl.BlockSpec((1, c_out), lambda i: (0, 0)),     # resident
                ],
                out_specs=pl.BlockSpec((B, t_tile, c_out), lambda i: (0, i, 0)),
                scratch_shapes=[
                    pltpu.VMEM((B, t_tile + halo, lanes), jnp.bfloat16),
                ],
            ),
            compiler_params=pltpu.CompilerParams(
                dimension_semantics=("parallel",),
                vmem_limit_bytes=vmem_limit),
        )

    if _SINGLE_BUFFER_RESIDENT:
        try:
            out = build_call(True)(x3, x3, w_packed, bias2)
            jax.block_until_ready(out)
        except Exception:
            _SINGLE_BUFFER_RESIDENT = False
            out = build_call(False)(x3, x3, w_packed, bias2)
    else:
        out = build_call(False)(x3, x3, w_packed, bias2)

    return out[:, :T_out, :]


def pack_weight(w, groups, stride, n_ct):
    """torch Conv1d weight (C_out, C_in/groups, K) -> packed bf16 weight of shape
    (ceil(K/stride)*n_ct, ci_t*stride, co_t) with K-dim index = local_ci*stride + r."""
    c_out, c_in_g, K = w.shape
    s = stride
    q_steps = -(-K // s)
    k_pad = q_steps * s

    wt = jnp.transpose(w, (2, 0, 1))                       # (K, C_out, C_in_g)
    wt = jnp.pad(wt, ((0, k_pad - K), (0, 0), (0, 0)))     # zero taps k >= K
    wt = wt.reshape(q_steps, s, c_out, c_in_g)             # (q, r, co, ci_g)

    co_t = c_out // n_ct
    if groups > 1:
        assert n_ct <= groups and groups % n_ct == 0
        gpt = groups // n_ct                               # groups per out tile
        c_out_g = c_out // groups
        wt = wt.reshape(q_steps, s, n_ct, gpt, c_out_g, c_in_g)
        eye = jnp.eye(gpt, dtype=w.dtype)
        # block-diagonal only over the groups inside one channel tile:
        # wsd[q, j, (h*c_in_g + c)*s + r, g*c_out_g + o] = eye[g,h]*wt[q,r,j,g,o,c]
        wsd = jnp.einsum('gh,qrjgoc->qjhcrgo', eye, wt)
        wsd = wsd.reshape(q_steps, n_ct, gpt * c_in_g * s, gpt * c_out_g)
    else:
        assert c_out % n_ct == 0
        c_in = c_in_g
        wt = wt.reshape(q_steps, s, n_ct, co_t, c_in)      # split C_out
        wsd = jnp.transpose(wt, (0, 2, 4, 1, 3))           # (q, j, ci, r, co_t)
        wsd = wsd.reshape(q_steps, n_ct, c_in * s, co_t)
    return wsd.reshape(q_steps * n_ct, wsd.shape[2], co_t).astype(jnp.bfloat16)


def _pack_layer1_weight(w, n_lanes):
    """Layer-1 (C_in=1, stride=1) weight: taps become lane-channels of a 1x1 conv."""
    c_out, c_in, K = w.shape
    assert c_in == 1
    w1 = jnp.zeros((c_out, n_lanes, 1), w.dtype)
    w1 = w1.at[:, :K, 0].set(w[:, 0, :])
    return pack_weight(w1, groups=1, stride=1, n_ct=1)


def _taps_to_channels(x, kernel_size, padding, n_lanes):
    """(B, T, 1) -> (B, T, n_lanes) with X[b, t, k] = x_pad[b, t + k]  (stride 1,
    2*padding == kernel_size - 1 so T_out == T)."""
    B, T, C = x.shape
    assert C == 1 and 2 * padding == kernel_size - 1
    xp = jnp.pad(x[..., 0], ((0, 0), (padding, padding)))
    cols = [xp[:, k:k + T] for k in range(kernel_size)]
    cols += [jnp.zeros_like(cols[0])] * (n_lanes - kernel_size)
    return jnp.stack(cols, axis=-1)


# (C_in, C_out, kernel, stride, groups, padding, n_ct) -- matches DiscriminatorS
_LAYER_CFGS = [
    (1,    16,   15, 1, 1,   7,  1),   # taps folded onto 16 lanes
    (16,   64,   41, 4, 4,   20, 1),   # folded K = 64
    (64,   256,  41, 4, 16,  20, 1),   # folded K = 256
    (256,  1024, 41, 4, 64,  20, 8),   # ci_t=32  -> folded K = 128, co_t = 128
    (1024, 1024, 41, 4, 256, 20, 8),   # ci_t=128 -> folded K = 512, co_t = 128
    (1024, 1024, 5,  1, 1,   2,  4),   # dense, K = 1024, co_t = 256
    (1024, 1,    3,  1, 1,   1,  1),   # conv_post
]


def init_params(key):
    # weight_norm(v) at init returns exactly v (g is initialised to ||v||),
    # so the raw torch init weight is used directly.
    params = []
    for (cin, cout, k, s, g, p, n_ct) in _LAYER_CFGS:
        key, k1, k2 = jax.random.split(key, 3)
        fan_in = (cin // g) * k
        bound = 1.0 / float(np.sqrt(fan_in))
        w = jax.random.uniform(k1, (cout, cin // g, k), jnp.float32, -bound, bound)
        b = jax.random.uniform(k2, (cout,), jnp.float32, -bound, bound)
        entry = dict(w_raw=w, b=b, kernel=k, stride=s, padding=p, groups=g,
                     n_ct=n_ct, c_in=cin, c_out=cout)
        if cin == 1 and s == 1 and 2 * p == k - 1:
            n_lanes = _round_up(k, 8)
            entry['taps_as_lanes'] = True
            entry['n_lanes'] = n_lanes
            entry['w_packed'] = _pack_layer1_weight(w, n_lanes)
        else:
            entry['taps_as_lanes'] = False
            entry['w_packed'] = pack_weight(w, g, s, n_ct)
        params.append(entry)
    return params


def discriminator_s_pallas(x, params):
    """x: (B, 1, T) NCT.  Returns (flattened conv_post output, fmap list in NCT)."""
    h = jnp.transpose(x, (0, 2, 1))                 # channels-last (B, T, 1)
    fmap = []
    n = len(params)
    max_t_tile, vmem_limit = _default_tiling()
    for i, p in enumerate(params):
        last = i == n - 1
        if p['taps_as_lanes']:
            h = _taps_to_channels(h, p['kernel'], p['padding'], p['n_lanes'])
            k_eff, s_eff, pad_eff, g_eff = 1, 1, 0, 1
        else:
            k_eff, s_eff, pad_eff, g_eff = (p['kernel'], p['stride'],
                                            p['padding'], p['groups'])
        h = gconv1d_pallas(
            h, p['w_packed'], p['b'], kernel_size=k_eff, stride=s_eff,
            padding=pad_eff, groups=g_eff, n_ct=p['n_ct'], c_out=p['c_out'],
            apply_lrelu=not last,
            out_dtype=jnp.float32 if last else jnp.bfloat16,
            max_t_tile=max_t_tile, vmem_limit=vmem_limit)
        fmap.append(jnp.transpose(h, (0, 2, 1)))    # NCT at the API boundary only
    out = h.reshape(h.shape[0], -1)
    return out, fmap


def _bf16_round(v):
    return v.astype(jnp.bfloat16).astype(jnp.float32)


def discriminator_s_reference(x, params):
    """Pure-JAX reference (grouped conv via lax) emulating the kernel's bf16
    storage of weights / inter-layer activations with f32 accumulation."""
    fmap = []
    h = x.astype(jnp.float32)
    for i, p in enumerate(params):
        hq = _bf16_round(h)
        wq = _bf16_round(p['w_raw'])
        h = lax.conv_general_dilated(
            hq, wq, window_strides=(p['stride'],),
            padding=[(p['padding'], p['padding'])],
            feature_group_count=p['groups'],
            dimension_numbers=('NCH', 'OIH', 'NCH'),
            precision=lax.Precision.HIGHEST)
        h = h + p['b'][None, :, None]
        if i < len(params) - 1:
            h = jnp.where(h >= 0, h, LRELU_SLOPE * h)
        fmap.append(h)
    return h.reshape(h.shape[0], -1), fmap


if __name__ == "__main__":
    key = jax.random.PRNGKey(0)
    pkey, xkey = jax.random.split(key)
    params = init_params(pkey)

    B, T = 2, 1024
    x = jax.random.normal(xkey, (B, 1, T), jnp.float32)

    out, fmap = discriminator_s_pallas(x, params)
    out = jax.block_until_ready(out)
    for f in fmap:
        jax.block_until_ready(f)

    out_ref, fmap_ref = discriminator_s_reference(x, params)

    np.testing.assert_allclose(
        np.asarray(out.astype(jnp.float32)), np.asarray(out_ref),
        rtol=1e-2, atol=1e-2)
    for a, b in zip(fmap, fmap_ref):
        assert a.shape == b.shape
        np.testing.assert_allclose(
            np.asarray(a.astype(jnp.float32)), np.asarray(b),
            rtol=2e-2, atol=2e-2)

    print("KERNEL_OK")
</pallas_src>

<mosaic_0001>
module attributes {stable_mosaic.version = 11 : i64} {
  func.func @_gconv_kernel(%arg0: i32, %arg1: memref<2x256x16xbf16, #tpu.memory_space<vmem>>, %arg2: memref<2x16x16xbf16, #tpu.memory_space<vmem>>, %arg3: memref<1x16x16xbf16, #tpu.memory_space<vmem>>, %arg4: memref<1x16xf32, #tpu.memory_space<vmem>>, %arg5: memref<2x256x16xbf16, #tpu.memory_space<vmem>>, %arg6: memref<2x272x16xbf16, #tpu.memory_space<vmem>>) attributes {dimension_semantics = [#tpu.dimension_semantics<parallel>], iteration_bounds = array<i64: 4>, scalar_prefetch = 0 : i64, scratch_operands = 1 : i64, tpu.core_type = #tpu.core_type<tc>, window_params = [{transform_indices = @transform_0, window_bounds = array<i64: 2, 256, 16>}, {transform_indices = @transform_1, window_bounds = array<i64: 2, 16, 16>}, {pipeline_mode = #tpu.pipeline_mode<synchronous>, transform_indices = @transform_2, window_bounds = array<i64: 1, 16, 16>}, {pipeline_mode = #tpu.pipeline_mode<synchronous>, transform_indices = @transform_3, window_bounds = array<i64: 1, 16>}, {transform_indices = @transform_4, window_bounds = array<i64: 2, 256, 16>}]} {
    %c0 = arith.constant 0 : index
    %c0_0 = arith.constant 0 : index
    %c0_1 = arith.constant 0 : index
    %0 = vector.load %arg1[%c0, %c0_0, %c0_1] : memref<2x256x16xbf16, #tpu.memory_space<vmem>>, vector<2x64x16xbf16>
    %1 = vector.shape_cast %0 : vector<2x64x16xbf16> to vector<128x16xbf16>
    %c0_2 = arith.constant 0 : index
    %c0_3 = arith.constant 0 : index
    %c0_4 = arith.constant 0 : index
    %2 = vector.load %arg3[%c0_2, %c0_3, %c0_4] : memref<1x16x16xbf16, #tpu.memory_space<vmem>>, vector<1x16x16xbf16>
    %3 = vector.shape_cast %2 : vector<1x16x16xbf16> to vector<16x16xbf16>
    %cst = arith.constant dense<0.000000e+00> : vector<128x16xf32>
    %4 = tpu.matmul %1, %3, %cst {dimension_numbers = #tpu.dot_dimension_numbers<[1], [0], [0], [1], [0, 0, 1, 1], [], []>} : vector<128x16xbf16>, vector<16x16xbf16>, vector<128x16xf32> -> vector<128x16xf32>
    %c0_5 = arith.constant 0 : index
    %c0_6 = arith.constant 0 : index
    %5 = vector.load %arg4[%c0_5, %c0_6] : memref<1x16xf32, #tpu.memory_space<vmem>>, vector<1x16xf32>
    %6 = vector.broadcast %5 : vector<1x16xf32> to vector<128x16xf32>
    %7 = arith.addf %4, %6 : vector<128x16xf32>
    %cst_7 = arith.constant 0.000000e+00 : f32
    %8 = vector.broadcast %cst_7 : f32 to vector<128x16xf32>
    %9 = arith.cmpf oge, %7, %8 : vector<128x16xf32>
    %cst_8 = arith.constant 1.000000e-01 : f32
    %10 = vector.broadcast %cst_8 : f32 to vector<128x16xf32>
    %11 = arith.mulf %10, %7 : vector<128x16xf32>
    %12 = arith.select %9, %7, %11 : vector<128x16xi1>, vector<128x16xf32>
    %13 = vector.shape_cast %12 : vector<128x16xf32> to vector<2x64x16xf32>
    %14 = arith.truncf %13 : vector<2x64x16xf32> to vector<2x64x16xbf16>
    %c0_9 = arith.constant 0 : index
    %c0_10 = arith.constant 0 : index
    %c0_11 = arith.constant 0 : index
    %15 = vector.load %arg5[%c0_9, %c0_10, %c0_11] : memref<2x256x16xbf16, #tpu.memory_space<vmem>>, vector<2x64x16xbf16>
    tpu.vector_store %arg5[%c0_9, %c0_10, %c0_11], %14 {strides = array<i32>} : memref<2x256x16xbf16, #tpu.memory_space<vmem>>, vector<2x64x16xbf16>,
    %c0_12 = arith.constant 0 : index
    %c64 = arith.constant 64 : index
    %c0_13 = arith.constant 0 : index
    %16 = vector.load %arg1[%c0_12, %c64, %c0_13] : memref<2x256x16xbf16, #tpu.memory_space<vmem>>, vector<2x64x16xbf16>
    %17 = vector.shape_cast %16 : vector<2x64x16xbf16> to vector<128x16xbf16>
    %c0_14 = arith.constant 0 : index
    %c0_15 = arith.constant 0 : index
    %c0_16 = arith.constant 0 : index
    %18 = vector.load %arg3[%c0_14, %c0_15, %c0_16] : memref<1x16x16xbf16, #tpu.memory_space<vmem>>, vector<1x16x16xbf16>
    %19 = vector.shape_cast %18 : vector<1x16x16xbf16> to vector<16x16xbf16>
    %cst_17 = arith.constant dense<0.000000e+00> : vector<128x16xf32>
    %20 = tpu.matmul %17, %19, %cst_17 {dimension_numbers = #tpu.dot_dimension_numbers<[1], [0], [0], [1], [0, 0, 1, 1], [], []>} : vector<128x16xbf16>, vector<16x16xbf16>, vector<128x16xf32> -> vector<128x16xf32>
    %c0_18 = arith.constant 0 : index
    %c0_19 = arith.constant 0 : index
    %21 = vector.load %arg4[%c0_18, %c0_19] : memref<1x16xf32, #tpu.memory_space<vmem>>, vector<1x16xf32>
    %22 = vector.broadcast %21 : vector<1x16xf32> to vector<128x16xf32>
    %23 = arith.addf %20, %22 : vector<128x16xf32>
    %cst_20 = arith.constant 0.000000e+00 : f32
    %24 = vector.broadcast %cst_20 : f32 to vector<128x16xf32>
    %25 = arith.cmpf oge, %23, %24 : vector<128x16xf32>
    %cst_21 = arith.constant 1.000000e-01 : f32
    %26 = vector.broadcast %cst_21 : f32 to vector<128x16xf32>
    %27 = arith.mulf %26, %23 : vector<128x16xf32>
    %28 = arith.select %25, %23, %27 : vector<128x16xi1>, vector<128x16xf32>
    %29 = vector.shape_cast %28 : vector<128x16xf32> to vector<2x64x16xf32>
    %30 = arith.truncf %29 : vector<2x64x16xf32> to vector<2x64x16xbf16>
    %c0_22 = arith.constant 0 : index
    %c64_23 = arith.constant 64 : index
    %c0_24 = arith.constant 0 : index
    %31 = vector.load %arg5[%c0_22, %c64_23, %c0_24] : memref<2x256x16xbf16, #tpu.memory_space<vmem>>, vector<2x64x16xbf16>
    tpu.vector_store %arg5[%c0_22, %c64_23, %c0_24], %30 {strides = array<i32>} : memref<2x256x16xbf16, #tpu.memory_space<vmem>>, vector<2x64x16xbf16>,
    %c0_25 = arith.constant 0 : index
    %c128 = arith.constant 128 : index
    %c0_26 = arith.constant 0 : index
    %32 = vector.load %arg1[%c0_25, %c128, %c0_26] : memref<2x256x16xbf16, #tpu.memory_space<vmem>>, vector<2x64x16xbf16>
    %33 = vector.shape_cast %32 : vector<2x64x16xbf16> to vector<128x16xbf16>
    %c0_27 = arith.constant 0 : index
    %c0_28 = arith.constant 0 : index
    %c0_29 = arith.constant 0 : index
    %34 = vector.load %arg3[%c0_27, %c0_28, %c0_29] : memref<1x16x16xbf16, #tpu.memory_space<vmem>>, vector<1x16x16xbf16>
    %35 = vector.shape_cast %34 : vector<1x16x16xbf16> to vector<16x16xbf16>
    %cst_30 = arith.constant dense<0.000000e+00> : vector<128x16xf32>
    %36 = tpu.matmul %33, %35, %cst_30 {dimension_numbers = #tpu.dot_dimension_numbers<[1], [0], [0], [1], [0, 0, 1, 1], [], []>} : vector<128x16xbf16>, vector<16x16xbf16>, vector<128x16xf32> -> vector<128x16xf32>
    %c0_31 = arith.constant 0 : index
    %c0_32 = arith.constant 0 : index
    %37 = vector.load %arg4[%c0_31, %c0_32] : memref<1x16xf32, #tpu.memory_space<vmem>>, vector<1x16xf32>
    %38 = vector.broadcast %37 : vector<1x16xf32> to vector<128x16xf32>
    %39 = arith.addf %36, %38 : vector<128x16xf32>
    %cst_33 = arith.constant 0.000000e+00 : f32
    %40 = vector.broadcast %cst_33 : f32 to vector<128x16xf32>
    %41 = arith.cmpf oge, %39, %40 : vector<128x16xf32>
    %cst_34 = arith.constant 1.000000e-01 : f32
    %42 = vector.broadcast %cst_34 : f32 to vector<128x16xf32>
    %43 = arith.mulf %42, %39 : vector<128x16xf32>
    %44 = arith.select %41, %39, %43 : vector<128x16xi1>, vector<128x16xf32>
    %45 = vector.shape_cast %44 : vector<128x16xf32> to vector<2x64x16xf32>
    %46 = arith.truncf %45 : vector<2x64x16xf32> to vector<2x64x16xbf16>
    %c0_35 = arith.constant 0 : index
    %c128_36 = arith.constant 128 : index
    %c0_37 = arith.constant 0 : index
    %47 = vector.load %arg5[%c0_35, %c128_36, %c0_37] : memref<2x256x16xbf16, #tpu.memory_space<vmem>>, vector<2x64x16xbf16>
    tpu.vector_store %arg5[%c0_35, %c128_36, %c0_37], %46 {strides = array<i32>} : memref<2x256x16xbf16, #tpu.memory_space<vmem>>, vector<2x64x16xbf16>,
    %c0_38 = arith.constant 0 : index
    %c192 = arith.constant 192 : index
    %c0_39 = arith.constant 0 : index
    %48 = vector.load %arg1[%c0_38, %c192, %c0_39] : memref<2x256x16xbf16, #tpu.memory_space<vmem>>, vector<2x64x16xbf16>
    %49 = vector.shape_cast %48 : vector<2x64x16xbf16> to vector<128x16xbf16>
    %c0_40 = arith.constant 0 : index
    %c0_41 = arith.constant 0 : index
    %c0_42 = arith.constant 0 : index
    %50 = vector.load %arg3[%c0_40, %c0_41, %c0_42] : memref<1x16x16xbf16, #tpu.memory_space<vmem>>, vector<1x16x16xbf16>
    %51 = vector.shape_cast %50 : vector<1x16x16xbf16> to vector<16x16xbf16>
    %cst_43 = arith.constant dense<0.000000e+00> : vector<128x16xf32>
    %52 = tpu.matmul %49, %51, %cst_43 {dimension_numbers = #tpu.dot_dimension_numbers<[1], [0], [0], [1], [0, 0, 1, 1], [], []>} : vector<128x16xbf16>, vector<16x16xbf16>, vector<128x16xf32> -> vector<128x16xf32>
    %c0_44 = arith.constant 0 : index
    %c0_45 = arith.constant 0 : index
    %53 = vector.load %arg4[%c0_44, %c0_45] : memref<1x16xf32, #tpu.memory_space<vmem>>, vector<1x16xf32>
    %54 = vector.broadcast %53 : vector<1x16xf32> to vector<128x16xf32>
    %55 = arith.addf %52, %54 : vector<128x16xf32>
    %cst_46 = arith.constant 0.000000e+00 : f32
    %56 = vector.broadcast %cst_46 : f32 to vector<128x16xf32>
    %57 = arith.cmpf oge, %55, %56 : vector<128x16xf32>
    %cst_47 = arith.constant 1.000000e-01 : f32
    %58 = vector.broadcast %cst_47 : f32 to vector<128x16xf32>
    %59 = arith.mulf %58, %55 : vector<128x16xf32>
    %60 = arith.select %57, %55, %59 : vector<128x16xi1>, vector<128x16xf32>
    %61 = vector.shape_cast %60 : vector<128x16xf32> to vector<2x64x16xf32>
    %62 = arith.truncf %61 : vector<2x64x16xf32> to vector<2x64x16xbf16>
    %c0_48 = arith.constant 0 : index
    %c192_49 = arith.constant 192 : index
    %c0_50 = arith.constant 0 : index
    %63 = vector.load %arg5[%c0_48, %c192_49, %c0_50] : memref<2x256x16xbf16, #tpu.memory_space<vmem>>, vector<2x64x16xbf16>
    tpu.vector_store %arg5[%c0_48, %c192_49, %c0_50], %62 {strides = array<i32>} : memref<2x256x16xbf16, #tpu.memory_space<vmem>>, vector<2x64x16xbf16>,
    return
  }
  func.func @transform_0(%arg0: i32) -> (i32, i32, i32) {
    %c0_i32 = arith.constant 0 : i32
    %c0_i32_0 = arith.constant 0 : i32
    %c0_i32_1 = arith.constant 0 : i32
    return %c0_i32, %arg0, %c0_i32_0 : i32, i32, i32
  }
  func.func @transform_1(%arg0: i32) -> (i32, i32, i32) {
    %c1_i32 = arith.constant 1 : i32
    %0 = arith.addi %arg0, %c1_i32 : i32
    %c16_i32 = arith.constant 16 : i32
    %1 = arith.muli %0, %c16_i32 : i32
    %c0_i32 = arith.constant 0 : i32
    %c0_i32_0 = arith.constant 0 : i32
    %c0_i32_1 = arith.constant 0 : i32
    return %c0_i32, %1, %c0_i32_0 : i32, i32, i32
  }
  func.func @transform_2(%arg0: i32) -> (i32, i32, i32) {
    %c0_i32 = arith.constant 0 : i32
    %c0_i32_0 = arith.constant 0 : i32
    %c0_i32_1 = arith.constant 0 : i32
    %c0_i32_2 = arith.constant 0 : i32
    return %c0_i32, %c0_i32_0, %c0_i32_1 : i32, i32, i32
  }
  func.func @transform_3(%arg0: i32) -> (i32, i32) {
    %c0_i32 = arith.constant 0 : i32
    %c0_i32_0 = arith.constant 0 : i32
    %c0_i32_1 = arith.constant 0 : i32
    return %c0_i32, %c0_i32_0 : i32, i32
  }
  func.func @transform_4(%arg0: i32) -> (i32, i32, i32) {
    %c0_i32 = arith.constant 0 : i32
    %c0_i32_0 = arith.constant 0 : i32
    %c0_i32_1 = arith.constant 0 : i32
    return %c0_i32, %arg0, %c0_i32_0 : i32, i32, i32
  }
}

module attributes {stable_mosaic.version = 11 : i64} {
  func.func @_gconv_kernel(%arg0: i32, %arg1: memref<2x256x16xbf16, #tpu.memory_space<vmem>>, %arg2: memref<2x16x16xbf16, #tpu.memory_space<vmem>>, %arg3: memref<1x16x16xbf16, #tpu.memory_space<vmem>>, %arg4: memref<1x16xf32, #tpu.memory_space<vmem>>, %arg5: memref<2x256x16xbf16, #tpu.memory_space<vmem>>, %arg6: memref<2x272x16xbf16, #tpu.memory_space<vmem>>) attributes {dimension_semantics = [#tpu.dimension_semantics<parallel>], iteration_bounds = array<i64: 4>, scalar_prefetch = 0 : i64, scratch_operands = 1 : i64, tpu.core_type = #tpu.core_type<tc>, window_params = [{transform_indices = @transform_0, window_bounds = array<i64: 2, 256, 16>}, {transform_indices = @transform_1, window_bounds = array<i64: 2, 16, 16>}, {pipeline_mode = #tpu.pipeline_mode<synchronous>, transform_indices = @transform_2, window_bounds = array<i64: 1, 16, 16>}, {pipeline_mode = #tpu.pipeline_mode<synchronous>, transform_indices = @transform_3, window_bounds = array<i64: 1, 16>}, {transform_indices = @transform_4, window_bounds = array<i64: 2, 256, 16>}]} {
    %c0 = arith.constant 0 : index
    %c0_0 = arith.constant 0 : index
    %c0_1 = arith.constant 0 : index
    %0 = vector.load %arg1[%c0, %c0_0, %c0_1] : memref<2x256x16xbf16, #tpu.memory_space<vmem>>, vector<2x64x16xbf16>
    %1 = vector.shape_cast %0 : vector<2x64x16xbf16> to vector<128x16xbf16>
    %c0_2 = arith.constant 0 : index
    %c0_3 = arith.constant 0 : index
    %c0_4 = arith.constant 0 : index
    %2 = vector.load %arg3[%c0_2, %c0_3, %c0_4] : memref<1x16x16xbf16, #tpu.memory_space<vmem>>, vector<1x16x16xbf16>
    %3 = vector.shape_cast %2 : vector<1x16x16xbf16> to vector<16x16xbf16>
    %cst = arith.constant dense<0.000000e+00> : vector<128x16xf32>
    %4 = tpu.matmul %1, %3, %cst {dimension_numbers = #tpu.dot_dimension_numbers<[1], [0], [0], [1], [0, 0, 1, 1], [], []>} : vector<128x16xbf16>, vector<16x16xbf16>, vector<128x16xf32> -> vector<128x16xf32>
    %c0_5 = arith.constant 0 : index
    %c0_6 = arith.constant 0 : index
    %5 = vector.load %arg4[%c0_5, %c0_6] : memref<1x16xf32, #tpu.memory_space<vmem>>, vector<1x16xf32>
    %6 = vector.broadcast %5 : vector<1x16xf32> to vector<128x16xf32>
    %7 = arith.addf %4, %6 : vector<128x16xf32>
    %cst_7 = arith.constant 0.000000e+00 : f32
    %8 = vector.broadcast %cst_7 : f32 to vector<128x16xf32>
    %9 = arith.cmpf oge, %7, %8 : vector<128x16xf32>
    %cst_8 = arith.constant 1.000000e-01 : f32
    %10 = vector.broadcast %cst_8 : f32 to vector<128x16xf32>
    %11 = arith.mulf %10, %7 : vector<128x16xf32>
    %12 = arith.select %9, %7, %11 : vector<128x16xi1>, vector<128x16xf32>
    %13 = vector.shape_cast %12 : vector<128x16xf32> to vector<2x64x16xf32>
    %14 = arith.truncf %13 : vector<2x64x16xf32> to vector<2x64x16xbf16>
    %c0_9 = arith.constant 0 : index
    %c0_10 = arith.constant 0 : index
    %c0_11 = arith.constant 0 : index
    %15 = vector.load %arg5[%c0_9, %c0_10, %c0_11] : memref<2x256x16xbf16, #tpu.memory_space<vmem>>, vector<2x64x16xbf16>
    tpu.vector_store %arg5[%c0_9, %c0_10, %c0_11], %14 {strides = array<i32>} : memref<2x256x16xbf16, #tpu.memory_space<vmem>>, vector<2x64x16xbf16>,
    %c0_12 = arith.constant 0 : index
    %c64 = arith.constant 64 : index
    %c0_13 = arith.constant 0 : index
    %16 = vector.load %arg1[%c0_12, %c64, %c0_13] : memref<2x256x16xbf16, #tpu.memory_space<vmem>>, vector<2x64x16xbf16>
    %17 = vector.shape_cast %16 : vector<2x64x16xbf16> to vector<128x16xbf16>
    %c0_14 = arith.constant 0 : index
    %c0_15 = arith.constant 0 : index
    %c0_16 = arith.constant 0 : index
    %18 = vector.load %arg3[%c0_14, %c0_15, %c0_16] : memref<1x16x16xbf16, #tpu.memory_space<vmem>>, vector<1x16x16xbf16>
    %19 = vector.shape_cast %18 : vector<1x16x16xbf16> to vector<16x16xbf16>
    %cst_17 = arith.constant dense<0.000000e+00> : vector<128x16xf32>
    %20 = tpu.matmul %17, %19, %cst_17 {dimension_numbers = #tpu.dot_dimension_numbers<[1], [0], [0], [1], [0, 0, 1, 1], [], []>} : vector<128x16xbf16>, vector<16x16xbf16>, vector<128x16xf32> -> vector<128x16xf32>
    %c0_18 = arith.constant 0 : index
    %c0_19 = arith.constant 0 : index
    %21 = vector.load %arg4[%c0_18, %c0_19] : memref<1x16xf32, #tpu.memory_space<vmem>>, vector<1x16xf32>
    %22 = vector.broadcast %21 : vector<1x16xf32> to vector<128x16xf32>
    %23 = arith.addf %20, %22 : vector<128x16xf32>
    %cst_20 = arith.constant 0.000000e+00 : f32
    %24 = vector.broadcast %cst_20 : f32 to vector<128x16xf32>
    %25 = arith.cmpf oge, %23, %24 : vector<128x16xf32>
    %cst_21 = arith.constant 1.000000e-01 : f32
    %26 = vector.broadcast %cst_21 : f32 to vector<128x16xf32>
    %27 = arith.mulf %26, %23 : vector<128x16xf32>
    %28 = arith.select %25, %23, %27 : vector<128x16xi1>, vector<128x16xf32>
    %29 = vector.shape_cast %28 : vector<128x16xf32> to vector<2x64x16xf32>
    %30 = arith.truncf %29 : vector<2x64x16xf32> to vector<2x64x16xbf16>
    %c0_22 = arith.constant 0 : index
    %c64_23 = arith.constant 64 : index
    %c0_24 = arith.constant 0 : index
    %31 = vector.load %arg5[%c0_22, %c64_23, %c0_24] : memref<2x256x16xbf16, #tpu.memory_space<vmem>>, vector<2x64x16xbf16>
    tpu.vector_store %arg5[%c0_22, %c64_23, %c0_24], %30 {strides = array<i32>} : memref<2x256x16xbf16, #tpu.memory_space<vmem>>, vector<2x64x16xbf16>,
    %c0_25 = arith.constant 0 : index
    %c128 = arith.constant 128 : index
    %c0_26 = arith.constant 0 : index
    %32 = vector.load %arg1[%c0_25, %c128, %c0_26] : memref<2x256x16xbf16, #tpu.memory_space<vmem>>, vector<2x64x16xbf16>
    %33 = vector.shape_cast %32 : vector<2x64x16xbf16> to vector<128x16xbf16>
    %c0_27 = arith.constant 0 : index
    %c0_28 = arith.constant 0 : index
    %c0_29 = arith.constant 0 : index
    %34 = vector.load %arg3[%c0_27, %c0_28, %c0_29] : memref<1x16x16xbf16, #tpu.memory_space<vmem>>, vector<1x16x16xbf16>
    %35 = vector.shape_cast %34 : vector<1x16x16xbf16> to vector<16x16xbf16>
    %cst_30 = arith.constant dense<0.000000e+00> : vector<128x16xf32>
    %36 = tpu.matmul %33, %35, %cst_30 {dimension_numbers = #tpu.dot_dimension_numbers<[1], [0], [0], [1], [0, 0, 1, 1], [], []>} : vector<128x16xbf16>, vector<16x16xbf16>, vector<128x16xf32> -> vector<128x16xf32>
    %c0_31 = arith.constant 0 : index
    %c0_32 = arith.constant 0 : index
    %37 = vector.load %arg4[%c0_31, %c0_32] : memref<1x16xf32, #tpu.memory_space<vmem>>, vector<1x16xf32>
    %38 = vector.broadcast %37 : vector<1x16xf32> to vector<128x16xf32>
    %39 = arith.addf %36, %38 : vector<128x16xf32>
    %cst_33 = arith.constant 0.000000e+00 : f32
    %40 = vector.broadcast %cst_33 : f32 to vector<128x16xf32>
    %41 = arith.cmpf oge, %39, %40 : vector<128x16xf32>
    %cst_34 = arith.constant 1.000000e-01 : f32
    %42 = vector.broadcast %cst_34 : f32 to vector<128x16xf32>
    %43 = arith.mulf %42, %39 : vector<128x16xf32>
    %44 = arith.select %41, %39, %43 : vector<128x16xi1>, vector<128x16xf32>
    %45 = vector.shape_cast %44 : vector<128x16xf32> to vector<2x64x16xf32>
    %46 = arith.truncf %45 : vector<2x64x16xf32> to vector<2x64x16xbf16>
    %c0_35 = arith.constant 0 : index
    %c128_36 = arith.constant 128 : index
    %c0_37 = arith.constant 0 : index
    %47 = vector.load %arg5[%c0_35, %c128_36, %c0_37] : memref<2x256x16xbf16, #tpu.memory_space<vmem>>, vector<2x64x16xbf16>
    tpu.vector_store %arg5[%c0_35, %c128_36, %c0_37], %46 {strides = array<i32>} : memref<2x256x16xbf16, #tpu.memory_space<vmem>>, vector<2x64x16xbf16>,
    %c0_38 = arith.constant 0 : index
    %c192 = arith.constant 192 : index
    %c0_39 = arith.constant 0 : index
    %48 = vector.load %arg1[%c0_38, %c192, %c0_39] : memref<2x256x16xbf16, #tpu.memory_space<vmem>>, vector<2x64x16xbf16>
    %49 = vector.shape_cast %48 : vector<2x64x16xbf16> to vector<128x16xbf16>
    %c0_40 = arith.constant 0 : index
    %c0_41 = arith.constant 0 : index
    %c0_42 = arith.constant 0 : index
    %50 = vector.load %arg3[%c0_40, %c0_41, %c0_42] : memref<1x16x16xbf16, #tpu.memory_space<vmem>>, vector<1x16x16xbf16>
    %51 = vector.shape_cast %50 : vector<1x16x16xbf16> to vector<16x16xbf16>
    %cst_43 = arith.constant dense<0.000000e+00> : vector<128x16xf32>
    %52 = tpu.matmul %49, %51, %cst_43 {dimension_numbers = #tpu.dot_dimension_numbers<[1], [0], [0], [1], [0, 0, 1, 1], [], []>} : vector<128x16xbf16>, vector<16x16xbf16>, vector<128x16xf32> -> vector<128x16xf32>
    %c0_44 = arith.constant 0 : index
    %c0_45 = arith.constant 0 : index
    %53 = vector.load %arg4[%c0_44, %c0_45] : memref<1x16xf32, #tpu.memory_space<vmem>>, vector<1x16xf32>
    %54 = vector.broadcast %53 : vector<1x16xf32> to vector<128x16xf32>
    %55 = arith.addf %52, %54 : vector<128x16xf32>
    %cst_46 = arith.constant 0.000000e+00 : f32
    %56 = vector.broadcast %cst_46 : f32 to vector<128x16xf32>
    %57 = arith.cmpf oge, %55, %56 : vector<128x16xf32>
    %cst_47 = arith.constant 1.000000e-01 : f32
    %58 = vector.broadcast %cst_47 : f32 to vector<128x16xf32>
    %59 = arith.mulf %58, %55 : vector<128x16xf32>
    %60 = arith.select %57, %55, %59 : vector<128x16xi1>, vector<128x16xf32>
    %61 = vector.shape_cast %60 : vector<128x16xf32> to vector<2x64x16xf32>
    %62 = arith.truncf %61 : vector<2x64x16xf32> to vector<2x64x16xbf16>
    %c0_48 = arith.constant 0 : index
    %c192_49 = arith.constant 192 : index
    %c0_50 = arith.constant 0 : index
    %63 = vector.load %arg5[%c0_48, %c192_49, %c0_50] : memref<2x256x16xbf16, #tpu.memory_space<vmem>>, vector<2x64x16xbf16>
    tpu.vector_store %arg5[%c0_48, %c192_49, %c0_50], %62 {strides = array<i32>} : memref<2x256x16xbf16, #tpu.memory_space<vmem>>, vector<2x64x16xbf16>,
    return
  }
  func.func @transform_0(%arg0: i32) -> (i32, i32, i32) {
    %c0_i32 = arith.constant 0 : i32
    %c0_i32_0 = arith.constant 0 : i32
    %c0_i32_1 = arith.constant 0 : i32
    return %c0_i32, %arg0, %c0_i32_0 : i32, i32, i32
  }
  func.func @transform_1(%arg0: i32) -> (i32, i32, i32) {
    %c1_i32 = arith.constant 1 : i32
    %0 = arith.addi %arg0, %c1_i32 : i32
    %c16_i32 = arith.constant 16 : i32
    %1 = arith.muli %0, %c16_i32 : i32
    %c0_i32 = arith.constant 0 : i32
    %c0_i32_0 = arith.constant 0 : i32
    %c0_i32_1 = arith.constant 0 : i32
    return %c0_i32, %1, %c0_i32_0 : i32, i32, i32
  }
  func.func @transform_2(%arg0: i32) -> (i32, i32, i32) {
    %c0_i32 = arith.constant 0 : i32
    %c0_i32_0 = arith.constant 0 : i32
    %c0_i32_1 = arith.constant 0 : i32
    %c0_i32_2 = arith.constant 0 : i32
    return %c0_i32, %c0_i32_0, %c0_i32_1 : i32, i32, i32
  }
  func.func @transform_3(%arg0: i32) -> (i32, i32) {
    %c0_i32 = arith.constant 0 : i32
    %c0_i32_0 = arith.constant 0 : i32
    %c0_i32_1 = arith.constant 0 : i32
    return %c0_i32, %c0_i32_0 : i32, i32
  }
  func.func @transform_4(%arg0: i32) -> (i32, i32, i32) {
    %c0_i32 = arith.constant 0 : i32
    %c0_i32_0 = arith.constant 0 : i32
    %c0_i32_1 = arith.constant 0 : i32
    return %c0_i32, %arg0, %c0_i32_0 : i32, i32, i32
  }
}

</mosaic_0001>

<llo_original>
// kernel: tpu_custom_call.1
$region0: #{tpu_custom_call.1}
  #allocation0 [shape = 'u32[]', space=smem, size = 0x4, offset = 0x4, fixed_abs, tag = 'smem constant byte address 0x4 - core index']
  #allocation1 [shape = 'u32[144,128]{1,0:T(1,128)}', space=vmem, size = 0x12000, scoped, tag = 'internal scratch']
  #allocation2 [shape = 'bf16[2,272,16]{2,1,0:T(8,128)(2,1)}', space=vmem, size = 0x22000, scoped, tag = 'scratch operand']
  %s0 = inlined_call_operand.vmem [shape: bf16[2,1040,16], index: 0, kind: input, shape index: {}]
  %s1 = inlined_call_operand.vmem [shape: bf16[2,1040,16], index: 1, kind: input, shape index: {}]
  %s2 = inlined_call_operand.vmem [shape: bf16[1,16,16], index: 2, kind: input, shape index: {}]
  %s3 = inlined_call_operand.vmem [shape: f32[1,16], index: 3, kind: input, shape index: {}]
  %s4 = inlined_call_operand.vmem [shape: bf16[2,1024,16], index: 4, kind: output, shape index: {}]
  %s5 = sld [smem:[#allocation0]]
  $region189: #{tpu_custom_call.1} parent=0
    _
  %s7 = ssub.s32 1, %s5
  %s8 = scalar_select 0, %s7, %s5
  $region1: #{tpu_custom_call.1} parent=0
    #allocation3 [shape = 'u8[262144]{0}', space=vmem, size = 0x40000, scoped, tag = 'input window, operand 0']
    #allocation4 [shape = 'u8[16384]{0}', space=vmem, size = 0x4000, scoped, tag = 'input window, operand 1']
    #allocation5 [shape = 'u8[262144]{0}', space=vmem, size = 0x40000, scoped, tag = 'output window, operand 0']
    loop: start=0, step=1, limit=6
    $region2: #{tpu_custom_call.1} parent=1 // loop_pre_header
      _
    $region3: #{tpu_custom_call.1} parent=1 // loop_header
      %s10 = sphi 0, %s14
      %p11 = scmp.ge.s32.totalorder %s10, 6
      %s20 = sphi 0, %s22
      %s23 = sphi 0, %s20
      %s24 = sphi 0, %s23
      %s40 = sphi 0, %s24
      %s50 = sphi 0, %s52
      %s53 = sphi 0, %s50
      %s54 = sphi 0, %s53
      %s70 = sphi 0, %s54
      %s74 = sphi 0, %s74
      %s76 = sphi 0, %s74
      %s77 = sphi 0, %s76
      %s91 = sphi 0, %s77
      %s95 = sphi 0, %s95
      %s97 = sphi 0, %s95
      %s98 = sphi 0, %s97
      %s112 = sphi 0, %s98
      %s118 = sphi 0, %s120
      %s121 = sphi 0, %s118
      %s122 = sphi 0, %s121
      %s138 = sphi 0, %s122
    $region4: #{tpu_custom_call.1} parent=1 // loop_header_branch
      %13 = sbr.rel (%p11) target = $region8
    $region5: #{tpu_custom_call.1} parent=1 // loop_body
      %s15 = ssub.s32 %s10, 1
      %s16 = ssub.s32 %s10, 2
      %s17 = sadd.s32 %s10, 1
      %s18 = ssub.s32 %s10, %s17
      %p19 = scmp.eq.s32.totalorder %s18, 0
      %s21 = sadd.s32 %s20, 1
      %s22 = scalar_select %p19, %s20, %s21
      %p25 = pneg %p19
      %p26 = scmp.eq.s32.totalorder %s10, 3
      %p27 = por %p25, %p26
      %p28 = scmp.ne.s32.totalorder %s20, %s23
      %p29 = scmp.eq.s32.totalorder %s10, 0
      %p30 = por %p28, %p29
      %p31 = scmp.ne.s32.totalorder %s20, %s23
      %p32 = scmp.eq.s32.totalorder %s15, 3
      %p33 = por %p31, %p32
      %p34 = scmp.ne.s32.totalorder %s23, %s24
      %p35 = scmp.eq.s32.totalorder %s15, 0
      %p36 = por %p34, %p35
      %p37 = scmp.ne.s32.totalorder %s23, %s24
      %p38 = scmp.eq.s32.totalorder %s16, 3
      %p39 = por %p37, %p38
      %p41 = scmp.ne.s32.totalorder %s24, %s40
      %p42 = scmp.eq.s32.totalorder %s16, 0
      %p43 = por %p41, %p42
      %s44 = sadd.s32 %s10, 1
      %s45 = smul.u32 %s44, 16
      %s46 = sadd.s32 %s17, 1
      %s47 = smul.u32 %s46, 16
      %s48 = ssub.s32 %s45, %s47
      %p49 = scmp.eq.s32.totalorder %s48, 0
      %s51 = sadd.s32 %s50, 1
      %s52 = scalar_select %p49, %s50, %s51
      %p55 = pneg %p49
      %p56 = scmp.eq.s32.totalorder %s10, 3
      %p57 = por %p55, %p56
      %p58 = scmp.ne.s32.totalorder %s50, %s53
      %p59 = scmp.eq.s32.totalorder %s10, 0
      %p60 = por %p58, %p59
      %p61 = scmp.ne.s32.totalorder %s50, %s53
      %p62 = scmp.eq.s32.totalorder %s15, 3
      %p63 = por %p61, %p62
      %p64 = scmp.ne.s32.totalorder %s53, %s54
      %p65 = scmp.eq.s32.totalorder %s15, 0
      %p66 = por %p64, %p65
      %p67 = scmp.ne.s32.totalorder %s53, %s54
      %p68 = scmp.eq.s32.totalorder %s16, 3
      %p69 = por %p67, %p68
      %p71 = scmp.ne.s32.totalorder %s54, %s70
      %p72 = scmp.eq.s32.totalorder %s16, 0
      %p73 = por %p71, %p72
      %s75 = sadd.s32 %s74, 1
      %p78 = scmp.eq.s32.totalorder %s10, 3
      %p79 = scmp.ne.s32.totalorder %s74, %s76
      %p80 = scmp.eq.s32.totalorder %s10, 0
      %p81 = por %p79, %p80
      %p82 = scmp.ne.s32.totalorder %s74, %s76
      %p83 = scmp.eq.s32.totalorder %s15, 3
      %p84 = por %p82, %p83
      %p85 = scmp.ne.s32.totalorder %s76, %s77
      %p86 = scmp.eq.s32.totalorder %s15, 0
      %p87 = por %p85, %p86
      %p88 = scmp.ne.s32.totalorder %s76, %s77
      %p89 = scmp.eq.s32.totalorder %s16, 3
      %p90 = por %p88, %p89
      %p92 = scmp.ne.s32.totalorder %s77, %s91
      %p93 = scmp.eq.s32.totalorder %s16, 0
      %p94 = por %p92, %p93
      %s96 = sadd.s32 %s95, 1
      %p99 = scmp.eq.s32.totalorder %s10, 3
      %p100 = scmp.ne.s32.totalorder %s95, %s97
      %p101 = scmp.eq.s32.totalorder %s10, 0
      %p102 = por %p100, %p101
      %p103 = scmp.ne.s32.totalorder %s95, %s97
      %p104 = scmp.eq.s32.totalorder %s15, 3
      %p105 = por %p103, %p104
      %p106 = scmp.ne.s32.totalorder %s97, %s98
      %p107 = scmp.eq.s32.totalorder %s15, 0
      %p108 = por %p106, %p107
      %p109 = scmp.ne.s32.totalorder %s97, %s98
      %p110 = scmp.eq.s32.totalorder %s16, 3
      %p111 = por %p109, %p110
      %p113 = scmp.ne.s32.totalorder %s98, %s112
      %p114 = scmp.eq.s32.totalorder %s16, 0
      %p115 = por %p113, %p114
      %s116 = ssub.s32 %s10, %s17
      %p117 = scmp.eq.s32.totalorder %s116, 0
      %s119 = sadd.s32 %s118, 1
      %s120 = scalar_select %p117, %s118, %s119
      %p123 = pneg %p117
      %p124 = scmp.eq.s32.totalorder %s10, 3
      %p125 = por %p123, %p124
      %p126 = scmp.ne.s32.totalorder %s118, %s121
      %p127 = scmp.eq.s32.totalorder %s10, 0
      %p128 = por %p126, %p127
      %p129 = scmp.ne.s32.totalorder %s118, %s121
      %p130 = scmp.eq.s32.totalorder %s15, 3
      %p131 = por %p129, %p130
      %p132 = scmp.ne.s32.totalorder %s121, %s122
      %p133 = scmp.eq.s32.totalorder %s15, 0
      %p134 = por %p132, %p133
      %p135 = scmp.ne.s32.totalorder %s121, %s122
      %p136 = scmp.eq.s32.totalorder %s16, 3
      %p137 = por %p135, %p136
      %p139 = scmp.ne.s32.totalorder %s122, %s138
      %p140 = scmp.eq.s32.totalorder %s16, 0
      %p141 = por %p139, %p140
      %p142 = scmp.le.s32.totalorder 1, %s10
      %p143 = scmp.lt.s32.totalorder %s10, 5
      %p144 = pnand %p142, %p143
      %p145 = pneg %p144
      // Predicated region
      $region9: #{tpu_custom_call.1} parent=5 // pred_check
        _
      $region10: #{tpu_custom_call.1} parent=5 // pred_check_branch
        %147 = sbr.rel (%p144) target = $region12
      $region11: #{tpu_custom_call.1} parent=5 // pred_region
        %s148 = ssub.s32 %s10, 1
        // Predicated region
        $region13: #{tpu_custom_call.1} parent=11 // pred_check
          %p149 = pneg %p87
        $region14: #{tpu_custom_call.1} parent=11 // pred_check_branch
          %151 = sbr.rel (%p149) target = $region16
        $region15: #{tpu_custom_call.1} parent=11 // pred_region
          _
        $region16: #{tpu_custom_call.1} parent=11 // pred_fallthru
          _
        // Predicated region
        $region17: #{tpu_custom_call.1} parent=11 // pred_check
          %p152 = pneg %p108
        $region18: #{tpu_custom_call.1} parent=11 // pred_check_branch
          %154 = sbr.rel (%p152) target = $region20
        $region19: #{tpu_custom_call.1} parent=11 // pred_region
          _
        $region20: #{tpu_custom_call.1} parent=11 // pred_fallthru
          _
      $region12: #{tpu_custom_call.1} parent=5 // pred_fallthru
        _
      %p155 = scmp.lt.s32.totalorder %s10, 4
      // Predicated region
      $region21: #{tpu_custom_call.1} parent=5 // pred_check
        %p156 = pneg %p155
      $region22: #{tpu_custom_call.1} parent=5 // pred_check_branch
        %158 = sbr.rel (%p156) target = $region24
      $region23: #{tpu_custom_call.1} parent=5 // pred_region
        // Predicated region
        $region25: #{tpu_custom_call.1} parent=23 // pred_check
          %p159 = pneg %p30
        $region26: #{tpu_custom_call.1} parent=23 // pred_check_branch
          %161 = sbr.rel (%p159) target = $region28
        $region27: #{tpu_custom_call.1} parent=23 // pred_region
          %s162 = sand.u32 %s20, 1
          %s163 = sand.u32 %s20, 1
          %s164 = smul.addr %s163, 256
          %s165 = scalar_lea.vmem [#allocation3], %s164
          %s166 = smul.u32 32, %s10
          %s167 = ssub.s32 130, %s166
          %p168 = scmp.lt.s32.totalorder %s167, 32
          %s169 = scalar_select %p168, %s167, 32
          %s170 = smul.u32 128, %s169
          %p171 = scmp.ne.s32.totalorder 0, %s170
          %s172 = smul.addr %s166, 4
          %s173 = scalar_lea.vmem %s0, %s172
          // Predicated region
          $region29: #{tpu_custom_call.1} parent=27 // pred_check
            %p174 = pneg %p171
          $region30: #{tpu_custom_call.1} parent=27 // pred_check_branch
            %176 = sbr.rel (%p174) target = $region32
          $region31: #{tpu_custom_call.1} parent=27 // pred_region
            // Predicated region
            $region33: #{tpu_custom_call.1} parent=31 // pred_check
              _
            $region34: #{tpu_custom_call.1} parent=31 // pred_check_branch
              %178 = sbr.rel target = $region36
            $region35: #{tpu_custom_call.1} parent=31 // pred_region
              // Predicated region
              $region55: #{tpu_custom_call.1} parent=35 // pred_check
                _
              $region56: #{tpu_custom_call.1} parent=35 // pred_check_branch
                %356 = sbr.rel (0) target = $region58
              $region57: #{tpu_custom_call.1} parent=35 // pred_region
                %s357 = sshrl.u32 %s169, 5
                // While loop
                $region59: #{tpu_custom_call.1} parent=57 // loop_pre_header
                  _
                $region60: #{tpu_custom_call.1} parent=57 // loop_header
                  %s359 = sphi 0, %s361
                  %p360 = scmp.ge.s32.totalorder %s359, %s357
                  %s364 = sphi 0, %s369
                  %s365 = sphi %s173, %s372
                  %s366 = sphi %s165, %s373
                $region61: #{tpu_custom_call.1} parent=57 // loop_header_branch
                  %363 = sbr.rel (%p360) target = $region65
                $region62: #{tpu_custom_call.1} parent=57 // loop_body
                  %s367 = sadd.s32 1, %s364
                  %p368 = scmp.ge.s32.totalorder %s367, %s357
                  %s369 = scalar_select %p368, 0, %s367
                  %s370 = smul.u32 %s369, 128
                  %s371 = smul.u32 %s369, 128
                  %s372 = scalar_lea.vmem %s173, %s370
                  %s373 = scalar_lea.vmem %s165, %s371 [#allocation3]
                $region63: #{tpu_custom_call.1} parent=57 // loop_footer
                  %s361 = sadd.s32 %s359, 1
                $region64: #{tpu_custom_call.1} parent=57 // loop_footer_branch
                  %358 = sbr.rel target = $region60
                $region65: #{tpu_custom_call.1} parent=57 // loop_exit
                  _
                %s374 = sshrl.u32 %s169, 5
                %s375 = sand.u32 %s169, 31
                %s376 = smul.u32 %s374, 32
                %s377 = smul.u32 4, %s376
                %s378 = scalar_lea.vmem %s173, %s377
                %s379 = smul.u32 4, %s376
                %s380 = scalar_lea.vmem %s165, %s379 [#allocation3]
                // While loop
                $region66: #{tpu_custom_call.1} parent=57 // loop_pre_header
                  _
                $region67: #{tpu_custom_call.1} parent=57 // loop_header
                  %s382 = sphi 0, %s384
                  %p383 = scmp.ge.s32.totalorder %s382, %s375
                  %s387 = sphi 0, %s392
                  %s388 = sphi %s378, %s395
                  %s389 = sphi %s380, %s396
                $region68: #{tpu_custom_call.1} parent=57 // loop_header_branch
                  %386 = sbr.rel (%p383) target = $region72
                $region69: #{tpu_custom_call.1} parent=57 // loop_body
                  %s390 = sadd.s32 1, %s387
                  %p391 = scmp.ge.s32.totalorder %s390, %s375
                  %s392 = scalar_select %p391, 0, %s390
                  %s393 = smul.u32 %s392, 4
                  %s394 = smul.u32 %s392, 4
                  %s395 = scalar_lea.vmem %s378, %s393
                  %s396 = scalar_lea.vmem %s380, %s394 [#allocation3]
                $region70: #{tpu_custom_call.1} parent=57 // loop_footer
                  %s384 = sadd.s32 %s382, 1
                $region71: #{tpu_custom_call.1} parent=57 // loop_footer_branch
                  %381 = sbr.rel target = $region67
                $region72: #{tpu_custom_call.1} parent=57 // loop_exit
                  _
                %s398 = ssub.s32 16, 1
                %s399 = sshrl.u32 %s169, 5
                // While loop
                $region73: #{tpu_custom_call.1} parent=57 // loop_pre_header
                  _
                $region74: #{tpu_custom_call.1} parent=57 // loop_header
                  %s401 = sphi 0, %s403
                  %p402 = scmp.ge.s32.totalorder %s401, %s399
                  %s406 = sphi 0, %s539
                  %s407 = sphi %s173, %s542
                  %s408 = sphi %s165, %s543
                $region75: #{tpu_custom_call.1} parent=57 // loop_header_branch
                  %405 = sbr.rel (%p402) target = $region79
                $region76: #{tpu_custom_call.1} parent=57 // loop_body
                  %v409 = vld [vmem:[%s407] sm:%s398]
                  %410 = vst [vmem:[%s408] sm:%s398] %v409
                  %v411 = vld [vmem:[%s407 + $0x4] sm:%s398]
                  %412 = vst [vmem:[%s408 + $0x4] sm:%s398] %v411
                  %v413 = vld [vmem:[%s407 + $0x8] sm:%s398]
                  %414 = vst [vmem:[%s408 + $0x8] sm:%s398] %v413
                  %v415 = vld [vmem:[%s407 + $0xc] sm:%s398]
                  %416 = vst [vmem:[%s408 + $0xc] sm:%s398] %v415
                  %v417 = vld [vmem:[%s407 + $0x10] sm:%s398]
                  %418 = vst [vmem:[%s408 + $0x10] sm:%s398] %v417
                  %v419 = vld [vmem:[%s407 + $0x14] sm:%s398]
                  %420 = vst [vmem:[%s408 + $0x14] sm:%s398] %v419
                  %v421 = vld [vmem:[%s407 + $0x18] sm:%s398]
                  %422 = vst [vmem:[%s408 + $0x18] sm:%s398] %v421
                  %v423 = vld [vmem:[%s407 + $0x1c] sm:%s398]
                  %424 = vst [vmem:[%s408 + $0x1c] sm:%s398] %v423
                  %v425 = vld [vmem:[%s407 + $0x20] sm:%s398]
                  %426 = vst [vmem:[%s408 + $0x20] sm:%s398] %v425
                  %v427 = vld [vmem:[%s407 + $0x24] sm:%s398]
                  %428 = vst [vmem:[%s408 + $0x24] sm:%s398] %v427
                  %v429 = vld [vmem:[%s407 + $0x28] sm:%s398]
                  %430 = vst [vmem:[%s408 + $0x28] sm:%s398] %v429
                  %v431 = vld [vmem:[%s407 + $0x2c] sm:%s398]
                  %432 = vst [vmem:[%s408 + $0x2c] sm:%s398] %v431
                  %v433 = vld [vmem:[%s407 + $0x30] sm:%s398]
                  %434 = vst [vmem:[%s408 + $0x30] sm:%s398] %v433
                  %v435 = vld [vmem:[%s407 + $0x34] sm:%s398]
                  %436 = vst [vmem:[%s408 + $0x34] sm:%s398] %v435
                  %v437 = vld [vmem:[%s407 + $0x38] sm:%s398]
                  %438 = vst [vmem:[%s408 + $0x38] sm:%s398] %v437
                  %v439 = vld [vmem:[%s407 + $0x3c] sm:%s398]
                  %440 = vst [vmem:[%s408 + $0x3c] sm:%s398] %v439
                  %v441 = vld [vmem:[%s407 + $0x40] sm:%s398]
                  %442 = vst [vmem:[%s408 + $0x40] sm:%s398] %v441
                  %v443 = vld [vmem:[%s407 + $0x44] sm:%s398]
                  %444 = vst [vmem:[%s408 + $0x44] sm:%s398] %v443
                  %v445 = vld [vmem:[%s407 + $0x48] sm:%s398]
                  %446 = vst [vmem:[%s408 + $0x48] sm:%s398] %v445
                  %v447 = vld [vmem:[%s407 + $0x4c] sm:%s398]
                  %448 = vst [vmem:[%s408 + $0x4c] sm:%s398] %v447
                  %v449 = vld [vmem:[%s407 + $0x50] sm:%s398]
                  %450 = vst [vmem:[%s408 + $0x50] sm:%s398] %v449
                  %v451 = vld [vmem:[%s407 + $0x54] sm:%s398]
                  %452 = vst [vmem:[%s408 + $0x54] sm:%s398] %v451
                  %v453 = vld [vmem:[%s407 + $0x58] sm:%s398]
                  %454 = vst [vmem:[%s408 + $0x58] sm:%s398] %v453
                  %v455 = vld [vmem:[%s407 + $0x5c] sm:%s398]
                  %456 = vst [vmem:[%s408 + $0x5c] sm:%s398] %v455
                  %v457 = vld [vmem:[%s407 + $0x60] sm:%s398]
                  %458 = vst [vmem:[%s408 + $0x60] sm:%s398] %v457
                  %v459 = vld [vmem:[%s407 + $0x64] sm:%s398]
                  %460 = vst [vmem:[%s408 + $0x64] sm:%s398] %v459
                  %v461 = vld [vmem:[%s407 + $0x68] sm:%s398]
                  %462 = vst [vmem:[%s408 + $0x68] sm:%s398] %v461
                  %v463 = vld [vmem:[%s407 + $0x6c] sm:%s398]
                  %464 = vst [vmem:[%s408 + $0x6c] sm:%s398] %v463
                  %v465 = vld [vmem:[%s407 + $0x70] sm:%s398]
                  %466 = vst [vmem:[%s408 + $0x70] sm:%s398] %v465
                  %v467 = vld [vmem:[%s407 + $0x74] sm:%s398]
                  %468 = vst [vmem:[%s408 + $0x74] sm:%s398] %v467
                  %v469 = vld [vmem:[%s407 + $0x78] sm:%s398]
                  %470 = vst [vmem:[%s408 + $0x78] sm:%s398] %v469
                  %v471 = vld [vmem:[%s407 + $0x7c] sm:%s398]
                  %472 = vst [vmem:[%s408 + $0x7c] sm:%s398] %v471
                  %v473 = vld [vmem:[%s407 + $0x208] sm:%s398]
                  %474 = vst [vmem:[%s408 + $0x80] sm:%s398] %v473
                  %v475 = vld [vmem:[%s407 + $0x20c] sm:%s398]
                  %476 = vst [vmem:[%s408 + $0x84] sm:%s398] %v475
                  %v477 = vld [vmem:[%s407 + $0x210] sm:%s398]
                  %478 = vst [vmem:[%s408 + $0x88] sm:%s398] %v477
                  %v479 = vld [vmem:[%s407 + $0x214] sm:%s398]
                  %480 = vst [vmem:[%s408 + $0x8c] sm:%s398] %v479
                  %v481 = vld [vmem:[%s407 + $0x218] sm:%s398]
                  %482 = vst [vmem:[%s408 + $0x90] sm:%s398] %v481
                  %v483 = vld [vmem:[%s407 + $0x21c] sm:%s398]
                  %484 = vst [vmem:[%s408 + $0x94] sm:%s398] %v483
                  %v485 = vld [vmem:[%s407 + $0x220] sm:%s398]
                  %486 = vst [vmem:[%s408 + $0x98] sm:%s398] %v485
                  %v487 = vld [vmem:[%s407 + $0x224] sm:%s398]
                  %488 = vst [vmem:[%s408 + $0x9c] sm:%s398] %v487
                  %v489 = vld [vmem:[%s407 + $0x228] sm:%s398]
                  %490 = vst [vmem:[%s408 + $0xa0] sm:%s398] %v489
                  %v491 = vld [vmem:[%s407 + $0x22c] sm:%s398]
                  %492 = vst [vmem:[%s408 + $0xa4] sm:%s398] %v491
                  %v493 = vld [vmem:[%s407 + $0x230] sm:%s398]
                  %494 = vst [vmem:[%s408 + $0xa8] sm:%s398] %v493
                  %v495 = vld [vmem:[%s407 + $0x234] sm:%s398]
                  %496 = vst [vmem:[%s408 + $0xac] sm:%s398] %v495
                  %v497 = vld [vmem:[%s407 + $0x238] sm:%s398]
                  %498 = vst [vmem:[%s408 + $0xb0] sm:%s398] %v497
                  %v499 = vld [vmem:[%s407 + $0x23c] sm:%s398]
                  %500 = vst [vmem:[%s408 + $0xb4] sm:%s398] %v499
                  %v501 = vld [vmem:[%s407 + $0x240] sm:%s398]
                  %502 = vst [vmem:[%s408 + $0xb8] sm:%s398] %v501
                  %v503 = vld [vmem:[%s407 + $0x244] sm:%s398]
                  %504 = vst [vmem:[%s408 + $0xbc] sm:%s398] %v503
                  %v505 = vld [vmem:[%s407 + $0x248] sm:%s398]
                  %506 = vst [vmem:[%s408 + $0xc0] sm:%s398] %v505
                  %v507 = vld [vmem:[%s407 + $0x24c] sm:%s398]
                  %508 = vst [vmem:[%s408 + $0xc4] sm:%s398] %v507
                  %v509 = vld [vmem:[%s407 + $0x250] sm:%s398]
                  %510 = vst [vmem:[%s408 + $0xc8] sm:%s398] %v509
                  %v511 = vld [vmem:[%s407 + $0x254] sm:%s398]
                  %512 = vst [vmem:[%s408 + $0xcc] sm:%s398] %v511
                  %v513 = vld [vmem:[%s407 + $0x258] sm:%s398]
                  %514 = vst [vmem:[%s408 + $0xd0] sm:%s398] %v513
                  %v515 = vld [vmem:[%s407 + $0x25c] sm:%s398]
                  %516 = vst [vmem:[%s408 + $0xd4] sm:%s398] %v515
                  %v517 = vld [vmem:[%s407 + $0x260] sm:%s398]
                  %518 = vst [vmem:[%s408 + $0xd8] sm:%s398] %v517
                  %v519 = vld [vmem:[%s407 + $0x264] sm:%s398]
                  %520 = vst [vmem:[%s408 + $0xdc] sm:%s398] %v519
                  %v521 = vld [vmem:[%s407 + $0x268] sm:%s398]
                  %522 = vst [vmem:[%s408 + $0xe0] sm:%s398] %v521
                  %v523 = vld [vmem:[%s407 + $0x26c] sm:%s398]
                  %524 = vst [vmem:[%s408 + $0xe4] sm:%s398] %v523
                  %v525 = vld [vmem:[%s407 + $0x270] sm:%s398]
                  %526 = vst [vmem:[%s408 + $0xe8] sm:%s398] %v525
                  %v527 = vld [vmem:[%s407 + $0x274] sm:%s398]
                  %528 = vst [vmem:[%s408 + $0xec] sm:%s398] %v527
                  %v529 = vld [vmem:[%s407 + $0x278] sm:%s398]
                  %530 = vst [vmem:[%s408 + $0xf0] sm:%s398] %v529
                  %v531 = vld [vmem:[%s407 + $0x27c] sm:%s398]
                  %532 = vst [vmem:[%s408 + $0xf4] sm:%s398] %v531
                  %v533 = vld [vmem:[%s407 + $0x280] sm:%s398]
                  %534 = vst [vmem:[%s408 + $0xf8] sm:%s398] %v533
                  %v535 = vld [vmem:[%s407 + $0x284] sm:%s398]
                  %536 = vst [vmem:[%s408 + $0xfc] sm:%s398] %v535
                  %s537 = sadd.s32 1, %s406
                  %p538 = scmp.ge.s32.totalorder %s537, %s399
                  %s539 = scalar_select %p538, 0, %s537
                  %s540 = smul.u32 %s539, 128
                  %s541 = smul.u32 %s539, 128
                  %s542 = scalar_lea.vmem %s173, %s540
                  %s543 = scalar_lea.vmem %s165, %s541 [#allocation3]
                $region77: #{tpu_custom_call.1} parent=57 // loop_footer
                  %s403 = sadd.s32 %s401, 1
                $region78: #{tpu_custom_call.1} parent=57 // loop_footer_branch
                  %400 = sbr.rel target = $region74
                $region79: #{tpu_custom_call.1} parent=57 // loop_exit
                  _
                %s544 = sshrl.u32 %s169, 5
                %s545 = sand.u32 %s169, 31
                %s546 = smul.u32 %s544, 32
                %s547 = smul.u32 4, %s546
                %s548 = scalar_lea.vmem %s173, %s547
                %s549 = smul.u32 4, %s546
                %s550 = scalar_lea.vmem %s165, %s549 [#allocation3]
                // While loop
                $region80: #{tpu_custom_call.1} parent=57 // loop_pre_header
                  _
                $region81: #{tpu_custom_call.1} parent=57 // loop_header
                  %s552 = sphi 0, %s554
                  %p553 = scmp.ge.s32.totalorder %s552, %s545
                  %s557 = sphi 0, %s566
                  %s558 = sphi %s548, %s569
                  %s559 = sphi %s550, %s570
                $region82: #{tpu_custom_call.1} parent=57 // loop_header_branch
                  %556 = sbr.rel (%p553) target = $region86
                $region83: #{tpu_custom_call.1} parent=57 // loop_body
                  %v560 = vld [vmem:[%s558] sm:%s398]
                  %561 = vst [vmem:[%s559] sm:%s398] %v560
                  %v562 = vld [vmem:[%s558 + $0x208] sm:%s398]
                  %563 = vst [vmem:[%s559 + $0x80] sm:%s398] %v562
                  %s564 = sadd.s32 1, %s557
                  %p565 = scmp.ge.s32.totalorder %s564, %s545
                  %s566 = scalar_select %p565, 0, %s564
                  %s567 = smul.u32 %s566, 4
                  %s568 = smul.u32 %s566, 4
                  %s569 = scalar_lea.vmem %s548, %s567
                  %s570 = scalar_lea.vmem %s550, %s568 [#allocation3]
                $region84: #{tpu_custom_call.1} parent=57 // loop_footer
                  %s554 = sadd.s32 %s552, 1
                $region85: #{tpu_custom_call.1} parent=57 // loop_footer_branch
                  %551 = sbr.rel target = $region81
                $region86: #{tpu_custom_call.1} parent=57 // loop_exit
                  _
              $region58: #{tpu_custom_call.1} parent=35 // pred_fallthru
                _
            $region36: #{tpu_custom_call.1} parent=31 // pred_fallthru
              _
            // Predicated region
            $region37: #{tpu_custom_call.1} parent=31 // pred_check
              _
            $region38: #{tpu_custom_call.1} parent=31 // pred_check_branch
              %180 = sbr.rel (0) target = $region40
            $region39: #{tpu_custom_call.1} parent=31 // pred_region
              %s182 = ssub.s32 16, 1
              %s183 = sshrl.u32 %s169, 5
              // While loop
              $region41: #{tpu_custom_call.1} parent=39 // loop_pre_header
                _
              $region42: #{tpu_custom_call.1} parent=39 // loop_header
                %s185 = sphi 0, %s187
                %p186 = scmp.ge.s32.totalorder %s185, %s183
                %s190 = sphi 0, %s323
                %s191 = sphi %s173, %s326
                %s192 = sphi %s165, %s327
              $region43: #{tpu_custom_call.1} parent=39 // loop_header_branch
                %189 = sbr.rel (%p186) target = $region47
              $region44: #{tpu_custom_call.1} parent=39 // loop_body
                %v193 = vld [vmem:[%s191] sm:%s182]
                %194 = vst [vmem:[%s192] sm:%s182] %v193
                %v195 = vld [vmem:[%s191 + $0x4] sm:%s182]
                %196 = vst [vmem:[%s192 + $0x4] sm:%s182] %v195
                %v197 = vld [vmem:[%s191 + $0x8] sm:%s182]
                %198 = vst [vmem:[%s192 + $0x8] sm:%s182] %v197
                %v199 = vld [vmem:[%s191 + $0xc] sm:%s182]
                %200 = vst [vmem:[%s192 + $0xc] sm:%s182] %v199
                %v201 = vld [vmem:[%s191 + $0x10] sm:%s182]
                %202 = vst [vmem:[%s192 + $0x10] sm:%s182] %v201
                %v203 = vld [vmem:[%s191 + $0x14] sm:%s182]
                %204 = vst [vmem:[%s192 + $0x14] sm:%s182] %v203
                %v205 = vld [vmem:[%s191 + $0x18] sm:%s182]
                %206 = vst [vmem:[%s192 + $0x18] sm:%s182] %v205
                %v207 = vld [vmem:[%s191 + $0x1c] sm:%s182]
                %208 = vst [vmem:[%s192 + $0x1c] sm:%s182] %v207
                %v209 = vld [vmem:[%s191 + $0x20] sm:%s182]
                %210 = vst [vmem:[%s192 + $0x20] sm:%s182] %v209
                %v211 = vld [vmem:[%s191 + $0x24] sm:%s182]
                %212 = vst [vmem:[%s192 + $0x24] sm:%s182] %v211
                %v213 = vld [vmem:[%s191 + $0x28] sm:%s182]
                %214 = vst [vmem:[%s192 + $0x28] sm:%s182] %v213
                %v215 = vld [vmem:[%s191 + $0x2c] sm:%s182]
                %216 = vst [vmem:[%s192 + $0x2c] sm:%s182] %v215
                %v217 = vld [vmem:[%s191 + $0x30] sm:%s182]
                %218 = vst [vmem:[%s192 + $0x30] sm:%s182] %v217
                %v219 = vld [vmem:[%s191 + $0x34] sm:%s182]
                %220 = vst [vmem:[%s192 + $0x34] sm:%s182] %v219
                %v221 = vld [vmem:[%s191 + $0x38] sm:%s182]
                %222 = vst [vmem:[%s192 + $0x38] sm:%s182] %v221
                %v223 = vld [vmem:[%s191 + $0x3c] sm:%s182]
                %224 = vst [vmem:[%s192 + $0x3c] sm:%s182] %v223
                %v225 = vld [vmem:[%s191 + $0x40] sm:%s182]
                %226 = vst [vmem:[%s192 + $0x40] sm:%s182] %v225
                %v227 = vld [vmem:[%s191 + $0x44] sm:%s182]
                %228 = vst [vmem:[%s192 + $0x44] sm:%s182] %v227
                %v229 = vld [vmem:[%s191 + $0x48] sm:%s182]
                %230 = vst [vmem:[%s192 + $0x48] sm:%s182] %v229
                %v231 = vld [vmem:[%s191 + $0x4c] sm:%s182]
                %232 = vst [vmem:[%s192 + $0x4c] sm:%s182] %v231
                %v233 = vld [vmem:[%s191 + $0x50] sm:%s182]
                %234 = vst [vmem:[%s192 + $0x50] sm:%s182] %v233
                %v235 = vld [vmem:[%s191 + $0x54] sm:%s182]
                %236 = vst [vmem:[%s192 + $0x54] sm:%s182] %v235
                %v237 = vld [vmem:[%s191 + $0x58] sm:%s182]
                %238 = vst [vmem:[%s192 + $0x58] sm:%s182] %v237
                %v239 = vld [vmem:[%s191 + $0x5c] sm:%s182]
                %240 = vst [vmem:[%s192 + $0x5c] sm:%s182] %v239
                %v241 = vld [vmem:[%s191 + $0x60] sm:%s182]
                %242 = vst [vmem:[%s192 + $0x60] sm:%s182] %v241
                %v243 = vld [vmem:[%s191 + $0x64] sm:%s182]
                %244 = vst [vmem:[%s192 + $0x64] sm:%s182] %v243
                %v245 = vld [vmem:[%s191 + $0x68] sm:%s182]
                %246 = vst [vmem:[%s192 + $0x68] sm:%s182] %v245
                %v247 = vld [vmem:[%s191 + $0x6c] sm:%s182]
                %248 = vst [vmem:[%s192 + $0x6c] sm:%s182] %v247
                %v249 = vld [vmem:[%s191 + $0x70] sm:%s182]
                %250 = vst [vmem:[%s192 + $0x70] sm:%s182] %v249
                %v251 = vld [vmem:[%s191 + $0x74] sm:%s182]
                %252 = vst [vmem:[%s192 + $0x74] sm:%s182] %v251
                %v253 = vld [vmem:[%s191 + $0x78] sm:%s182]
                %254 = vst [vmem:[%s192 + $0x78] sm:%s182] %v253
                %v255 = vld [vmem:[%s191 + $0x7c] sm:%s182]
                %256 = vst [vmem:[%s192 + $0x7c] sm:%s182] %v255
                %v257 = vld [vmem:[%s191 + $0x208] sm:%s182]
                %258 = vst [vmem:[%s192 + $0x80] sm:%s182] %v257
                %v259 = vld [vmem:[%s191 + $0x20c] sm:%s182]
                %260 = vst [vmem:[%s192 + $0x84] sm:%s182] %v259
                %v261 = vld [vmem:[%s191 + $0x210] sm:%s182]
                %262 = vst [vmem:[%s192 + $0x88] sm:%s182] %v261
                %v263 = vld [vmem:[%s191 + $0x214] sm:%s182]
                %264 = vst [vmem:[%s192 + $0x8c] sm:%s182] %v263
                %v265 = vld [vmem:[%s191 + $0x218] sm:%s182]
                %266 = vst [vmem:[%s192 + $0x90] sm:%s182] %v265
                %v267 = vld [vmem:[%s191 + $0x21c] sm:%s182]
                %268 = vst [vmem:[%s192 + $0x94] sm:%s182] %v267
                %v269 = vld [vmem:[%s191 + $0x220] sm:%s182]
                %270 = vst [vmem:[%s192 + $0x98] sm:%s182] %v269
                %v271 = vld [vmem:[%s191 + $0x224] sm:%s182]
                %272 = vst [vmem:[%s192 + $0x9c] sm:%s182] %v271
                %v273 = vld [vmem:[%s191 + $0x228] sm:%s182]
                %274 = vst [vmem:[%s192 + $0xa0] sm:%s182] %v273
                %v275 = vld [vmem:[%s191 + $0x22c] sm:%s182]
                %276 = vst [vmem:[%s192 + $0xa4] sm:%s182] %v275
                %v277 = vld [vmem:[%s191 + $0x230] sm:%s182]
                %278 = vst [vmem:[%s192 + $0xa8] sm:%s182] %v277
                %v279 = vld [vmem:[%s191 + $0x234] sm:%s182]
                %280 = vst [vmem:[%s192 + $0xac] sm:%s182] %v279
                %v281 = vld [vmem:[%s191 + $0x238] sm:%s182]
                %282 = vst [vmem:[%s192 + $0xb0] sm:%s182] %v281
                %v283 = vld [vmem:[%s191 + $0x23c] sm:%s182]
                %284 = vst [vmem:[%s192 + $0xb4] sm:%s182] %v283
                %v285 = vld [vmem:[%s191 + $0x240] sm:%s182]
                %286 = vst [vmem:[%s192 + $0xb8] sm:%s182] %v285
                %v287 = vld [vmem:[%s191 + $0x244] sm:%s182]
                %288 = vst [vmem:[%s192 + $0xbc] sm:%s182] %v287
                %v289 = vld [vmem:[%s191 + $0x248] sm:%s182]
                %290 = vst [vmem:[%s192 + $0xc0] sm:%s182] %v289
                %v291 = vld [vmem:[%s191 + $0x24c] sm:%s182]
                %292 = vst [vmem:[%s192 + $0xc4] sm:%s182] %v291
                %v293 = vld [vmem:[%s191 + $0x250] sm:%s182]
                %294 = vst [vmem:[%s192 + $0xc8] sm:%s182] %v293
                %v295 = vld [vmem:[%s191 + $0x254] sm:%s182]
                %296 = vst [vmem:[%s192 + $0xcc] sm:%s182] %v295
                %v297 = vld [vmem:[%s191 + $0x258] sm:%s182]
                %298 = vst [vmem:[%s192 + $0xd0] sm:%s182] %v297
                %v299 = vld [vmem:[%s191 + $0x25c] sm:%s182]
                %300 = vst [vmem:[%s192 + $0xd4] sm:%s182] %v299
                %v301 = vld [vmem:[%s191 + $0x260] sm:%s182]
                %302 = vst [vmem:[%s192 + $0xd8] sm:%s182] %v301
                %v303 = vld [vmem:[%s191 + $0x264] sm:%s182]
                %304 = vst [vmem:[%s192 + $0xdc] sm:%s182] %v303
                %v305 = vld [vmem:[%s191 + $0x268] sm:%s182]
                %306 = vst [vmem:[%s192 + $0xe0] sm:%s182] %v305
                %v307 = vld [vmem:[%s191 + $0x26c] sm:%s182]
                %308 = vst [vmem:[%s192 + $0xe4] sm:%s182] %v307
                %v309 = vld [vmem:[%s191 + $0x270] sm:%s182]
                %310 = vst [vmem:[%s192 + $0xe8] sm:%s182] %v309
                %v311 = vld [vmem:[%s191 + $0x274] sm:%s182]
                %312 = vst [vmem:[%s192 + $0xec] sm:%s182] %v311
                %v313 = vld [vmem:[%s191 + $0x278] sm:%s182]
                %314 = vst [vmem:[%s192 + $0xf0] sm:%s182] %v313
                %v315 = vld [vmem:[%s191 + $0x27c] sm:%s182]
                %316 = vst [vmem:[%s192 + $0xf4] sm:%s182] %v315
                %v317 = vld [vmem:[%s191 + $0x280] sm:%s182]
                %318 = vst [vmem:[%s192 + $0xf8] sm:%s182] %v317
                %v319 = vld [vmem:[%s191 + $0x284] sm:%s182]
                %320 = vst [vmem:[%s192 + $0xfc] sm:%s182] %v319
                %s321 = sadd.s32 1, %s190
                %p322 = scmp.ge.s32.totalorder %s321, %s183
                %s323 = scalar_select %p322, 0, %s321
                %s324 = smul.u32 %s323, 128
                %s325 = smul.u32 %s323, 128
                %s326 = scalar_lea.vmem %s173, %s324
                %s327 = scalar_lea.vmem %s165, %s325 [#allocation3]
              $region45: #{tpu_custom_call.1} parent=39 // loop_footer
                %s187 = sadd.s32 %s185, 1
              $region46: #{tpu_custom_call.1} parent=39 // loop_footer_branch
                %184 = sbr.rel target = $region42
              $region47: #{tpu_custom_call.1} parent=39 // loop_exit
                _
              %s328 = sshrl.u32 %s169, 5
              %s329 = sand.u32 %s169, 31
              %s330 = smul.u32 %s328, 32
              %s331 = smul.u32 4, %s330
              %s332 = scalar_lea.vmem %s173, %s331
              %s333 = smul.u32 4, %s330
              %s334 = scalar_lea.vmem %s165, %s333 [#allocation3]
              // While loop
              $region48: #{tpu_custom_call.1} parent=39 // loop_pre_header
                _
              $region49: #{tpu_custom_call.1} parent=39 // loop_header
                %s336 = sphi 0, %s338
                %p337 = scmp.ge.s32.totalorder %s336, %s329
                %s341 = sphi 0, %s350
                %s342 = sphi %s332, %s353
                %s343 = sphi %s334, %s354
              $region50: #{tpu_custom_call.1} parent=39 // loop_header_branch
                %340 = sbr.rel (%p337) target = $region54
              $region51: #{tpu_custom_call.1} parent=39 // loop_body
                %v344 = vld [vmem:[%s342] sm:%s182]
                %345 = vst [vmem:[%s343] sm:%s182] %v344
                %v346 = vld [vmem:[%s342 + $0x208] sm:%s182]
                %347 = vst [vmem:[%s343 + $0x80] sm:%s182] %v346
                %s348 = sadd.s32 1, %s341
                %p349 = scmp.ge.s32.totalorder %s348, %s329
                %s350 = scalar_select %p349, 0, %s348
                %s351 = smul.u32 %s350, 4
                %s352 = smul.u32 %s350, 4
                %s353 = scalar_lea.vmem %s332, %s351
                %s354 = scalar_lea.vmem %s334, %s352 [#allocation3]
              $region52: #{tpu_custom_call.1} parent=39 // loop_footer
                %s338 = sadd.s32 %s336, 1
              $region53: #{tpu_custom_call.1} parent=39 // loop_footer_branch
                %335 = sbr.rel target = $region49
              $region54: #{tpu_custom_call.1} parent=39 // loop_exit
                _
            $region40: #{tpu_custom_call.1} parent=31 // pred_fallthru
              _
          $region32: #{tpu_custom_call.1} parent=27 // pred_fallthru
            _
          %571 = vnop
        $region28: #{tpu_custom_call.1} parent=23 // pred_fallthru
          _
        // Predicated region
        $region87: #{tpu_custom_call.1} parent=23 // pred_check
          %p572 = pneg %p60
        $region88: #{tpu_custom_call.1} parent=23 // pred_check_branch
          %574 = sbr.rel (%p572) target = $region90
        $region89: #{tpu_custom_call.1} parent=23 // pred_region
          %s575 = sand.u32 %s50, 1
          %s576 = sand.u32 %s50, 1
          %s577 = smul.addr %s576, 16
          %s578 = scalar_lea.vmem [#allocation4], %s577
          %s579 = sadd.s32 %s10, 1
          %s580 = smul.u32 %s579, 16
          %s581 = smul.u32 2, %s580
          %s582 = smul.addr %s581, 4
          %s583 = scalar_lea.vmem %s1, %s582
          // Predicated region
          $region91: #{tpu_custom_call.1} parent=89 // pred_check
            _
          $region92: #{tpu_custom_call.1} parent=89 // pred_check_branch
            %585 = sbr.rel (0) target = $region94
          $region93: #{tpu_custom_call.1} parent=89 // pred_region
            // Predicated region
            $region95: #{tpu_custom_call.1} parent=93 // pred_check
              _
            $region96: #{tpu_custom_call.1} parent=93 // pred_check_branch
              %587 = sbr.rel target = $region98
            $region97: #{tpu_custom_call.1} parent=93 // pred_region
              // Predicated region
              $region110: #{tpu_custom_call.1} parent=97 // pred_check
                _
              $region111: #{tpu_custom_call.1} parent=97 // pred_check_branch
                %609 = sbr.rel (0) target = $region113
              $region112: #{tpu_custom_call.1} parent=97 // pred_region
                loop: start=0, step=1, limit=1
                $region114: #{tpu_custom_call.1} parent=112 // loop_pre_header
                  _
                $region115: #{tpu_custom_call.1} parent=112 // loop_header
                  %s611 = sphi 0, %s615
                  %p612 = scmp.ge.s32.totalorder %s611, 1
                  %s616 = sphi %s583, %s583
                  %s617 = sphi %s578, %s578
                $region116: #{tpu_custom_call.1} parent=112 // loop_header_branch
                  %614 = sbr.rel (%p612) target = $region120
                $region117: #{tpu_custom_call.1} parent=112 // loop_body
                  _
                $region118: #{tpu_custom_call.1} parent=112 // loop_footer
                  %s615 = sadd.s32 1, %s611
                $region119: #{tpu_custom_call.1} parent=112 // loop_footer_branch
                  %610 = sbr.rel target = $region115
                $region120: #{tpu_custom_call.1} parent=112 // loop_exit
                  _
                %s619 = ssub.s32 16, 1
                loop: start=0, step=1, limit=1
                $region121: #{tpu_custom_call.1} parent=112 // loop_pre_header
                  _
                $region122: #{tpu_custom_call.1} parent=112 // loop_header
                  %s621 = sphi 0, %s625
                  %p622 = scmp.ge.s32.totalorder %s621, 1
                  %s626 = sphi %s583, %s583
                  %s627 = sphi %s578, %s578
                $region123: #{tpu_custom_call.1} parent=112 // loop_header_branch
                  %624 = sbr.rel (%p622) target = $region127
                $region124: #{tpu_custom_call.1} parent=112 // loop_body
                  %v628 = vld [vmem:[%s626] sm:%s619]
                  %629 = vst [vmem:[%s627] sm:%s619] %v628
                  %v630 = vld [vmem:[%s626 + $0x4] sm:%s619]
                  %631 = vst [vmem:[%s627 + $0x4] sm:%s619] %v630
                  %v632 = vld [vmem:[%s626 + $0x208] sm:%s619]
                  %633 = vst [vmem:[%s627 + $0x8] sm:%s619] %v632
                  %v634 = vld [vmem:[%s626 + $0x20c] sm:%s619]
                  %635 = vst [vmem:[%s627 + $0xc] sm:%s619] %v634
                $region125: #{tpu_custom_call.1} parent=112 // loop_footer
                  %s625 = sadd.s32 1, %s621
                $region126: #{tpu_custom_call.1} parent=112 // loop_footer_branch
                  %620 = sbr.rel target = $region122
                $region127: #{tpu_custom_call.1} parent=112 // loop_exit
                  _
              $region113: #{tpu_custom_call.1} parent=97 // pred_fallthru
                _
            $region98: #{tpu_custom_call.1} parent=93 // pred_fallthru
              _
            // Predicated region
            $region99: #{tpu_custom_call.1} parent=93 // pred_check
              _
            $region100: #{tpu_custom_call.1} parent=93 // pred_check_branch
              %589 = sbr.rel (0) target = $region102
            $region101: #{tpu_custom_call.1} parent=93 // pred_region
              %s591 = ssub.s32 16, 1
              loop: start=0, step=1, limit=1
              $region103: #{tpu_custom_call.1} parent=101 // loop_pre_header
                _
              $region104: #{tpu_custom_call.1} parent=101 // loop_header
                %s593 = sphi 0, %s597
                %p594 = scmp.ge.s32.totalorder %s593, 1
                %s598 = sphi %s583, %s583
                %s599 = sphi %s578, %s578
              $region105: #{tpu_custom_call.1} parent=101 // loop_header_branch
                %596 = sbr.rel (%p594) target = $region109
              $region106: #{tpu_custom_call.1} parent=101 // loop_body
                %v600 = vld [vmem:[%s598] sm:%s591]
                %601 = vst [vmem:[%s599] sm:%s591] %v600
                %v602 = vld [vmem:[%s598 + $0x4] sm:%s591]
                %603 = vst [vmem:[%s599 + $0x4] sm:%s591] %v602
                %v604 = vld [vmem:[%s598 + $0x208] sm:%s591]
                %605 = vst [vmem:[%s599 + $0x8] sm:%s591] %v604
                %v606 = vld [vmem:[%s598 + $0x20c] sm:%s591]
                %607 = vst [vmem:[%s599 + $0xc] sm:%s591] %v606
              $region107: #{tpu_custom_call.1} parent=101 // loop_footer
                %s597 = sadd.s32 1, %s593
              $region108: #{tpu_custom_call.1} parent=101 // loop_footer_branch
                %592 = sbr.rel target = $region104
              $region109: #{tpu_custom_call.1} parent=101 // loop_exit
                _
            $region102: #{tpu_custom_call.1} parent=93 // pred_fallthru
              _
          $region94: #{tpu_custom_call.1} parent=89 // pred_fallthru
            _
          %636 = vnop
        $region90: #{tpu_custom_call.1} parent=23 // pred_fallthru
          _
      $region24: #{tpu_custom_call.1} parent=5 // pred_fallthru
        _
      %p637 = scmp.le.s32.totalorder 1, %s10
      %p638 = scmp.lt.s32.totalorder %s10, 5
      %p639 = pnand %p637, %p638
      %p640 = pneg %p639
      // Predicated region
      $region128: #{tpu_custom_call.1} parent=5 // pred_check
        _
      $region129: #{tpu_custom_call.1} parent=5 // pred_check_branch
        %642 = sbr.rel (%p639) target = $region131
      $region130: #{tpu_custom_call.1} parent=5 // pred_region
        %s643 = ssub.s32 %s10, 1
        %s644 = sand.u32 %s23, 1
        %s645 = sand.u32 %s23, 1
        %s646 = smul.addr %s645, 256
        %s647 = scalar_lea.vmem [#allocation3], %s646
        // Predicated region
        $region132: #{tpu_custom_call.1} parent=130 // pred_check
          %p648 = pneg %p36
        $region133: #{tpu_custom_call.1} parent=130 // pred_check_branch
          %650 = sbr.rel (%p648) target = $region135
        $region134: #{tpu_custom_call.1} parent=130 // pred_region
          _
        $region135: #{tpu_custom_call.1} parent=130 // pred_fallthru
          _
        %s651 = sand.u32 %s53, 1
        %s652 = sand.u32 %s53, 1
        %s653 = smul.addr %s652, 16
        %s654 = scalar_lea.vmem [#allocation4], %s653
        // Predicated region
        $region136: #{tpu_custom_call.1} parent=130 // pred_check
          %p655 = pneg %p66
        $region137: #{tpu_custom_call.1} parent=130 // pred_check_branch
          %657 = sbr.rel (%p655) target = $region139
        $region138: #{tpu_custom_call.1} parent=130 // pred_region
          _
        $region139: #{tpu_custom_call.1} parent=130 // pred_fallthru
          _
        %s658 = sand.u32 %s23, 1
        %s659 = sand.u32 %s23, 1
        %s660 = smul.addr %s659, 256
        %s661 = scalar_lea.vmem [#allocation3], %s660
        %p662 = pneg %p36
        %p663 = pneg %p33
        %s664 = sand.u32 %s53, 1
        %s665 = sand.u32 %s53, 1
        %s666 = smul.addr %s665, 16
        %s667 = scalar_lea.vmem [#allocation4], %s666
        %p668 = pneg %p66
        %p669 = pneg %p63
        %p670 = pneg %p87
        %p671 = pneg %p84
        %p672 = pneg %p108
        %p673 = pneg %p105
        %p674 = pneg %p134
        %p675 = pneg %p131
        %s676 = sand.u32 %s121, 1
        %s677 = sand.u32 %s121, 1
        %s678 = smul.addr %s677, 256
        %s679 = scalar_lea.vmem [#allocation5], %s678
        %s680 = smul.u32 32, %s15
        %s681 = ssub.s32 130, %s680
        %p682 = scmp.lt.s32.totalorder %s681, 32
        %s683 = scalar_select %p682, %s681, 32
        %s684 = smul.u32 128, %s683
        %s685 = sadd.s32 %s15, 1
        %s686 = smul.u32 %s685, 16
        %s687 = smul.u32 2, %s686
        %s688 = smul.u32 32, %s15
        %v690 = vld [vmem:[%s647] sm:$0xf]
        %v691 = vld [vmem:[%s647 + $0x4] sm:$0xf]
        %v692 = vld [vmem:[%s647 + $0x8] sm:$0xf]
        %v693 = vld [vmem:[%s647 + $0xc] sm:$0xf]
        %v694 = vld [vmem:[%s647 + $0x10] sm:$0xf]
        %v695 = vld [vmem:[%s647 + $0x14] sm:$0xf]
        %v696 = vld [vmem:[%s647 + $0x18] sm:$0xf]
        %v697 = vld [vmem:[%s647 + $0x1c] sm:$0xf]
        %v698 = vld [vmem:[%s647 + $0x80] sm:$0xf]
        %v699 = vld [vmem:[%s647 + $0x84] sm:$0xf]
        %v700 = vld [vmem:[%s647 + $0x88] sm:$0xf]
        %v701 = vld [vmem:[%s647 + $0x8c] sm:$0xf]
        %v702 = vld [vmem:[%s647 + $0x90] sm:$0xf]
        %v703 = vld [vmem:[%s647 + $0x94] sm:$0xf]
        %v704 = vld [vmem:[%s647 + $0x98] sm:$0xf]
        %v705 = vld [vmem:[%s647 + $0x9c] sm:$0xf]
        %v706 = vld [vmem:[%s2] sm:$0xf]
        %v707 = vld [vmem:[%s2 + $0x4] sm:$0xf]
        %v708 = vld [vmem:[%s3] sm:$0x1]
        %v710 = vlaneseq
        %v711 = vshrl.u32 %v710, 7
        %v712 = vsub.s32 0, %v711
        %v713 = vrot.slane %v708, %v712
        %v731 = vunpack.c.l.b16 %v690
        %v732 = vunpack.c.l.b16 %v691
        %v733 = vunpack.c.l.b16 %v692
        %v734 = vunpack.c.l.b16 %v693
        %v735 = vunpack.c.l.b16 %v694
        %v736 = vunpack.c.l.b16 %v695
        %v737 = vunpack.c.l.b16 %v696
        %v738 = vunpack.c.l.b16 %v697
        %v739 = vunpack.c.l.b16 %v698
        %v740 = vunpack.c.l.b16 %v699
        %v741 = vunpack.c.l.b16 %v700
        %v742 = vunpack.c.l.b16 %v701
        %v743 = vunpack.c.l.b16 %v702
        %v744 = vunpack.c.l.b16 %v703
        %v745 = vunpack.c.l.b16 %v704
        %v746 = vunpack.c.l.b16 %v705
        %v747 = vpack.c.b16 %v732, %v731
        %v748 = vpack.c.b16 %v734, %v733
        %v749 = vpack.c.b16 %v736, %v735
        %v750 = vpack.c.b16 %v738, %v737
        %v751 = vpack.c.b16 %v740, %v739
        %v752 = vpack.c.b16 %v742, %v741
        %v753 = vpack.c.b16 %v744, %v743
        %v754 = vpack.c.b16 %v746, %v745
        %v757 = vunpack.c.l.b16 %v706
        %v758 = vunpack.c.l.b16 %v707
        %v759 = vpack.c.b16 %v758, %v757
        %vm761 = vcmask 130048
        %v763 = vsel %vm761, %v747, 0
        %v766 = vsel %vm761, %v748, 0
        %v769 = vsel %vm761, %v749, 0
        %v772 = vsel %vm761, %v750, 0
        %v775 = vsel %vm761, %v751, 0
        %v778 = vsel %vm761, %v752, 0
        %v781 = vsel %vm761, %v753, 0
        %v784 = vsel %vm761, %v754, 0
        %786 = vmatprep.subr.bf16.mxu0 0
        %787 = vmatpush1.bf16.msra.mxu0 0
        %788 = vmatprep.subr.bf16.mxu0 0
        %789 = vmatpush1.bf16.msra.mxu0 0
        %790 = vmatprep.subr.bf16.mxu0 0
        %791 = vmatpush1.bf16.msra.mxu0 0
        %792 = vmatprep.subr.bf16.mxu0 0
        %793 = vmatpush1.bf16.msra.mxu0 0
        %794 = vmatprep.subr.bf16.mxu0 0
        %795 = vmatpush1.bf16.msra.mxu0 0
        %796 = vmatprep.subr.bf16.mxu0 0
        %797 = vmatpush1.bf16.msra.mxu0 0
        %798 = vmatprep.subr.bf16.mxu0 0
        %799 = vmatpush1.bf16.msra.mxu0 0
        %800 = vmatprep.subr.bf16.mxu0 0
        %801 = vmatpush1.bf16.msra.mxu0 %v759
        %802 = vmatprep.subr.bf16.mxu0 0
        %803 = vmatpush2.bf16.msra.mxu0 0
        %804 = vmatprep.subr.bf16.mxu0 0
        %805 = vmatpush2.bf16.msra.mxu0 0
        %806 = vmatprep.subr.bf16.mxu0 0
        %807 = vmatpush2.bf16.msra.mxu0 0
        %808 = vmatprep.subr.bf16.mxu0 0
        %809 = vmatpush2.bf16.msra.mxu0 0
        %810 = vmatprep.subr.bf16.mxu0 0
        %811 = vmatpush2.bf16.msra.mxu0 0
        %812 = vmatprep.subr.bf16.mxu0 0
        %813 = vmatpush2.bf16.msra.mxu0 0
        %814 = vmatprep.subr.bf16.mxu0 0
        %815 = vmatpush2.bf16.msra.mxu0 0
        %816 = vmatprep.subr.bf16.mxu0 0
        %817 = vmatpush2.bf16.msra.mxu0 0
        %818 = vmatprep.mubr.bf16.mxu0 0
        %819 = vmatmul.mubr.bf16.gmra.mxu0 %v763
        %v820 = vpop.f32.mrf.mxu0
        %v821 = vadd.f32 %v713, %v820
        %v822 = vpop.f32.mrf.mxu0
        %v823 = vpop.f32.mrf.mxu0
        %v824 = vadd.f32 %v713, %v823
        %v825 = vpop.f32.mrf.mxu0
        %826 = vmatprep.mubr.bf16.mxu0 0
        %827 = vmatmul.mubr.bf16.gmra.mxu0 %v766
        %v828 = vpop.f32.mrf.mxu0
        %v829 = vadd.f32 %v713, %v828
        %v830 = vpop.f32.mrf.mxu0
        %v831 = vpop.f32.mrf.mxu0
        %v832 = vadd.f32 %v713, %v831
        %v833 = vpop.f32.mrf.mxu0
        %834 = vmatprep.mubr.bf16.mxu0 0
        %835 = vmatmul.mubr.bf16.gmra.mxu0 %v769
        %v836 = vpop.f32.mrf.mxu0
        %v837 = vadd.f32 %v713, %v836
        %v838 = vpop.f32.mrf.mxu0
        %v839 = vpop.f32.mrf.mxu0
        %v840 = vadd.f32 %v713, %v839
        %v841 = vpop.f32.mrf.mxu0
        %842 = vmatprep.mubr.bf16.mxu0 0
        %843 = vmatmul.mubr.bf16.gmra.mxu0 %v772
        %v844 = vpop.f32.mrf.mxu0
        %v845 = vadd.f32 %v713, %v844
        %v846 = vpop.f32.mrf.mxu0
        %v847 = vpop.f32.mrf.mxu0
        %v848 = vadd.f32 %v713, %v847
        %v849 = vpop.f32.mrf.mxu0
        %850 = vmatprep.mubr.bf16.mxu0 0
        %851 = vmatmul.mubr.bf16.gmra.mxu0 %v775
        %v852 = vpop.f32.mrf.mxu0
        %v853 = vadd.f32 %v713, %v852
        %v854 = vpop.f32.mrf.mxu0
        %v855 = vpop.f32.mrf.mxu0
        %v856 = vadd.f32 %v713, %v855
        %v857 = vpop.f32.mrf.mxu0
        %858 = vmatprep.mubr.bf16.mxu0 0
        %859 = vmatmul.mubr.bf16.gmra.mxu0 %v778
        %v860 = vpop.f32.mrf.mxu0
        %v861 = vadd.f32 %v713, %v860
        %v862 = vpop.f32.mrf.mxu0
        %v863 = vpop.f32.mrf.mxu0
        %v864 = vadd.f32 %v713, %v863
        %v865 = vpop.f32.mrf.mxu0
        %866 = vmatprep.mubr.bf16.mxu0 0
        %867 = vmatmul.mubr.bf16.gmra.mxu0 %v781
        %v868 = vpop.f32.mrf.mxu0
        %v869 = vadd.f32 %v713, %v868
        %v870 = vpop.f32.mrf.mxu0
        %v871 = vpop.f32.mrf.mxu0
        %v872 = vadd.f32 %v713, %v871
        %v873 = vpop.f32.mrf.mxu0
        %874 = vmatprep.mubr.bf16.mxu0 0
        %875 = vmatmul.mubr.bf16.gmra.mxu0 %v784
        %v876 = vpop.f32.mrf.mxu0
        %v877 = vadd.f32 %v713, %v876
        %v878 = vpop.f32.mrf.mxu0
        %v879 = vpop.f32.mrf.mxu0
        %v880 = vadd.f32 %v713, %v879
        %v881 = vpop.f32.mrf.mxu0
        %882 = vdwg.mxu0
        %vm883 = vcmp.ge.f32.partialorder %v821, 0.0
        %vm884 = vcmp.ge.f32.partialorder %v824, 0.0
        %vm885 = vcmp.ge.f32.partialorder %v829, 0.0
        %vm886 = vcmp.ge.f32.partialorder %v832, 0.0
        %vm887 = vcmp.ge.f32.partialorder %v837, 0.0
        %vm888 = vcmp.ge.f32.partialorder %v840, 0.0
        %vm889 = vcmp.ge.f32.partialorder %v845, 0.0
        %vm890 = vcmp.ge.f32.partialorder %v848, 0.0
        %vm891 = vcmp.ge.f32.partialorder %v853, 0.0
        %vm892 = vcmp.ge.f32.partialorder %v856, 0.0
        %vm893 = vcmp.ge.f32.partialorder %v861, 0.0
        %vm894 = vcmp.ge.f32.partialorder %v864, 0.0
        %vm895 = vcmp.ge.f32.partialorder %v869, 0.0
        %vm896 = vcmp.ge.f32.partialorder %v872, 0.0
        %vm897 = vcmp.ge.f32.partialorder %v877, 0.0
        %vm898 = vcmp.ge.f32.partialorder %v880, 0.0
        %v899 = vmul.f32 %v821, 0.1
        %v900 = vmul.f32 %v824, 0.1
        %v901 = vmul.f32 %v829, 0.1
        %v902 = vmul.f32 %v832, 0.1
        %v903 = vmul.f32 %v837, 0.1
        %v904 = vmul.f32 %v840, 0.1
        %v905 = vmul.f32 %v845, 0.1
        %v906 = vmul.f32 %v848, 0.1
        %v907 = vmul.f32 %v853, 0.1
        %v908 = vmul.f32 %v856, 0.1
        %v909 = vmul.f32 %v861, 0.1
        %v910 = vmul.f32 %v864, 0.1
        %v911 = vmul.f32 %v869, 0.1
        %v912 = vmul.f32 %v872, 0.1
        %v913 = vmul.f32 %v877, 0.1
        %v914 = vmul.f32 %v880, 0.1
        %v915 = vsel %vm883, %v821, %v899
        %v916 = vsel %vm884, %v824, %v900
        %v917 = vsel %vm885, %v829, %v901
        %v918 = vsel %vm886, %v832, %v902
        %v919 = vsel %vm887, %v837, %v903
        %v920 = vsel %vm888, %v840, %v904
        %v921 = vsel %vm889, %v845, %v905
        %v922 = vsel %vm890, %v848, %v906
        %v923 = vsel %vm891, %v853, %v907
        %v924 = vsel %vm892, %v856, %v908
        %v925 = vsel %vm893, %v861, %v909
        %v926 = vsel %vm894, %v864, %v910
        %v927 = vsel %vm895, %v869, %v911
        %v928 = vsel %vm896, %v872, %v912
        %v929 = vsel %vm897, %v877, %v913
        %v930 = vsel %vm898, %v880, %v914
        %v931 = vpack.c.bf16 %v916, %v915
        %v932 = vpack.c.bf16 %v918, %v917
        %v933 = vpack.c.bf16 %v920, %v919
        %v934 = vpack.c.bf16 %v922, %v921
        %v935 = vpack.c.bf16 %v924, %v923
        %v936 = vpack.c.bf16 %v926, %v925
        %v937 = vpack.c.bf16 %v928, %v927
        %v938 = vpack.c.bf16 %v930, %v929
        %v947 = vunpack.c.l.b16 %v931
        %v948 = vunpack.c.h.b16 %v931
        %v949 = vunpack.c.l.b16 %v932
        %v950 = vunpack.c.h.b16 %v932
        %v951 = vunpack.c.l.b16 %v933
        %v952 = vunpack.c.h.b16 %v933
        %v953 = vunpack.c.l.b16 %v934
        %v954 = vunpack.c.h.b16 %v934
        %v955 = vunpack.c.l.b16 %v935
        %v956 = vunpack.c.h.b16 %v935
        %v957 = vunpack.c.l.b16 %v936
        %v958 = vunpack.c.h.b16 %v936
        %v959 = vunpack.c.l.b16 %v937
        %v960 = vunpack.c.h.b16 %v937
        %v961 = vunpack.c.l.b16 %v938
        %v962 = vunpack.c.h.b16 %v938
        %v963 = vpack.c.b16 %v947, %v947
        %v964 = vpack.c.b16 %v948, %v948
        %v965 = vpack.c.b16 %v949, %v949
        %v966 = vpack.c.b16 %v950, %v950
        %v967 = vpack.c.b16 %v951, %v951
        %v968 = vpack.c.b16 %v952, %v952
        %v969 = vpack.c.b16 %v953, %v953
        %v970 = vpack.c.b16 %v954, %v954
        %v971 = vpack.c.b16 %v955, %v955
        %v972 = vpack.c.b16 %v956, %v956
        %v973 = vpack.c.b16 %v957, %v957
        %v974 = vpack.c.b16 %v958, %v958
        %v975 = vpack.c.b16 %v959, %v959
        %v976 = vpack.c.b16 %v960, %v960
        %v977 = vpack.c.b16 %v961, %v961
        %v978 = vpack.c.b16 %v962, %v962
        %vm995 = vcmask 125952
        %996 = vst.msk [vmem:[%s679] sm:$0xf] %vm995, %v963
        %997 = vst.msk [vmem:[%s679 + $0x4] sm:$0xf] %vm995, %v964
        %998 = vst.msk [vmem:[%s679 + $0x8] sm:$0xf] %vm995, %v965
        %999 = vst.msk [vmem:[%s679 + $0xc] sm:$0xf] %vm995, %v966
        %1000 = vst.msk [vmem:[%s679 + $0x10] sm:$0xf] %vm995, %v967
        %1001 = vst.msk [vmem:[%s679 + $0x14] sm:$0xf] %vm995, %v968
        %1002 = vst.msk [vmem:[%s679 + $0x18] sm:$0xf] %vm995, %v969
        %1003 = vst.msk [vmem:[%s679 + $0x1c] sm:$0xf] %vm995, %v970
        %1004 = vst.msk [vmem:[%s679 + $0x80] sm:$0xf] %vm995, %v971
        %1005 = vst.msk [vmem:[%s679 + $0x84] sm:$0xf] %vm995, %v972
        %1006 = vst.msk [vmem:[%s679 + $0x88] sm:$0xf] %vm995, %v973
        %1007 = vst.msk [vmem:[%s679 + $0x8c] sm:$0xf] %vm995, %v974
        %1008 = vst.msk [vmem:[%s679 + $0x90] sm:$0xf] %vm995, %v975
        %1009 = vst.msk [vmem:[%s679 + $0x94] sm:$0xf] %vm995, %v976
        %1010 = vst.msk [vmem:[%s679 + $0x98] sm:$0xf] %vm995, %v977
        %1011 = vst.msk [vmem:[%s679 + $0x9c] sm:$0xf] %vm995, %v978
        %v1012 = vld [vmem:[%s647 + $0x20] sm:$0xf]
        %v1013 = vld [vmem:[%s647 + $0x24] sm:$0xf]
        %v1014 = vld [vmem:[%s647 + $0x28] sm:$0xf]
        %v1015 = vld [vmem:[%s647 + $0x2c] sm:$0xf]
        %v1016 = vld [vmem:[%s647 + $0x30] sm:$0xf]
        %v1017 = vld [vmem:[%s647 + $0x34] sm:$0xf]
        %v1018 = vld [vmem:[%s647 + $0x38] sm:$0xf]
        %v1019 = vld [vmem:[%s647 + $0x3c] sm:$0xf]
        %v1020 = vld [vmem:[%s647 + $0xa0] sm:$0xf]
        %v1021 = vld [vmem:[%s647 + $0xa4] sm:$0xf]
        %v1022 = vld [vmem:[%s647 + $0xa8] sm:$0xf]
        %v1023 = vld [vmem:[%s647 + $0xac] sm:$0xf]
        %v1024 = vld [vmem:[%s647 + $0xb0] sm:$0xf]
        %v1025 = vld [vmem:[%s647 + $0xb4] sm:$0xf]
        %v1026 = vld [vmem:[%s647 + $0xb8] sm:$0xf]
        %v1027 = vld [vmem:[%s647 + $0xbc] sm:$0xf]
        %v1028 = vld [vmem:[%s2] sm:$0xf]
        %v1029 = vld [vmem:[%s2 + $0x4] sm:$0xf]
        %v1030 = vld [vmem:[%s3] sm:$0x1]
        %v1032 = vlaneseq
        %v1033 = vshrl.u32 %v1032, 7
        %v1034 = vsub.s32 0, %v1033
        %v1035 = vrot.slane %v1030, %v1034
        %v1053 = vunpack.c.l.b16 %v1012
        %v1054 = vunpack.c.l.b16 %v1013
        %v1055 = vunpack.c.l.b16 %v1014
        %v1056 = vunpack.c.l.b16 %v1015
        %v1057 = vunpack.c.l.b16 %v1016
        %v1058 = vunpack.c.l.b16 %v1017
        %v1059 = vunpack.c.l.b16 %v1018
        %v1060 = vunpack.c.l.b16 %v1019
        %v1061 = vunpack.c.l.b16 %v1020
        %v1062 = vunpack.c.l.b16 %v1021
        %v1063 = vunpack.c.l.b16 %v1022
        %v1064 = vunpack.c.l.b16 %v1023
        %v1065 = vunpack.c.l.b16 %v1024
        %v1066 = vunpack.c.l.b16 %v1025
        %v1067 = vunpack.c.l.b16 %v1026
        %v1068 = vunpack.c.l.b16 %v1027
        %v1069 = vpack.c.b16 %v1054, %v1053
        %v1070 = vpack.c.b16 %v1056, %v1055
        %v1071 = vpack.c.b16 %v1058, %v1057
        %v1072 = vpack.c.b16 %v1060, %v1059
        %v1073 = vpack.c.b16 %v1062, %v1061
        %v1074 = vpack.c.b16 %v1064, %v1063
        %v1075 = vpack.c.b16 %v1066, %v1065
        %v1076 = vpack.c.b16 %v1068, %v1067
        %v1079 = vunpack.c.l.b16 %v1028
        %v1080 = vunpack.c.l.b16 %v1029
        %v1081 = vpack.c.b16 %v1080, %v1079
        %v1084 = vsel %vm761, %v1069, 0
        %v1087 = vsel %vm761, %v1070, 0
        %v1090 = vsel %vm761, %v1071, 0
        %v1093 = vsel %vm761, %v1072, 0
        %v1096 = vsel %vm761, %v1073, 0
        %v1099 = vsel %vm761, %v1074, 0
        %v1102 = vsel %vm761, %v1075, 0
        %v1105 = vsel %vm761, %v1076, 0
        %1107 = vmatprep.subr.bf16.mxu0 0
        %1108 = vmatpush1.bf16.msra.mxu0 0
        %1109 = vmatprep.subr.bf16.mxu0 0
        %1110 = vmatpush1.bf16.msra.mxu0 0
        %1111 = vmatprep.subr.bf16.mxu0 0
        %1112 = vmatpush1.bf16.msra.mxu0 0
        %1113 = vmatprep.subr.bf16.mxu0 0
        %1114 = vmatpush1.bf16.msra.mxu0 0
        %1115 = vmatprep.subr.bf16.mxu0 0
        %1116 = vmatpush1.bf16.msra.mxu0 0
        %1117 = vmatprep.subr.bf16.mxu0 0
        %1118 = vmatpush1.bf16.msra.mxu0 0
        %1119 = vmatprep.subr.bf16.mxu0 0
        %1120 = vmatpush1.bf16.msra.mxu0 0
        %1121 = vmatprep.subr.bf16.mxu0 0
        %1122 = vmatpush1.bf16.msra.mxu0 %v1081
        %1123 = vmatprep.subr.bf16.mxu0 0
        %1124 = vmatpush2.bf16.msra.mxu0 0
        %1125 = vmatprep.subr.bf16.mxu0 0
        %1126 = vmatpush2.bf16.msra.mxu0 0
        %1127 = vmatprep.subr.bf16.mxu0 0
        %1128 = vmatpush2.bf16.msra.mxu0 0
        %1129 = vmatprep.subr.bf16.mxu0 0
        %1130 = vmatpush2.bf16.msra.mxu0 0
        %1131 = vmatprep.subr.bf16.mxu0 0
        %1132 = vmatpush2.bf16.msra.mxu0 0
        %1133 = vmatprep.subr.bf16.mxu0 0
        %1134 = vmatpush2.bf16.msra.mxu0 0
        %1135 = vmatprep.subr.bf16.mxu0 0
        %1136 = vmatpush2.bf16.msra.mxu0 0
        %1137 = vmatprep.subr.bf16.mxu0 0
        %1138 = vmatpush2.bf16.msra.mxu0 0
        %1139 = vmatprep.mubr.bf16.mxu0 0
        %1140 = vmatmul.mubr.bf16.gmra.mxu0 %v1084
        %v1141 = vpop.f32.mrf.mxu0
        %v1142 = vadd.f32 %v1035, %v1141
        %v1143 = vpop.f32.mrf.mxu0
        %v1144 = vpop.f32.mrf.mxu0
        %v1145 = vadd.f32 %v1035, %v1144
        %v1146 = vpop.f32.mrf.mxu0
        %1147 = vmatprep.mubr.bf16.mxu0 0
        %1148 = vmatmul.mubr.bf16.gmra.mxu0 %v1087
        %v1149 = vpop.f32.mrf.mxu0
        %v1150 = vadd.f32 %v1035, %v1149
        %v1151 = vpop.f32.mrf.mxu0
        %v1152 = vpop.f32.mrf.mxu0
        %v1153 = vadd.f32 %v1035, %v1152
        %v1154 = vpop.f32.mrf.mxu0
        %1155 = vmatprep.mubr.bf16.mxu0 0
        %1156 = vmatmul.mubr.bf16.gmra.mxu0 %v1090
        %v1157 = vpop.f32.mrf.mxu0
        %v1158 = vadd.f32 %v1035, %v1157
        %v1159 = vpop.f32.mrf.mxu0
        %v1160 = vpop.f32.mrf.mxu0
        %v1161 = vadd.f32 %v1035, %v1160
        %v1162 = vpop.f32.mrf.mxu0
        %1163 = vmatprep.mubr.bf16.mxu0 0
        %1164 = vmatmul.mubr.bf16.gmra.mxu0 %v1093
        %v1165 = vpop.f32.mrf.mxu0
        %v1166 = vadd.f32 %v1035, %v1165
        %v1167 = vpop.f32.mrf.mxu0
        %v1168 = vpop.f32.mrf.mxu0
        %v1169 = vadd.f32 %v1035, %v1168
        %v1170 = vpop.f32.mrf.mxu0
        %1171 = vmatprep.mubr.bf16.mxu0 0
        %1172 = vmatmul.mubr.bf16.gmra.mxu0 %v1096
        %v1173 = vpop.f32.mrf.mxu0
        %v1174 = vadd.f32 %v1035, %v1173
        %v1175 = vpop.f32.mrf.mxu0
        %v1176 = vpop.f32.mrf.mxu0
        %v1177 = vadd.f32 %v1035, %v1176
        %v1178 = vpop.f32.mrf.mxu0
        %1179 = vmatprep.mubr.bf16.mxu0 0
        %1180 = vmatmul.mubr.bf16.gmra.mxu0 %v1099
        %v1181 = vpop.f32.mrf.mxu0
        %v1182 = vadd.f32 %v1035, %v1181
        %v1183 = vpop.f32.mrf.mxu0
        %v1184 = vpop.f32.mrf.mxu0
        %v1185 = vadd.f32 %v1035, %v1184
        %v1186 = vpop.f32.mrf.mxu0
        %1187 = vmatprep.mubr.bf16.mxu0 0
        %1188 = vmatmul.mubr.bf16.gmra.mxu0 %v1102
        %v1189 = vpop.f32.mrf.mxu0
        %v1190 = vadd.f32 %v1035, %v1189
        %v1191 = vpop.f32.mrf.mxu0
        %v1192 = vpop.f32.mrf.mxu0
        %v1193 = vadd.f32 %v1035, %v1192
        %v1194 = vpop.f32.mrf.mxu0
        %1195 = vmatprep.mubr.bf16.mxu0 0
        %1196 = vmatmul.mubr.bf16.gmra.mxu0 %v1105
        %v1197 = vpop.f32.mrf.mxu0
        %v1198 = vadd.f32 %v1035, %v1197
        %v1199 = vpop.f32.mrf.mxu0
        %v1200 = vpop.f32.mrf.mxu0
        %v1201 = vadd.f32 %v1035, %v1200
        %v1202 = vpop.f32.mrf.mxu0
        %1203 = vdwg.mxu0
        %vm1204 = vcmp.ge.f32.partialorder %v1142, 0.0
        %vm1205 = vcmp.ge.f32.partialorder %v1145, 0.0
        %vm1206 = vcmp.ge.f32.partialorder %v1150, 0.0
        %vm1207 = vcmp.ge.f32.partialorder %v1153, 0.0
        %vm1208 = vcmp.ge.f32.partialorder %v1158, 0.0
        %vm1209 = vcmp.ge.f32.partialorder %v1161, 0.0
        %vm1210 = vcmp.ge.f32.partialorder %v1166, 0.0
        %vm1211 = vcmp.ge.f32.partialorder %v1169, 0.0
        %vm1212 = vcmp.ge.f32.partialorder %v1174, 0.0
        %vm1213 = vcmp.ge.f32.partialorder %v1177, 0.0
        %vm1214 = vcmp.ge.f32.partialorder %v1182, 0.0
        %vm1215 = vcmp.ge.f32.partialorder %v1185, 0.0
        %vm1216 = vcmp.ge.f32.partialorder %v1190, 0.0
        %vm1217 = vcmp.ge.f32.partialorder %v1193, 0.0
        %vm1218 = vcmp.ge.f32.partialorder %v1198, 0.0
        %vm1219 = vcmp.ge.f32.partialorder %v1201, 0.0
        %v1220 = vmul.f32 %v1142, 0.1
        %v1221 = vmul.f32 %v1145, 0.1
        %v1222 = vmul.f32 %v1150, 0.1
        %v1223 = vmul.f32 %v1153, 0.1
        %v1224 = vmul.f32 %v1158, 0.1
        %v1225 = vmul.f32 %v1161, 0.1
        %v1226 = vmul.f32 %v1166, 0.1
        %v1227 = vmul.f32 %v1169, 0.1
        %v1228 = vmul.f32 %v1174, 0.1
        %v1229 = vmul.f32 %v1177, 0.1
        %v1230 = vmul.f32 %v1182, 0.1
        %v1231 = vmul.f32 %v1185, 0.1
        %v1232 = vmul.f32 %v1190, 0.1
        %v1233 = vmul.f32 %v1193, 0.1
        %v1234 = vmul.f32 %v1198, 0.1
        %v1235 = vmul.f32 %v1201, 0.1
        %v1236 = vsel %vm1204, %v1142, %v1220
        %v1237 = vsel %vm1205, %v1145, %v1221
        %v1238 = vsel %vm1206, %v1150, %v1222
        %v1239 = vsel %vm1207, %v1153, %v1223
        %v1240 = vsel %vm1208, %v1158, %v1224
        %v1241 = vsel %vm1209, %v1161, %v1225
        %v1242 = vsel %vm1210, %v1166, %v1226
        %v1243 = vsel %vm1211, %v1169, %v1227
        %v1244 = vsel %vm1212, %v1174, %v1228
        %v1245 = vsel %vm1213, %v1177, %v1229
        %v1246 = vsel %vm1214, %v1182, %v1230
        %v1247 = vsel %vm1215, %v1185, %v1231
        %v1248 = vsel %vm1216, %v1190, %v1232
        %v1249 = vsel %vm1217, %v1193, %v1233
        %v1250 = vsel %vm1218, %v1198, %v1234
        %v1251 = vsel %vm1219, %v1201, %v1235
        %v1252 = vpack.c.bf16 %v1237, %v1236
        %v1253 = vpack.c.bf16 %v1239, %v1238
        %v1254 = vpack.c.bf16 %v1241, %v1240
        %v1255 = vpack.c.bf16 %v1243, %v1242
        %v1256 = vpack.c.bf16 %v1245, %v1244
        %v1257 = vpack.c.bf16 %v1247, %v1246
        %v1258 = vpack.c.bf16 %v1249, %v1248
        %v1259 = vpack.c.bf16 %v1251, %v1250
        %v1268 = vunpack.c.l.b16 %v1252
        %v1269 = vunpack.c.h.b16 %v1252
        %v1270 = vunpack.c.l.b16 %v1253
        %v1271 = vunpack.c.h.b16 %v1253
        %v1272 = vunpack.c.l.b16 %v1254
        %v1273 = vunpack.c.h.b16 %v1254
        %v1274 = vunpack.c.l.b16 %v1255
        %v1275 = vunpack.c.h.b16 %v1255
        %v1276 = vunpack.c.l.b16 %v1256
        %v1277 = vunpack.c.h.b16 %v1256
        %v1278 = vunpack.c.l.b16 %v1257
        %v1279 = vunpack.c.h.b16 %v1257
        %v1280 = vunpack.c.l.b16 %v1258
        %v1281 = vunpack.c.h.b16 %v1258
        %v1282 = vunpack.c.l.b16 %v1259
        %v1283 = vunpack.c.h.b16 %v1259
        %v1284 = vpack.c.b16 %v1268, %v1268
        %v1285 = vpack.c.b16 %v1269, %v1269
        %v1286 = vpack.c.b16 %v1270, %v1270
        %v1287 = vpack.c.b16 %v1271, %v1271
        %v1288 = vpack.c.b16 %v1272, %v1272
        %v1289 = vpack.c.b16 %v1273, %v1273
        %v1290 = vpack.c.b16 %v1274, %v1274
        %v1291 = vpack.c.b16 %v1275, %v1275
        %v1292 = vpack.c.b16 %v1276, %v1276
        %v1293 = vpack.c.b16 %v1277, %v1277
        %v1294 = vpack.c.b16 %v1278, %v1278
        %v1295 = vpack.c.b16 %v1279, %v1279
        %v1296 = vpack.c.b16 %v1280, %v1280
        %v1297 = vpack.c.b16 %v1281, %v1281
        %v1298 = vpack.c.b16 %v1282, %v1282
        %v1299 = vpack.c.b16 %v1283, %v1283
        %1316 = vst.msk [vmem:[%s679 + $0x20] sm:$0xf] %vm995, %v1284
        %1317 = vst.msk [vmem:[%s679 + $0x24] sm:$0xf] %vm995, %v1285
        %1318 = vst.msk [vmem:[%s679 + $0x28] sm:$0xf] %vm995, %v1286
        %1319 = vst.msk [vmem:[%s679 + $0x2c] sm:$0xf] %vm995, %v1287
        %1320 = vst.msk [vmem:[%s679 + $0x30] sm:$0xf] %vm995, %v1288
        %1321 = vst.msk [vmem:[%s679 + $0x34] sm:$0xf] %vm995, %v1289
        %1322 = vst.msk [vmem:[%s679 + $0x38] sm:$0xf] %vm995, %v1290
        %1323 = vst.msk [vmem:[%s679 + $0x3c] sm:$0xf] %vm995, %v1291
        %1324 = vst.msk [vmem:[%s679 + $0xa0] sm:$0xf] %vm995, %v1292
        %1325 = vst.msk [vmem:[%s679 + $0xa4] sm:$0xf] %vm995, %v1293
        %1326 = vst.msk [vmem:[%s679 + $0xa8] sm:$0xf] %vm995, %v1294
        %1327 = vst.msk [vmem:[%s679 + $0xac] sm:$0xf] %vm995, %v1295
        %1328 = vst.msk [vmem:[%s679 + $0xb0] sm:$0xf] %vm995, %v1296
        %1329 = vst.msk [vmem:[%s679 + $0xb4] sm:$0xf] %vm995, %v1297
        %1330 = vst.msk [vmem:[%s679 + $0xb8] sm:$0xf] %vm995, %v1298
        %1331 = vst.msk [vmem:[%s679 + $0xbc] sm:$0xf] %vm995, %v1299
        %v1332 = vld [vmem:[%s647 + $0x40] sm:$0xf]
        %v1333 = vld [vmem:[%s647 + $0x44] sm:$0xf]
        %v1334 = vld [vmem:[%s647 + $0x48] sm:$0xf]
        %v1335 = vld [vmem:[%s647 + $0x4c] sm:$0xf]
        %v1336 = vld [vmem:[%s647 + $0x50] sm:$0xf]
        %v1337 = vld [vmem:[%s647 + $0x54] sm:$0xf]
        %v1338 = vld [vmem:[%s647 + $0x58] sm:$0xf]
        %v1339 = vld [vmem:[%s647 + $0x5c] sm:$0xf]
        %v1340 = vld [vmem:[%s647 + $0xc0] sm:$0xf]
        %v1341 = vld [vmem:[%s647 + $0xc4] sm:$0xf]
        %v1342 = vld [vmem:[%s647 + $0xc8] sm:$0xf]
        %v1343 = vld [vmem:[%s647 + $0xcc] sm:$0xf]
        %v1344 = vld [vmem:[%s647 + $0xd0] sm:$0xf]
        %v1345 = vld [vmem:[%s647 + $0xd4] sm:$0xf]
        %v1346 = vld [vmem:[%s647 + $0xd8] sm:$0xf]
        %v1347 = vld [vmem:[%s647 + $0xdc] sm:$0xf]
        %v1348 = vld [vmem:[%s2] sm:$0xf]
        %v1349 = vld [vmem:[%s2 + $0x4] sm:$0xf]
        %v1350 = vld [vmem:[%s3] sm:$0x1]
        %v1352 = vlaneseq
        %v1353 = vshrl.u32 %v1352, 7
        %v1354 = vsub.s32 0, %v1353
        %v1355 = vrot.slane %v1350, %v1354
        %v1373 = vunpack.c.l.b16 %v1332
        %v1374 = vunpack.c.l.b16 %v1333
        %v1375 = vunpack.c.l.b16 %v1334
        %v1376 = vunpack.c.l.b16 %v1335
        %v1377 = vunpack.c.l.b16 %v1336
        %v1378 = vunpack.c.l.b16 %v1337
        %v1379 = vunpack.c.l.b16 %v1338
        %v1380 = vunpack.c.l.b16 %v1339
        %v1381 = vunpack.c.l.b16 %v1340
        %v1382 = vunpack.c.l.b16 %v1341
        %v1383 = vunpack.c.l.b16 %v1342
        %v1384 = vunpack.c.l.b16 %v1343
        %v1385 = vunpack.c.l.b16 %v1344
        %v1386 = vunpack.c.l.b16 %v1345
        %v1387 = vunpack.c.l.b16 %v1346
        %v1388 = vunpack.c.l.b16 %v1347
        %v1389 = vpack.c.b16 %v1374, %v1373
        %v1390 = vpack.c.b16 %v1376, %v1375
        %v1391 = vpack.c.b16 %v1378, %v1377
        %v1392 = vpack.c.b16 %v1380, %v1379
        %v1393 = vpack.c.b16 %v1382, %v1381
        %v1394 = vpack.c.b16 %v1384, %v1383
        %v1395 = vpack.c.b16 %v1386, %v1385
        %v1396 = vpack.c.b16 %v1388, %v1387
        %v1399 = vunpack.c.l.b16 %v1348
        %v1400 = vunpack.c.l.b16 %v1349
        %v1401 = vpack.c.b16 %v1400, %v1399
        %v1404 = vsel %vm761, %v1389, 0
        %v1407 = vsel %vm761, %v1390, 0
        %v1410 = vsel %vm761, %v1391, 0
        %v1413 = vsel %vm761, %v1392, 0
        %v1416 = vsel %vm761, %v1393, 0
        %v1419 = vsel %vm761, %v1394, 0
        %v1422 = vsel %vm761, %v1395, 0
        %v1425 = vsel %vm761, %v1396, 0
        %1427 = vmatprep.subr.bf16.mxu0 0
        %1428 = vmatpush1.bf16.msra.mxu0 0
        %1429 = vmatprep.subr.bf16.mxu0 0
        %1430 = vmatpush1.bf16.msra.mxu0 0
        %1431 = vmatprep.subr.bf16.mxu0 0
        %1432 = vmatpush1.bf16.msra.mxu0 0
        %1433 = vmatprep.subr.bf16.mxu0 0
        %1434 = vmatpush1.bf16.msra.mxu0 0
        %1435 = vmatprep.subr.bf16.mxu0 0
        %1436 = vmatpush1.bf16.msra.mxu0 0
        %1437 = vmatprep.subr.bf16.mxu0 0
        %1438 = vmatpush1.bf16.msra.mxu0 0
        %1439 = vmatprep.subr.bf16.mxu0 0
        %1440 = vmatpush1.bf16.msra.mxu0 0
        %1441 = vmatprep.subr.bf16.mxu0 0
        %1442 = vmatpush1.bf16.msra.mxu0 %v1401
        %1443 = vmatprep.subr.bf16.mxu0 0
        %1444 = vmatpush2.bf16.msra.mxu0 0
        %1445 = vmatprep.subr.bf16.mxu0 0
        %1446 = vmatpush2.bf16.msra.mxu0 0
        %1447 = vmatprep.subr.bf16.mxu0 0
        %1448 = vmatpush2.bf16.msra.mxu0 0
        %1449 = vmatprep.subr.bf16.mxu0 0
        %1450 = vmatpush2.bf16.msra.mxu0 0
        %1451 = vmatprep.subr.bf16.mxu0 0
        %1452 = vmatpush2.bf16.msra.mxu0 0
        %1453 = vmatprep.subr.bf16.mxu0 0
        %1454 = vmatpush2.bf16.msra.mxu0 0
        %1455 = vmatprep.subr.bf16.mxu0 0
        %1456 = vmatpush2.bf16.msra.mxu0 0
        %1457 = vmatprep.subr.bf16.mxu0 0
        %1458 = vmatpush2.bf16.msra.mxu0 0
        %1459 = vmatprep.mubr.bf16.mxu0 0
        %1460 = vmatmul.mubr.bf16.gmra.mxu0 %v1404
        %v1461 = vpop.f32.mrf.mxu0
        %v1462 = vadd.f32 %v1355, %v1461
        %v1463 = vpop.f32.mrf.mxu0
        %v1464 = vpop.f32.mrf.mxu0
        %v1465 = vadd.f32 %v1355, %v1464
        %v1466 = vpop.f32.mrf.mxu0
        %1467 = vmatprep.mubr.bf16.mxu0 0
        %1468 = vmatmul.mubr.bf16.gmra.mxu0 %v1407
        %v1469 = vpop.f32.mrf.mxu0
        %v1470 = vadd.f32 %v1355, %v1469
        %v1471 = vpop.f32.mrf.mxu0
        %v1472 = vpop.f32.mrf.mxu0
        %v1473 = vadd.f32 %v1355, %v1472
        %v1474 = vpop.f32.mrf.mxu0
        %1475 = vmatprep.mubr.bf16.mxu0 0
        %1476 = vmatmul.mubr.bf16.gmra.mxu0 %v1410
        %v1477 = vpop.f32.mrf.mxu0
        %v1478 = vadd.f32 %v1355, %v1477
        %v1479 = vpop.f32.mrf.mxu0
        %v1480 = vpop.f32.mrf.mxu0
        %v1481 = vadd.f32 %v1355, %v1480
        %v1482 = vpop.f32.mrf.mxu0
        %1483 = vmatprep.mubr.bf16.mxu0 0
        %1484 = vmatmul.mubr.bf16.gmra.mxu0 %v1413
        %v1485 = vpop.f32.mrf.mxu0
        %v1486 = vadd.f32 %v1355, %v1485
        %v1487 = vpop.f32.mrf.mxu0
        %v1488 = vpop.f32.mrf.mxu0
        %v1489 = vadd.f32 %v1355, %v1488
        %v1490 = vpop.f32.mrf.mxu0
        %1491 = vmatprep.mubr.bf16.mxu0 0
        %1492 = vmatmul.mubr.bf16.gmra.mxu0 %v1416
        %v1493 = vpop.f32.mrf.mxu0
        %v1494 = vadd.f32 %v1355, %v1493
        %v1495 = vpop.f32.mrf.mxu0
        %v1496 = vpop.f32.mrf.mxu0
        %v1497 = vadd.f32 %v1355, %v1496
        %v1498 = vpop.f32.mrf.mxu0
        %1499 = vmatprep.mubr.bf16.mxu0 0
        %1500 = vmatmul.mubr.bf16.gmra.mxu0 %v1419
        %v1501 = vpop.f32.mrf.mxu0
        %v1502 = vadd.f32 %v1355, %v1501
        %v1503 = vpop.f32.mrf.mxu0
        %v1504 = vpop.f32.mrf.mxu0
        %v1505 = vadd.f32 %v1355, %v1504
        %v1506 = vpop.f32.mrf.mxu0
        %1507 = vmatprep.mubr.bf16.mxu0 0
        %1508 = vmatmul.mubr.bf16.gmra.mxu0 %v1422
        %v1509 = vpop.f32.mrf.mxu0
        %v1510 = vadd.f32 %v1355, %v1509
        %v1511 = vpop.f32.mrf.mxu0
        %v1512 = vpop.f32.mrf.mxu0
        %v1513 = vadd.f32 %v1355, %v1512
        %v1514 = vpop.f32.mrf.mxu0
        %1515 = vmatprep.mubr.bf16.mxu0 0
        %1516 = vmatmul.mubr.bf16.gmra.mxu0 %v1425
        %v1517 = vpop.f32.mrf.mxu0
        %v1518 = vadd.f32 %v1355, %v1517
        %v1519 = vpop.f32.mrf.mxu0
        %v1520 = vpop.f32.mrf.mxu0
        %v1521 = vadd.f32 %v1355, %v1520
        %v1522 = vpop.f32.mrf.mxu0
        %1523 = vdwg.mxu0
        %vm1524 = vcmp.ge.f32.partialorder %v1462, 0.0
        %vm1525 = vcmp.ge.f32.partialorder %v1465, 0.0
        %vm1526 = vcmp.ge.f32.partialorder %v1470, 0.0
        %vm1527 = vcmp.ge.f32.partialorder %v1473, 0.0
        %vm1528 = vcmp.ge.f32.partialorder %v1478, 0.0
        %vm1529 = vcmp.ge.f32.partialorder %v1481, 0.0
        %vm1530 = vcmp.ge.f32.partialorder %v1486, 0.0
        %vm1531 = vcmp.ge.f32.partialorder %v1489, 0.0
        %vm1532 = vcmp.ge.f32.partialorder %v1494, 0.0
        %vm1533 = vcmp.ge.f32.partialorder %v1497, 0.0
        %vm1534 = vcmp.ge.f32.partialorder %v1502, 0.0
        %vm1535 = vcmp.ge.f32.partialorder %v1505, 0.0
        %vm1536 = vcmp.ge.f32.partialorder %v1510, 0.0
        %vm1537 = vcmp.ge.f32.partialorder %v1513, 0.0
        %vm1538 = vcmp.ge.f32.partialorder %v1518, 0.0
        %vm1539 = vcmp.ge.f32.partialorder %v1521, 0.0
        %v1540 = vmul.f32 %v1462, 0.1
        %v1541 = vmul.f32 %v1465, 0.1
        %v1542 = vmul.f32 %v1470, 0.1
        %v1543 = vmul.f32 %v1473, 0.1
        %v1544 = vmul.f32 %v1478, 0.1
        %v1545 = vmul.f32 %v1481, 0.1
        %v1546 = vmul.f32 %v1486, 0.1
        %v1547 = vmul.f32 %v1489, 0.1
        %v1548 = vmul.f32 %v1494, 0.1
        %v1549 = vmul.f32 %v1497, 0.1
        %v1550 = vmul.f32 %v1502, 0.1
        %v1551 = vmul.f32 %v1505, 0.1
        %v1552 = vmul.f32 %v1510, 0.1
        %v1553 = vmul.f32 %v1513, 0.1
        %v1554 = vmul.f32 %v1518, 0.1
        %v1555 = vmul.f32 %v1521, 0.1
        %v1556 = vsel %vm1524, %v1462, %v1540
        %v1557 = vsel %vm1525, %v1465, %v1541
        %v1558 = vsel %vm1526, %v1470, %v1542
        %v1559 = vsel %vm1527, %v1473, %v1543
        %v1560 = vsel %vm1528, %v1478, %v1544
        %v1561 = vsel %vm1529, %v1481, %v1545
        %v1562 = vsel %vm1530, %v1486, %v1546
        %v1563 = vsel %vm1531, %v1489, %v1547
        %v1564 = vsel %vm1532, %v1494, %v1548
        %v1565 = vsel %vm1533, %v1497, %v1549
        %v1566 = vsel %vm1534, %v1502, %v1550
        %v1567 = vsel %vm1535, %v1505, %v1551
        %v1568 = vsel %vm1536, %v1510, %v1552
        %v1569 = vsel %vm1537, %v1513, %v1553
        %v1570 = vsel %vm1538, %v1518, %v1554
        %v1571 = vsel %vm1539, %v1521, %v1555
        %v1572 = vpack.c.bf16 %v1557, %v1556
        %v1573 = vpack.c.bf16 %v1559, %v1558
        %v1574 = vpack.c.bf16 %v1561, %v1560
        %v1575 = vpack.c.bf16 %v1563, %v1562
        %v1576 = vpack.c.bf16 %v1565, %v1564
        %v1577 = vpack.c.bf16 %v1567, %v1566
        %v1578 = vpack.c.bf16 %v1569, %v1568
        %v1579 = vpack.c.bf16 %v1571, %v1570
        %v1588 = vunpack.c.l.b16 %v1572
        %v1589 = vunpack.c.h.b16 %v1572
        %v1590 = vunpack.c.l.b16 %v1573
        %v1591 = vunpack.c.h.b16 %v1573
        %v1592 = vunpack.c.l.b16 %v1574
        %v1593 = vunpack.c.h.b16 %v1574
        %v1594 = vunpack.c.l.b16 %v1575
        %v1595 = vunpack.c.h.b16 %v1575
        %v1596 = vunpack.c.l.b16 %v1576
        %v1597 = vunpack.c.h.b16 %v1576
        %v1598 = vunpack.c.l.b16 %v1577
        %v1599 = vunpack.c.h.b16 %v1577
        %v1600 = vunpack.c.l.b16 %v1578
        %v1601 = vunpack.c.h.b16 %v1578
        %v1602 = vunpack.c.l.b16 %v1579
        %v1603 = vunpack.c.h.b16 %v1579
        %v1604 = vpack.c.b16 %v1588, %v1588
        %v1605 = vpack.c.b16 %v1589, %v1589
        %v1606 = vpack.c.b16 %v1590, %v1590
        %v1607 = vpack.c.b16 %v1591, %v1591
        %v1608 = vpack.c.b16 %v1592, %v1592
        %v1609 = vpack.c.b16 %v1593, %v1593
        %v1610 = vpack.c.b16 %v1594, %v1594
        %v1611 = vpack.c.b16 %v1595, %v1595
        %v1612 = vpack.c.b16 %v1596, %v1596
        %v1613 = vpack.c.b16 %v1597, %v1597
        %v1614 = vpack.c.b16 %v1598, %v1598
        %v1615 = vpack.c.b16 %v1599, %v1599
        %v1616 = vpack.c.b16 %v1600, %v1600
        %v1617 = vpack.c.b16 %v1601, %v1601
        %v1618 = vpack.c.b16 %v1602, %v1602
        %v1619 = vpack.c.b16 %v1603, %v1603
        %1636 = vst.msk [vmem:[%s679 + $0x40] sm:$0xf] %vm995, %v1604
        %1637 = vst.msk [vmem:[%s679 + $0x44] sm:$0xf] %vm995, %v1605
        %1638 = vst.msk [vmem:[%s679 + $0x48] sm:$0xf] %vm995, %v1606
        %1639 = vst.msk [vmem:[%s679 + $0x4c] sm:$0xf] %vm995, %v1607
        %1640 = vst.msk [vmem:[%s679 + $0x50] sm:$0xf] %vm995, %v1608
        %1641 = vst.msk [vmem:[%s679 + $0x54] sm:$0xf] %vm995, %v1609
        %1642 = vst.msk [vmem:[%s679 + $0x58] sm:$0xf] %vm995, %v1610
        %1643 = vst.msk [vmem:[%s679 + $0x5c] sm:$0xf] %vm995, %v1611
        %1644 = vst.msk [vmem:[%s679 + $0xc0] sm:$0xf] %vm995, %v1612
        %1645 = vst.msk [vmem:[%s679 + $0xc4] sm:$0xf] %vm995, %v1613
        %1646 = vst.msk [vmem:[%s679 + $0xc8] sm:$0xf] %vm995, %v1614
        %1647 = vst.msk [vmem:[%s679 + $0xcc] sm:$0xf] %vm995, %v1615
        %1648 = vst.msk [vmem:[%s679 + $0xd0] sm:$0xf] %vm995, %v1616
        %1649 = vst.msk [vmem:[%s679 + $0xd4] sm:$0xf] %vm995, %v1617
        %1650 = vst.msk [vmem:[%s679 + $0xd8] sm:$0xf] %vm995, %v1618
        %1651 = vst.msk [vmem:[%s679 + $0xdc] sm:$0xf] %vm995, %v1619
        %v1652 = vld [vmem:[%s647 + $0x60] sm:$0xf]
        %v1653 = vld [vmem:[%s647 + $0x64] sm:$0xf]
        %v1654 = vld [vmem:[%s647 + $0x68] sm:$0xf]
        %v1655 = vld [vmem:[%s647 + $0x6c] sm:$0xf]
        %v1656 = vld [vmem:[%s647 + $0x70] sm:$0xf]
        %v1657 = vld [vmem:[%s647 + $0x74] sm:$0xf]
        %v1658 = vld [vmem:[%s647 + $0x78] sm:$0xf]
        %v1659 = vld [vmem:[%s647 + $0x7c] sm:$0xf]
        %v1660 = vld [vmem:[%s647 + $0xe0] sm:$0xf]
        %v1661 = vld [vmem:[%s647 + $0xe4] sm:$0xf]
        %v1662 = vld [vmem:[%s647 + $0xe8] sm:$0xf]
        %v1663 = vld [vmem:[%s647 + $0xec] sm:$0xf]
        %v1664 = vld [vmem:[%s647 + $0xf0] sm:$0xf]
        %v1665 = vld [vmem:[%s647 + $0xf4] sm:$0xf]
        %v1666 = vld [vmem:[%s647 + $0xf8] sm:$0xf]
        %v1667 = vld [vmem:[%s647 + $0xfc] sm:$0xf]
        %v1668 = vld [vmem:[%s2] sm:$0xf]
        %v1669 = vld [vmem:[%s2 + $0x4] sm:$0xf]
        %v1670 = vld [vmem:[%s3] sm:$0x1]
        %v1672 = vlaneseq
        %v1673 = vshrl.u32 %v1672, 7
        %v1674 = vsub.s32 0, %v1673
        %v1675 = vrot.slane %v1670, %v1674
        %v1693 = vunpack.c.l.b16 %v1652
        %v1694 = vunpack.c.l.b16 %v1653
        %v1695 = vunpack.c.l.b16 %v1654
        %v1696 = vunpack.c.l.b16 %v1655
        %v1697 = vunpack.c.l.b16 %v1656
        %v1698 = vunpack.c.l.b16 %v1657
        %v1699 = vunpack.c.l.b16 %v1658
        %v1700 = vunpack.c.l.b16 %v1659
        %v1701 = vunpack.c.l.b16 %v1660
        %v1702 = vunpack.c.l.b16 %v1661
        %v1703 = vunpack.c.l.b16 %v1662
        %v1704 = vunpack.c.l.b16 %v1663
        %v1705 = vunpack.c.l.b16 %v1664
        %v1706 = vunpack.c.l.b16 %v1665
        %v1707 = vunpack.c.l.b16 %v1666
        %v1708 = vunpack.c.l.b16 %v1667
        %v1709 = vpack.c.b16 %v1694, %v1693
        %v1710 = vpack.c.b16 %v1696, %v1695
        %v1711 = vpack.c.b16 %v1698, %v1697
        %v1712 = vpack.c.b16 %v1700, %v1699
        %v1713 = vpack.c.b16 %v1702, %v1701
        %v1714 = vpack.c.b16 %v1704, %v1703
        %v1715 = vpack.c.b16 %v1706, %v1705
        %v1716 = vpack.c.b16 %v1708, %v1707
        %v1719 = vunpack.c.l.b16 %v1668
        %v1720 = vunpack.c.l.b16 %v1669
        %v1721 = vpack.c.b16 %v1720, %v1719
        %v1724 = vsel %vm761, %v1709, 0
        %v1727 = vsel %vm761, %v1710, 0
        %v1730 = vsel %vm761, %v1711, 0
        %v1733 = vsel %vm761, %v1712, 0
        %v1736 = vsel %vm761, %v1713, 0
        %v1739 = vsel %vm761, %v1714, 0
        %v1742 = vsel %vm761, %v1715, 0
        %v1745 = vsel %vm761, %v1716, 0
        %1747 = vmatprep.subr.bf16.mxu0 0
        %1748 = vmatpush1.bf16.msra.mxu0 0
        %1749 = vmatprep.subr.bf16.mxu0 0
        %1750 = vmatpush1.bf16.msra.mxu0 0
        %1751 = vmatprep.subr.bf16.mxu0 0
        %1752 = vmatpush1.bf16.msra.mxu0 0
        %1753 = vmatprep.subr.bf16.mxu0 0
        %1754 = vmatpush1.bf16.msra.mxu0 0
        %1755 = vmatprep.subr.bf16.mxu0 0
        %1756 = vmatpush1.bf16.msra.mxu0 0
        %1757 = vmatprep.subr.bf16.mxu0 0
        %1758 = vmatpush1.bf16.msra.mxu0 0
        %1759 = vmatprep.subr.bf16.mxu0 0
        %1760 = vmatpush1.bf16.msra.mxu0 0
        %1761 = vmatprep.subr.bf16.mxu0 0
        %1762 = vmatpush1.bf16.msra.mxu0 %v1721
        %1763 = vmatprep.subr.bf16.mxu0 0
        %1764 = vmatpush2.bf16.msra.mxu0 0
        %1765 = vmatprep.subr.bf16.mxu0 0
        %1766 = vmatpush2.bf16.msra.mxu0 0
        %1767 = vmatprep.subr.bf16.mxu0 0
        %1768 = vmatpush2.bf16.msra.mxu0 0
        %1769 = vmatprep.subr.bf16.mxu0 0
        %1770 = vmatpush2.bf16.msra.mxu0 0
        %1771 = vmatprep.subr.bf16.mxu0 0
        %1772 = vmatpush2.bf16.msra.mxu0 0
        %1773 = vmatprep.subr.bf16.mxu0 0
        %1774 = vmatpush2.bf16.msra.mxu0 0
        %1775 = vmatprep.subr.bf16.mxu0 0
        %1776 = vmatpush2.bf16.msra.mxu0 0
        %1777 = vmatprep.subr.bf16.mxu0 0
        %1778 = vmatpush2.bf16.msra.mxu0 0
        %1779 = vmatprep.mubr.bf16.mxu0 0
        %1780 = vmatmul.mubr.bf16.gmra.mxu0 %v1724
        %v1781 = vpop.f32.mrf.mxu0
        %v1782 = vadd.f32 %v1675, %v1781
        %v1783 = vpop.f32.mrf.mxu0
        %v1784 = vpop.f32.mrf.mxu0
        %v1785 = vadd.f32 %v1675, %v1784
        %v1786 = vpop.f32.mrf.mxu0
        %1787 = vmatprep.mubr.bf16.mxu0 0
        %1788 = vmatmul.mubr.bf16.gmra.mxu0 %v1727
        %v1789 = vpop.f32.mrf.mxu0
        %v1790 = vadd.f32 %v1675, %v1789
        %v1791 = vpop.f32.mrf.mxu0
        %v1792 = vpop.f32.mrf.mxu0
        %v1793 = vadd.f32 %v1675, %v1792
        %v1794 = vpop.f32.mrf.mxu0
        %1795 = vmatprep.mubr.bf16.mxu0 0
        %1796 = vmatmul.mubr.bf16.gmra.mxu0 %v1730
        %v1797 = vpop.f32.mrf.mxu0
        %v1798 = vadd.f32 %v1675, %v1797
        %v1799 = vpop.f32.mrf.mxu0
        %v1800 = vpop.f32.mrf.mxu0
        %v1801 = vadd.f32 %v1675, %v1800
        %v1802 = vpop.f32.mrf.mxu0
        %1803 = vmatprep.mubr.bf16.mxu0 0
        %1804 = vmatmul.mubr.bf16.gmra.mxu0 %v1733
        %v1805 = vpop.f32.mrf.mxu0
        %v1806 = vadd.f32 %v1675, %v1805
        %v1807 = vpop.f32.mrf.mxu0
        %v1808 = vpop.f32.mrf.mxu0
        %v1809 = vadd.f32 %v1675, %v1808
        %v1810 = vpop.f32.mrf.mxu0
        %1811 = vmatprep.mubr.bf16.mxu0 0
        %1812 = vmatmul.mubr.bf16.gmra.mxu0 %v1736
        %v1813 = vpop.f32.mrf.mxu0
        %v1814 = vadd.f32 %v1675, %v1813
        %v1815 = vpop.f32.mrf.mxu0
        %v1816 = vpop.f32.mrf.mxu0
        %v1817 = vadd.f32 %v1675, %v1816
        %v1818 = vpop.f32.mrf.mxu0
        %1819 = vmatprep.mubr.bf16.mxu0 0
        %1820 = vmatmul.mubr.bf16.gmra.mxu0 %v1739
        %v1821 = vpop.f32.mrf.mxu0
        %v1822 = vadd.f32 %v1675, %v1821
        %v1823 = vpop.f32.mrf.mxu0
        %v1824 = vpop.f32.mrf.mxu0
        %v1825 = vadd.f32 %v1675, %v1824
        %v1826 = vpop.f32.mrf.mxu0
        %1827 = vmatprep.mubr.bf16.mxu0 0
        %1828 = vmatmul.mubr.bf16.gmra.mxu0 %v1742
        %v1829 = vpop.f32.mrf.mxu0
        %v1830 = vadd.f32 %v1675, %v1829
        %v1831 = vpop.f32.mrf.mxu0
        %v1832 = vpop.f32.mrf.mxu0
        %v1833 = vadd.f32 %v1675, %v1832
        %v1834 = vpop.f32.mrf.mxu0
        %1835 = vmatprep.mubr.bf16.mxu0 0
        %1836 = vmatmul.mubr.bf16.gmra.mxu0 %v1745
        %v1837 = vpop.f32.mrf.mxu0
        %v1838 = vadd.f32 %v1675, %v1837
        %v1839 = vpop.f32.mrf.mxu0
        %v1840 = vpop.f32.mrf.mxu0
        %v1841 = vadd.f32 %v1675, %v1840
        %v1842 = vpop.f32.mrf.mxu0
        %1843 = vdwg.mxu0
        %vm1844 = vcmp.ge.f32.partialorder %v1782, 0.0
        %vm1845 = vcmp.ge.f32.partialorder %v1785, 0.0
        %vm1846 = vcmp.ge.f32.partialorder %v1790, 0.0
        %vm1847 = vcmp.ge.f32.partialorder %v1793, 0.0
        %vm1848 = vcmp.ge.f32.partialorder %v1798, 0.0
        %vm1849 = vcmp.ge.f32.partialorder %v1801, 0.0
        %vm1850 = vcmp.ge.f32.partialorder %v1806, 0.0
        %vm1851 = vcmp.ge.f32.partialorder %v1809, 0.0
        %vm1852 = vcmp.ge.f32.partialorder %v1814, 0.0
        %vm1853 = vcmp.ge.f32.partialorder %v1817, 0.0
        %vm1854 = vcmp.ge.f32.partialorder %v1822, 0.0
        %vm1855 = vcmp.ge.f32.partialorder %v1825, 0.0
        %vm1856 = vcmp.ge.f32.partialorder %v1830, 0.0
        %vm1857 = vcmp.ge.f32.partialorder %v1833, 0.0
        %vm1858 = vcmp.ge.f32.partialorder %v1838, 0.0
        %vm1859 = vcmp.ge.f32.partialorder %v1841, 0.0
        %v1860 = vmul.f32 %v1782, 0.1
        %v1861 = vmul.f32 %v1785, 0.1
        %v1862 = vmul.f32 %v1790, 0.1
        %v1863 = vmul.f32 %v1793, 0.1
        %v1864 = vmul.f32 %v1798, 0.1
        %v1865 = vmul.f32 %v1801, 0.1
        %v1866 = vmul.f32 %v1806, 0.1
        %v1867 = vmul.f32 %v1809, 0.1
        %v1868 = vmul.f32 %v1814, 0.1
        %v1869 = vmul.f32 %v1817, 0.1
        %v1870 = vmul.f32 %v1822, 0.1
        %v1871 = vmul.f32 %v1825, 0.1
        %v1872 = vmul.f32 %v1830, 0.1
        %v1873 = vmul.f32 %v1833, 0.1
        %v1874 = vmul.f32 %v1838, 0.1
        %v1875 = vmul.f32 %v1841, 0.1
        %v1876 = vsel %vm1844, %v1782, %v1860
        %v1877 = vsel %vm1845, %v1785, %v1861
        %v1878 = vsel %vm1846, %v1790, %v1862
        %v1879 = vsel %vm1847, %v1793, %v1863
        %v1880 = vsel %vm1848, %v1798, %v1864
        %v1881 = vsel %vm1849, %v1801, %v1865
        %v1882 = vsel %vm1850, %v1806, %v1866
        %v1883 = vsel %vm1851, %v1809, %v1867
        %v1884 = vsel %vm1852, %v1814, %v1868
        %v1885 = vsel %vm1853, %v1817, %v1869
        %v1886 = vsel %vm1854, %v1822, %v1870
        %v1887 = vsel %vm1855, %v1825, %v1871
        %v1888 = vsel %vm1856, %v1830, %v1872
        %v1889 = vsel %vm1857, %v1833, %v1873
        %v1890 = vsel %vm1858, %v1838, %v1874
        %v1891 = vsel %vm1859, %v1841, %v1875
        %v1892 = vpack.c.bf16 %v1877, %v1876
        %v1893 = vpack.c.bf16 %v1879, %v1878
        %v1894 = vpack.c.bf16 %v1881, %v1880
        %v1895 = vpack.c.bf16 %v1883, %v1882
        %v1896 = vpack.c.bf16 %v1885, %v1884
        %v1897 = vpack.c.bf16 %v1887, %v1886
        %v1898 = vpack.c.bf16 %v1889, %v1888
        %v1899 = vpack.c.bf16 %v1891, %v1890
        %v1908 = vunpack.c.l.b16 %v1892
        %v1909 = vunpack.c.h.b16 %v1892
        %v1910 = vunpack.c.l.b16 %v1893
        %v1911 = vunpack.c.h.b16 %v1893
        %v1912 = vunpack.c.l.b16 %v1894
        %v1913 = vunpack.c.h.b16 %v1894
        %v1914 = vunpack.c.l.b16 %v1895
        %v1915 = vunpack.c.h.b16 %v1895
        %v1916 = vunpack.c.l.b16 %v1896
        %v1917 = vunpack.c.h.b16 %v1896
        %v1918 = vunpack.c.l.b16 %v1897
        %v1919 = vunpack.c.h.b16 %v1897
        %v1920 = vunpack.c.l.b16 %v1898
        %v1921 = vunpack.c.h.b16 %v1898
        %v1922 = vunpack.c.l.b16 %v1899
        %v1923 = vunpack.c.h.b16 %v1899
        %v1924 = vpack.c.b16 %v1908, %v1908
        %v1925 = vpack.c.b16 %v1909, %v1909
        %v1926 = vpack.c.b16 %v1910, %v1910
        %v1927 = vpack.c.b16 %v1911, %v1911
        %v1928 = vpack.c.b16 %v1912, %v1912
        %v1929 = vpack.c.b16 %v1913, %v1913
        %v1930 = vpack.c.b16 %v1914, %v1914
        %v1931 = vpack.c.b16 %v1915, %v1915
        %v1932 = vpack.c.b16 %v1916, %v1916
        %v1933 = vpack.c.b16 %v1917, %v1917
        %v1934 = vpack.c.b16 %v1918, %v1918
        %v1935 = vpack.c.b16 %v1919, %v1919
        %v1936 = vpack.c.b16 %v1920, %v1920
        %v1937 = vpack.c.b16 %v1921, %v1921
        %v1938 = vpack.c.b16 %v1922, %v1922
        %v1939 = vpack.c.b16 %v1923, %v1923
        %1956 = vst.msk [vmem:[%s679 + $0x60] sm:$0xf] %vm995, %v1924
        %1957 = vst.msk [vmem:[%s679 + $0x64] sm:$0xf] %vm995, %v1925
        %1958 = vst.msk [vmem:[%s679 + $0x68] sm:$0xf] %vm995, %v1926
        %1959 = vst.msk [vmem:[%s679 + $0x6c] sm:$0xf] %vm995, %v1927
        %1960 = vst.msk [vmem:[%s679 + $0x70] sm:$0xf] %vm995, %v1928
        %1961 = vst.msk [vmem:[%s679 + $0x74] sm:$0xf] %vm995, %v1929
        %1962 = vst.msk [vmem:[%s679 + $0x78] sm:$0xf] %vm995, %v1930
        %1963 = vst.msk [vmem:[%s679 + $0x7c] sm:$0xf] %vm995, %v1931
        %1964 = vst.msk [vmem:[%s679 + $0xe0] sm:$0xf] %vm995, %v1932
        %1965 = vst.msk [vmem:[%s679 + $0xe4] sm:$0xf] %vm995, %v1933
        %1966 = vst.msk [vmem:[%s679 + $0xe8] sm:$0xf] %vm995, %v1934
        %1967 = vst.msk [vmem:[%s679 + $0xec] sm:$0xf] %vm995, %v1935
        %1968 = vst.msk [vmem:[%s679 + $0xf0] sm:$0xf] %vm995, %v1936
        %1969 = vst.msk [vmem:[%s679 + $0xf4] sm:$0xf] %vm995, %v1937
        %1970 = vst.msk [vmem:[%s679 + $0xf8] sm:$0xf] %vm995, %v1938
        %1971 = vst.msk [vmem:[%s679 + $0xfc] sm:$0xf] %vm995, %v1939
        %s1972 = sand.u32 %s121, 1
        %s1973 = sand.u32 %s121, 1
        %s1974 = smul.addr %s1973, 256
        %s1975 = scalar_lea.vmem [#allocation5], %s1974
        // Predicated region
        $region140: #{tpu_custom_call.1} parent=130 // pred_check
          %p1976 = pneg %p131
        $region141: #{tpu_custom_call.1} parent=130 // pred_check_branch
          %1978 = sbr.rel (%p1976) target = $region143
        $region142: #{tpu_custom_call.1} parent=130 // pred_region
          %s1979 = smul.u32 32, %s15
          %s1980 = smul.addr %s1979, 4
          %s1981 = scalar_lea.vmem %s4, %s1980
          // Predicated region
          $region144: #{tpu_custom_call.1} parent=142 // pred_check
            _
          $region145: #{tpu_custom_call.1} parent=142 // pred_check_branch
            %1983 = sbr.rel (0) target = $region147
          $region146: #{tpu_custom_call.1} parent=142 // pred_region
            // Predicated region
            $region148: #{tpu_custom_call.1} parent=146 // pred_check
              _
            $region149: #{tpu_custom_call.1} parent=146 // pred_check_branch
              %1985 = sbr.rel target = $region151
            $region150: #{tpu_custom_call.1} parent=146 // pred_region
              // Predicated region
              $region163: #{tpu_custom_call.1} parent=150 // pred_check
                _
              $region164: #{tpu_custom_call.1} parent=150 // pred_check_branch
                %2127 = sbr.rel (0) target = $region166
              $region165: #{tpu_custom_call.1} parent=150 // pred_region
                loop: start=0, step=1, limit=1
                $region167: #{tpu_custom_call.1} parent=165 // loop_pre_header
                  _
                $region168: #{tpu_custom_call.1} parent=165 // loop_header
                  %s2129 = sphi 0, %s2133
                  %p2130 = scmp.ge.s32.totalorder %s2129, 1
                  %s2134 = sphi %s1975, %s1975
                  %s2135 = sphi %s1981, %s1981
                $region169: #{tpu_custom_call.1} parent=165 // loop_header_branch
                  %2132 = sbr.rel (%p2130) target = $region173
                $region170: #{tpu_custom_call.1} parent=165 // loop_body
                  _
                $region171: #{tpu_custom_call.1} parent=165 // loop_footer
                  %s2133 = sadd.s32 1, %s2129
                $region172: #{tpu_custom_call.1} parent=165 // loop_footer_branch
                  %2128 = sbr.rel target = $region168
                $region173: #{tpu_custom_call.1} parent=165 // loop_exit
                  _
                %s2137 = ssub.s32 16, 1
                loop: start=0, step=1, limit=1
                $region174: #{tpu_custom_call.1} parent=165 // loop_pre_header
                  _
                $region175: #{tpu_custom_call.1} parent=165 // loop_header
                  %s2139 = sphi 0, %s2143
                  %p2140 = scmp.ge.s32.totalorder %s2139, 1
                  %s2144 = sphi %s1975, %s1975
                  %s2145 = sphi %s1981, %s1981
                $region176: #{tpu_custom_call.1} parent=165 // loop_header_branch
                  %2142 = sbr.rel (%p2140) target = $region180
                $region177: #{tpu_custom_call.1} parent=165 // loop_body
                  %v2146 = vld [vmem:[%s2144] sm:%s2137]
                  %2147 = vst [vmem:[%s2145] sm:%s2137] %v2146
                  %v2148 = vld [vmem:[%s2144 + $0x4] sm:%s2137]
                  %2149 = vst [vmem:[%s2145 + $0x4] sm:%s2137] %v2148
                  %v2150 = vld [vmem:[%s2144 + $0x8] sm:%s2137]
                  %2151 = vst [vmem:[%s2145 + $0x8] sm:%s2137] %v2150
                  %v2152 = vld [vmem:[%s2144 + $0xc] sm:%s2137]
                  %2153 = vst [vmem:[%s2145 + $0xc] sm:%s2137] %v2152
                  %v2154 = vld [vmem:[%s2144 + $0x10] sm:%s2137]
                  %2155 = vst [vmem:[%s2145 + $0x10] sm:%s2137] %v2154
                  %v2156 = vld [vmem:[%s2144 + $0x14] sm:%s2137]
                  %2157 = vst [vmem:[%s2145 + $0x14] sm:%s2137] %v2156
                  %v2158 = vld [vmem:[%s2144 + $0x18] sm:%s2137]
                  %2159 = vst [vmem:[%s2145 + $0x18] sm:%s2137] %v2158
                  %v2160 = vld [vmem:[%s2144 + $0x1c] sm:%s2137]
                  %2161 = vst [vmem:[%s2145 + $0x1c] sm:%s2137] %v2160
                  %v2162 = vld [vmem:[%s2144 + $0x20] sm:%s2137]
                  %2163 = vst [vmem:[%s2145 + $0x20] sm:%s2137] %v2162
                  %v2164 = vld [vmem:[%s2144 + $0x24] sm:%s2137]
                  %2165 = vst [vmem:[%s2145 + $0x24] sm:%s2137] %v2164
                  %v2166 = vld [vmem:[%s2144 + $0x28] sm:%s2137]
                  %2167 = vst [vmem:[%s2145 + $0x28] sm:%s2137] %v2166
                  %v2168 = vld [vmem:[%s2144 + $0x2c] sm:%s2137]
                  %2169 = vst [vmem:[%s2145 + $0x2c] sm:%s2137] %v2168
                  %v2170 = vld [vmem:[%s2144 + $0x30] sm:%s2137]
                  %2171 = vst [vmem:[%s2145 + $0x30] sm:%s2137] %v2170
                  %v2172 = vld [vmem:[%s2144 + $0x34] sm:%s2137]
                  %2173 = vst [vmem:[%s2145 + $0x34] sm:%s2137] %v2172
                  %v2174 = vld [vmem:[%s2144 + $0x38] sm:%s2137]
                  %2175 = vst [vmem:[%s2145 + $0x38] sm:%s2137] %v2174
                  %v2176 = vld [vmem:[%s2144 + $0x3c] sm:%s2137]
                  %2177 = vst [vmem:[%s2145 + $0x3c] sm:%s2137] %v2176
                  %v2178 = vld [vmem:[%s2144 + $0x40] sm:%s2137]
                  %2179 = vst [vmem:[%s2145 + $0x40] sm:%s2137] %v2178
                  %v2180 = vld [vmem:[%s2144 + $0x44] sm:%s2137]
                  %2181 = vst [vmem:[%s2145 + $0x44] sm:%s2137] %v2180
                  %v2182 = vld [vmem:[%s2144 + $0x48] sm:%s2137]
                  %2183 = vst [vmem:[%s2145 + $0x48] sm:%s2137] %v2182
                  %v2184 = vld [vmem:[%s2144 + $0x4c] sm:%s2137]
                  %2185 = vst [vmem:[%s2145 + $0x4c] sm:%s2137] %v2184
                  %v2186 = vld [vmem:[%s2144 + $0x50] sm:%s2137]
                  %2187 = vst [vmem:[%s2145 + $0x50] sm:%s2137] %v2186
                  %v2188 = vld [vmem:[%s2144 + $0x54] sm:%s2137]
                  %2189 = vst [vmem:[%s2145 + $0x54] sm:%s2137] %v2188
                  %v2190 = vld [vmem:[%s2144 + $0x58] sm:%s2137]
                  %2191 = vst [vmem:[%s2145 + $0x58] sm:%s2137] %v2190
                  %v2192 = vld [vmem:[%s2144 + $0x5c] sm:%s2137]
                  %2193 = vst [vmem:[%s2145 + $0x5c] sm:%s2137] %v2192
                  %v2194 = vld [vmem:[%s2144 + $0x60] sm:%s2137]
                  %2195 = vst [vmem:[%s2145 + $0x60] sm:%s2137] %v2194
                  %v2196 = vld [vmem:[%s2144 + $0x64] sm:%s2137]
                  %2197 = vst [vmem:[%s2145 + $0x64] sm:%s2137] %v2196
                  %v2198 = vld [vmem:[%s2144 + $0x68] sm:%s2137]
                  %2199 = vst [vmem:[%s2145 + $0x68] sm:%s2137] %v2198
                  %v2200 = vld [vmem:[%s2144 + $0x6c] sm:%s2137]
                  %2201 = vst [vmem:[%s2145 + $0x6c] sm:%s2137] %v2200
                  %v2202 = vld [vmem:[%s2144 + $0x70] sm:%s2137]
                  %2203 = vst [vmem:[%s2145 + $0x70] sm:%s2137] %v2202
                  %v2204 = vld [vmem:[%s2144 + $0x74] sm:%s2137]
                  %2205 = vst [vmem:[%s2145 + $0x74] sm:%s2137] %v2204
                  %v2206 = vld [vmem:[%s2144 + $0x78] sm:%s2137]
                  %2207 = vst [vmem:[%s2145 + $0x78] sm:%s2137] %v2206
                  %v2208 = vld [vmem:[%s2144 + $0x7c] sm:%s2137]
                  %2209 = vst [vmem:[%s2145 + $0x7c] sm:%s2137] %v2208
                  %v2210 = vld [vmem:[%s2144 + $0x80] sm:%s2137]
                  %2211 = vst [vmem:[%s2145 + $0x200] sm:%s2137] %v2210
                  %v2212 = vld [vmem:[%s2144 + $0x84] sm:%s2137]
                  %2213 = vst [vmem:[%s2145 + $0x204] sm:%s2137] %v2212
                  %v2214 = vld [vmem:[%s2144 + $0x88] sm:%s2137]
                  %2215 = vst [vmem:[%s2145 + $0x208] sm:%s2137] %v2214
                  %v2216 = vld [vmem:[%s2144 + $0x8c] sm:%s2137]
                  %2217 = vst [vmem:[%s2145 + $0x20c] sm:%s2137] %v2216
                  %v2218 = vld [vmem:[%s2144 + $0x90] sm:%s2137]
                  %2219 = vst [vmem:[%s2145 + $0x210] sm:%s2137] %v2218
                  %v2220 = vld [vmem:[%s2144 + $0x94] sm:%s2137]
                  %2221 = vst [vmem:[%s2145 + $0x214] sm:%s2137] %v2220
                  %v2222 = vld [vmem:[%s2144 + $0x98] sm:%s2137]
                  %2223 = vst [vmem:[%s2145 + $0x218] sm:%s2137] %v2222
                  %v2224 = vld [vmem:[%s2144 + $0x9c] sm:%s2137]
                  %2225 = vst [vmem:[%s2145 + $0x21c] sm:%s2137] %v2224
                  %v2226 = vld [vmem:[%s2144 + $0xa0] sm:%s2137]
                  %2227 = vst [vmem:[%s2145 + $0x220] sm:%s2137] %v2226
                  %v2228 = vld [vmem:[%s2144 + $0xa4] sm:%s2137]
                  %2229 = vst [vmem:[%s2145 + $0x224] sm:%s2137] %v2228
                  %v2230 = vld [vmem:[%s2144 + $0xa8] sm:%s2137]
                  %2231 = vst [vmem:[%s2145 + $0x228] sm:%s2137] %v2230
                  %v2232 = vld [vmem:[%s2144 + $0xac] sm:%s2137]
                  %2233 = vst [vmem:[%s2145 + $0x22c] sm:%s2137] %v2232
                  %v2234 = vld [vmem:[%s2144 + $0xb0] sm:%s2137]
                  %2235 = vst [vmem:[%s2145 + $0x230] sm:%s2137] %v2234
                  %v2236 = vld [vmem:[%s2144 + $0xb4] sm:%s2137]
                  %2237 = vst [vmem:[%s2145 + $0x234] sm:%s2137] %v2236
                  %v2238 = vld [vmem:[%s2144 + $0xb8] sm:%s2137]
                  %2239 = vst [vmem:[%s2145 + $0x238] sm:%s2137] %v2238
                  %v2240 = vld [vmem:[%s2144 + $0xbc] sm:%s2137]
                  %2241 = vst [vmem:[%s2145 + $0x23c] sm:%s2137] %v2240
                  %v2242 = vld [vmem:[%s2144 + $0xc0] sm:%s2137]
                  %2243 = vst [vmem:[%s2145 + $0x240] sm:%s2137] %v2242
                  %v2244 = vld [vmem:[%s2144 + $0xc4] sm:%s2137]
                  %2245 = vst [vmem:[%s2145 + $0x244] sm:%s2137] %v2244
                  %v2246 = vld [vmem:[%s2144 + $0xc8] sm:%s2137]
                  %2247 = vst [vmem:[%s2145 + $0x248] sm:%s2137] %v2246
                  %v2248 = vld [vmem:[%s2144 + $0xcc] sm:%s2137]
                  %2249 = vst [vmem:[%s2145 + $0x24c] sm:%s2137] %v2248
                  %v2250 = vld [vmem:[%s2144 + $0xd0] sm:%s2137]
                  %2251 = vst [vmem:[%s2145 + $0x250] sm:%s2137] %v2250
                  %v2252 = vld [vmem:[%s2144 + $0xd4] sm:%s2137]
                  %2253 = vst [vmem:[%s2145 + $0x254] sm:%s2137] %v2252
                  %v2254 = vld [vmem:[%s2144 + $0xd8] sm:%s2137]
                  %2255 = vst [vmem:[%s2145 + $0x258] sm:%s2137] %v2254
                  %v2256 = vld [vmem:[%s2144 + $0xdc] sm:%s2137]
                  %2257 = vst [vmem:[%s2145 + $0x25c] sm:%s2137] %v2256
                  %v2258 = vld [vmem:[%s2144 + $0xe0] sm:%s2137]
                  %2259 = vst [vmem:[%s2145 + $0x260] sm:%s2137] %v2258
                  %v2260 = vld [vmem:[%s2144 + $0xe4] sm:%s2137]
                  %2261 = vst [vmem:[%s2145 + $0x264] sm:%s2137] %v2260
                  %v2262 = vld [vmem:[%s2144 + $0xe8] sm:%s2137]
                  %2263 = vst [vmem:[%s2145 + $0x268] sm:%s2137] %v2262
                  %v2264 = vld [vmem:[%s2144 + $0xec] sm:%s2137]
                  %2265 = vst [vmem:[%s2145 + $0x26c] sm:%s2137] %v2264
                  %v2266 = vld [vmem:[%s2144 + $0xf0] sm:%s2137]
                  %2267 = vst [vmem:[%s2145 + $0x270] sm:%s2137] %v2266
                  %v2268 = vld [vmem:[%s2144 + $0xf4] sm:%s2137]
                  %2269 = vst [vmem:[%s2145 + $0x274] sm:%s2137] %v2268
                  %v2270 = vld [vmem:[%s2144 + $0xf8] sm:%s2137]
                  %2271 = vst [vmem:[%s2145 + $0x278] sm:%s2137] %v2270
                  %v2272 = vld [vmem:[%s2144 + $0xfc] sm:%s2137]
                  %2273 = vst [vmem:[%s2145 + $0x27c] sm:%s2137] %v2272
                $region178: #{tpu_custom_call.1} parent=165 // loop_footer
                  %s2143 = sadd.s32 1, %s2139
                $region179: #{tpu_custom_call.1} parent=165 // loop_footer_branch
                  %2138 = sbr.rel target = $region175
                $region180: #{tpu_custom_call.1} parent=165 // loop_exit
                  _
              $region166: #{tpu_custom_call.1} parent=150 // pred_fallthru
                _
            $region151: #{tpu_custom_call.1} parent=146 // pred_fallthru
              _
            // Predicated region
            $region152: #{tpu_custom_call.1} parent=146 // pred_check
              _
            $region153: #{tpu_custom_call.1} parent=146 // pred_check_branch
              %1987 = sbr.rel (0) target = $region155
            $region154: #{tpu_custom_call.1} parent=146 // pred_region
              %s1989 = ssub.s32 16, 1
              loop: start=0, step=1, limit=1
              $region156: #{tpu_custom_call.1} parent=154 // loop_pre_header
                _
              $region157: #{tpu_custom_call.1} parent=154 // loop_header
                %s1991 = sphi 0, %s1995
                %p1992 = scmp.ge.s32.totalorder %s1991, 1
                %s1996 = sphi %s1975, %s1975
                %s1997 = sphi %s1981, %s1981
              $region158: #{tpu_custom_call.1} parent=154 // loop_header_branch
                %1994 = sbr.rel (%p1992) target = $region162
              $region159: #{tpu_custom_call.1} parent=154 // loop_body
                %v1998 = vld [vmem:[%s1996] sm:%s1989]
                %1999 = vst [vmem:[%s1997] sm:%s1989] %v1998
                %v2000 = vld [vmem:[%s1996 + $0x4] sm:%s1989]
                %2001 = vst [vmem:[%s1997 + $0x4] sm:%s1989] %v2000
                %v2002 = vld [vmem:[%s1996 + $0x8] sm:%s1989]
                %2003 = vst [vmem:[%s1997 + $0x8] sm:%s1989] %v2002
                %v2004 = vld [vmem:[%s1996 + $0xc] sm:%s1989]
                %2005 = vst [vmem:[%s1997 + $0xc] sm:%s1989] %v2004
                %v2006 = vld [vmem:[%s1996 + $0x10] sm:%s1989]
                %2007 = vst [vmem:[%s1997 + $0x10] sm:%s1989] %v2006
                %v2008 = vld [vmem:[%s1996 + $0x14] sm:%s1989]
                %2009 = vst [vmem:[%s1997 + $0x14] sm:%s1989] %v2008
                %v2010 = vld [vmem:[%s1996 + $0x18] sm:%s1989]
                %2011 = vst [vmem:[%s1997 + $0x18] sm:%s1989] %v2010
                %v2012 = vld [vmem:[%s1996 + $0x1c] sm:%s1989]
                %2013 = vst [vmem:[%s1997 + $0x1c] sm:%s1989] %v2012
                %v2014 = vld [vmem:[%s1996 + $0x20] sm:%s1989]
                %2015 = vst [vmem:[%s1997 + $0x20] sm:%s1989] %v2014
                %v2016 = vld [vmem:[%s1996 + $0x24] sm:%s1989]
                %2017 = vst [vmem:[%s1997 + $0x24] sm:%s1989] %v2016
                %v2018 = vld [vmem:[%s1996 + $0x28] sm:%s1989]
                %2019 = vst [vmem:[%s1997 + $0x28] sm:%s1989] %v2018
                %v2020 = vld [vmem:[%s1996 + $0x2c] sm:%s1989]
                %2021 = vst [vmem:[%s1997 + $0x2c] sm:%s1989] %v2020
                %v2022 = vld [vmem:[%s1996 + $0x30] sm:%s1989]
                %2023 = vst [vmem:[%s1997 + $0x30] sm:%s1989] %v2022
                %v2024 = vld [vmem:[%s1996 + $0x34] sm:%s1989]
                %2025 = vst [vmem:[%s1997 + $0x34] sm:%s1989] %v2024
                %v2026 = vld [vmem:[%s1996 + $0x38] sm:%s1989]
                %2027 = vst [vmem:[%s1997 + $0x38] sm:%s1989] %v2026
                %v2028 = vld [vmem:[%s1996 + $0x3c] sm:%s1989]
                %2029 = vst [vmem:[%s1997 + $0x3c] sm:%s1989] %v2028
                %v2030 = vld [vmem:[%s1996 + $0x40] sm:%s1989]
                %2031 = vst [vmem:[%s1997 + $0x40] sm:%s1989] %v2030
                %v2032 = vld [vmem:[%s1996 + $0x44] sm:%s1989]
                %2033 = vst [vmem:[%s1997 + $0x44] sm:%s1989] %v2032
                %v2034 = vld [vmem:[%s1996 + $0x48] sm:%s1989]
                %2035 = vst [vmem:[%s1997 + $0x48] sm:%s1989] %v2034
                %v2036 = vld [vmem:[%s1996 + $0x4c] sm:%s1989]
                %2037 = vst [vmem:[%s1997 + $0x4c] sm:%s1989] %v2036
                %v2038 = vld [vmem:[%s1996 + $0x50] sm:%s1989]
                %2039 = vst [vmem:[%s1997 + $0x50] sm:%s1989] %v2038
                %v2040 = vld [vmem:[%s1996 + $0x54] sm:%s1989]
                %2041 = vst [vmem:[%s1997 + $0x54] sm:%s1989] %v2040
                %v2042 = vld [vmem:[%s1996 + $0x58] sm:%s1989]
                %2043 = vst [vmem:[%s1997 + $0x58] sm:%s1989] %v2042
                %v2044 = vld [vmem:[%s1996 + $0x5c] sm:%s1989]
                %2045 = vst [vmem:[%s1997 + $0x5c] sm:%s1989] %v2044
                %v2046 = vld [vmem:[%s1996 + $0x60] sm:%s1989]
                %2047 = vst [vmem:[%s1997 + $0x60] sm:%s1989] %v2046
                %v2048 = vld [vmem:[%s1996 + $0x64] sm:%s1989]
                %2049 = vst [vmem:[%s1997 + $0x64] sm:%s1989] %v2048
                %v2050 = vld [vmem:[%s1996 + $0x68] sm:%s1989]
                %2051 = vst [vmem:[%s1997 + $0x68] sm:%s1989] %v2050
                %v2052 = vld [vmem:[%s1996 + $0x6c] sm:%s1989]
                %2053 = vst [vmem:[%s1997 + $0x6c] sm:%s1989] %v2052
                %v2054 = vld [vmem:[%s1996 + $0x70] sm:%s1989]
                %2055 = vst [vmem:[%s1997 + $0x70] sm:%s1989] %v2054
                %v2056 = vld [vmem:[%s1996 + $0x74] sm:%s1989]
                %2057 = vst [vmem:[%s1997 + $0x74] sm:%s1989] %v2056
                %v2058 = vld [vmem:[%s1996 + $0x78] sm:%s1989]
                %2059 = vst [vmem:[%s1997 + $0x78] sm:%s1989] %v2058
                %v2060 = vld [vmem:[%s1996 + $0x7c] sm:%s1989]
                %2061 = vst [vmem:[%s1997 + $0x7c] sm:%s1989] %v2060
                %v2062 = vld [vmem:[%s1996 + $0x80] sm:%s1989]
                %2063 = vst [vmem:[%s1997 + $0x200] sm:%s1989] %v2062
                %v2064 = vld [vmem:[%s1996 + $0x84] sm:%s1989]
                %2065 = vst [vmem:[%s1997 + $0x204] sm:%s1989] %v2064
                %v2066 = vld [vmem:[%s1996 + $0x88] sm:%s1989]
                %2067 = vst [vmem:[%s1997 + $0x208] sm:%s1989] %v2066
                %v2068 = vld [vmem:[%s1996 + $0x8c] sm:%s1989]
                %2069 = vst [vmem:[%s1997 + $0x20c] sm:%s1989] %v2068
                %v2070 = vld [vmem:[%s1996 + $0x90] sm:%s1989]
                %2071 = vst [vmem:[%s1997 + $0x210] sm:%s1989] %v2070
                %v2072 = vld [vmem:[%s1996 + $0x94] sm:%s1989]
                %2073 = vst [vmem:[%s1997 + $0x214] sm:%s1989] %v2072
                %v2074 = vld [vmem:[%s1996 + $0x98] sm:%s1989]
                %2075 = vst [vmem:[%s1997 + $0x218] sm:%s1989] %v2074
                %v2076 = vld [vmem:[%s1996 + $0x9c] sm:%s1989]
                %2077 = vst [vmem:[%s1997 + $0x21c] sm:%s1989] %v2076
                %v2078 = vld [vmem:[%s1996 + $0xa0] sm:%s1989]
                %2079 = vst [vmem:[%s1997 + $0x220] sm:%s1989] %v2078
                %v2080 = vld [vmem:[%s1996 + $0xa4] sm:%s1989]
                %2081 = vst [vmem:[%s1997 + $0x224] sm:%s1989] %v2080
                %v2082 = vld [vmem:[%s1996 + $0xa8] sm:%s1989]
                %2083 = vst [vmem:[%s1997 + $0x228] sm:%s1989] %v2082
                %v2084 = vld [vmem:[%s1996 + $0xac] sm:%s1989]
                %2085 = vst [vmem:[%s1997 + $0x22c] sm:%s1989] %v2084
                %v2086 = vld [vmem:[%s1996 + $0xb0] sm:%s1989]
                %2087 = vst [vmem:[%s1997 + $0x230] sm:%s1989] %v2086
                %v2088 = vld [vmem:[%s1996 + $0xb4] sm:%s1989]
                %2089 = vst [vmem:[%s1997 + $0x234] sm:%s1989] %v2088
                %v2090 = vld [vmem:[%s1996 + $0xb8] sm:%s1989]
                %2091 = vst [vmem:[%s1997 + $0x238] sm:%s1989] %v2090
                %v2092 = vld [vmem:[%s1996 + $0xbc] sm:%s1989]
                %2093 = vst [vmem:[%s1997 + $0x23c] sm:%s1989] %v2092
                %v2094 = vld [vmem:[%s1996 + $0xc0] sm:%s1989]
                %2095 = vst [vmem:[%s1997 + $0x240] sm:%s1989] %v2094
                %v2096 = vld [vmem:[%s1996 + $0xc4] sm:%s1989]
                %2097 = vst [vmem:[%s1997 + $0x244] sm:%s1989] %v2096
                %v2098 = vld [vmem:[%s1996 + $0xc8] sm:%s1989]
                %2099 = vst [vmem:[%s1997 + $0x248] sm:%s1989] %v2098
                %v2100 = vld [vmem:[%s1996 + $0xcc] sm:%s1989]
                %2101 = vst [vmem:[%s1997 + $0x24c] sm:%s1989] %v2100
                %v2102 = vld [vmem:[%s1996 + $0xd0] sm:%s1989]
                %2103 = vst [vmem:[%s1997 + $0x250] sm:%s1989] %v2102
                %v2104 = vld [vmem:[%s1996 + $0xd4] sm:%s1989]
                %2105 = vst [vmem:[%s1997 + $0x254] sm:%s1989] %v2104
                %v2106 = vld [vmem:[%s1996 + $0xd8] sm:%s1989]
                %2107 = vst [vmem:[%s1997 + $0x258] sm:%s1989] %v2106
                %v2108 = vld [vmem:[%s1996 + $0xdc] sm:%s1989]
                %2109 = vst [vmem:[%s1997 + $0x25c] sm:%s1989] %v2108
                %v2110 = vld [vmem:[%s1996 + $0xe0] sm:%s1989]
                %2111 = vst [vmem:[%s1997 + $0x260] sm:%s1989] %v2110
                %v2112 = vld [vmem:[%s1996 + $0xe4] sm:%s1989]
                %2113 = vst [vmem:[%s1997 + $0x264] sm:%s1989] %v2112
                %v2114 = vld [vmem:[%s1996 + $0xe8] sm:%s1989]
                %2115 = vst [vmem:[%s1997 + $0x268] sm:%s1989] %v2114
                %v2116 = vld [vmem:[%s1996 + $0xec] sm:%s1989]
                %2117 = vst [vmem:[%s1997 + $0x26c] sm:%s1989] %v2116
                %v2118 = vld [vmem:[%s1996 + $0xf0] sm:%s1989]
                %2119 = vst [vmem:[%s1997 + $0x270] sm:%s1989] %v2118
                %v2120 = vld [vmem:[%s1996 + $0xf4] sm:%s1989]
                %2121 = vst [vmem:[%s1997 + $0x274] sm:%s1989] %v2120
                %v2122 = vld [vmem:[%s1996 + $0xf8] sm:%s1989]
                %2123 = vst [vmem:[%s1997 + $0x278] sm:%s1989] %v2122
                %v2124 = vld [vmem:[%s1996 + $0xfc] sm:%s1989]
                %2125 = vst [vmem:[%s1997 + $0x27c] sm:%s1989] %v2124
              $region160: #{tpu_custom_call.1} parent=154 // loop_footer
                %s1995 = sadd.s32 1, %s1991
              $region161: #{tpu_custom_call.1} parent=154 // loop_footer_branch
                %1990 = sbr.rel target = $region157
              $region162: #{tpu_custom_call.1} parent=154 // loop_exit
                _
            $region155: #{tpu_custom_call.1} parent=146 // pred_fallthru
              _
          $region147: #{tpu_custom_call.1} parent=142 // pred_fallthru
            _
          %2274 = vnop
        $region143: #{tpu_custom_call.1} parent=130 // pred_fallthru
          _
      $region131: #{tpu_custom_call.1} parent=5 // pred_fallthru
        _
      %p2275 = scmp.le.s32.totalorder 2, %s10
      // Predicated region
      $region181: #{tpu_custom_call.1} parent=5 // pred_check
        %p2276 = pneg %p2275
      $region182: #{tpu_custom_call.1} parent=5 // pred_check_branch
        %2278 = sbr.rel (%p2276) target = $region184
      $region183: #{tpu_custom_call.1} parent=5 // pred_region
        %s2279 = ssub.s32 %s10, 2
        // Predicated region
        $region185: #{tpu_custom_call.1} parent=183 // pred_check
          %p2280 = pneg %p137
        $region186: #{tpu_custom_call.1} parent=183 // pred_check_branch
          %2282 = sbr.rel (%p2280) target = $region188
        $region187: #{tpu_custom_call.1} parent=183 // pred_region
          %s2283 = sand.u32 %s122, 1
          %s2284 = sand.u32 %s122, 1
          %s2285 = smul.addr %s2284, 256
          %s2286 = scalar_lea.vmem [#allocation5], %s2285
        $region188: #{tpu_custom_call.1} parent=183 // pred_fallthru
          _
      $region184: #{tpu_custom_call.1} parent=5 // pred_fallthru
        _
    $region6: #{tpu_custom_call.1} parent=1 // loop_footer
      %s14 = sadd.s32 1, %s10
    $region7: #{tpu_custom_call.1} parent=1 // loop_footer_branch
      %9 = sbr.rel target = $region3
    $region8: #{tpu_custom_call.1} parent=1 // loop_exit
      _

// kernel: tpu_custom_call.1
$region0: #{tpu_custom_call.1}
  #allocation0 [shape = 'u32[]', space=smem, size = 0x4, offset = 0x4, fixed_abs, tag = 'smem constant byte address 0x4 - core index']
  #allocation1 [shape = 'u32[144,128]{1,0:T(1,128)}', space=vmem, size = 0x12000, scoped, tag = 'internal scratch']
  #allocation2 [shape = 'bf16[2,272,16]{2,1,0:T(8,128)(2,1)}', space=vmem, size = 0x22000, scoped, tag = 'scratch operand']
  %s0 = inlined_call_operand.vmem [shape: bf16[2,1040,16], index: 0, kind: input, shape index: {}]
  %s1 = inlined_call_operand.vmem [shape: bf16[2,1040,16], index: 1, kind: input, shape index: {}]
  %s2 = inlined_call_operand.vmem [shape: bf16[1,16,16], index: 2, kind: input, shape index: {}]
  %s3 = inlined_call_operand.vmem [shape: f32[1,16], index: 3, kind: input, shape index: {}]
  %s4 = inlined_call_operand.vmem [shape: bf16[2,1024,16], index: 4, kind: output, shape index: {}]
  %s5 = sld [smem:[#allocation0]]
  $region189: #{tpu_custom_call.1} parent=0
    _
  %s7 = ssub.s32 1, %s5
  %s8 = scalar_select 0, %s7, %s5
  $region1: #{tpu_custom_call.1} parent=0
    #allocation3 [shape = 'u8[262144]{0}', space=vmem, size = 0x40000, scoped, tag = 'input window, operand 0']
    #allocation4 [shape = 'u8[16384]{0}', space=vmem, size = 0x4000, scoped, tag = 'input window, operand 1']
    #allocation5 [shape = 'u8[262144]{0}', space=vmem, size = 0x40000, scoped, tag = 'output window, operand 0']
    loop: start=0, step=1, limit=6
    $region2: #{tpu_custom_call.1} parent=1 // loop_pre_header
      _
    $region3: #{tpu_custom_call.1} parent=1 // loop_header
      %s10 = sphi 0, %s14
      %p11 = scmp.ge.s32.totalorder %s10, 6
      %s20 = sphi 0, %s22
      %s23 = sphi 0, %s20
      %s24 = sphi 0, %s23
      %s40 = sphi 0, %s24
      %s50 = sphi 0, %s52
      %s53 = sphi 0, %s50
      %s54 = sphi 0, %s53
      %s70 = sphi 0, %s54
      %s74 = sphi 0, %s74
      %s76 = sphi 0, %s74
      %s77 = sphi 0, %s76
      %s91 = sphi 0, %s77
      %s95 = sphi 0, %s95
      %s97 = sphi 0, %s95
      %s98 = sphi 0, %s97
      %s112 = sphi 0, %s98
      %s118 = sphi 0, %s120
      %s121 = sphi 0, %s118
      %s122 = sphi 0, %s121
      %s138 = sphi 0, %s122
    $region4: #{tpu_custom_call.1} parent=1 // loop_header_branch
      %13 = sbr.rel (%p11) target = $region8
    $region5: #{tpu_custom_call.1} parent=1 // loop_body
      %s15 = ssub.s32 %s10, 1
      %s16 = ssub.s32 %s10, 2
      %s17 = sadd.s32 %s10, 1
      %s18 = ssub.s32 %s10, %s17
      %p19 = scmp.eq.s32.totalorder %s18, 0
      %s21 = sadd.s32 %s20, 1
      %s22 = scalar_select %p19, %s20, %s21
      %p25 = pneg %p19
      %p26 = scmp.eq.s32.totalorder %s10, 3
      %p27 = por %p25, %p26
      %p28 = scmp.ne.s32.totalorder %s20, %s23
      %p29 = scmp.eq.s32.totalorder %s10, 0
      %p30 = por %p28, %p29
      %p31 = scmp.ne.s32.totalorder %s20, %s23
      %p32 = scmp.eq.s32.totalorder %s15, 3
      %p33 = por %p31, %p32
      %p34 = scmp.ne.s32.totalorder %s23, %s24
      %p35 = scmp.eq.s32.totalorder %s15, 0
      %p36 = por %p34, %p35
      %p37 = scmp.ne.s32.totalorder %s23, %s24
      %p38 = scmp.eq.s32.totalorder %s16, 3
      %p39 = por %p37, %p38
      %p41 = scmp.ne.s32.totalorder %s24, %s40
      %p42 = scmp.eq.s32.totalorder %s16, 0
      %p43 = por %p41, %p42
      %s44 = sadd.s32 %s10, 1
      %s45 = smul.u32 %s44, 16
      %s46 = sadd.s32 %s17, 1
      %s47 = smul.u32 %s46, 16
      %s48 = ssub.s32 %s45, %s47
      %p49 = scmp.eq.s32.totalorder %s48, 0
      %s51 = sadd.s32 %s50, 1
      %s52 = scalar_select %p49, %s50, %s51
      %p55 = pneg %p49
      %p56 = scmp.eq.s32.totalorder %s10, 3
      %p57 = por %p55, %p56
      %p58 = scmp.ne.s32.totalorder %s50, %s53
      %p59 = scmp.eq.s32.totalorder %s10, 0
      %p60 = por %p58, %p59
      %p61 = scmp.ne.s32.totalorder %s50, %s53
      %p62 = scmp.eq.s32.totalorder %s15, 3
      %p63 = por %p61, %p62
      %p64 = scmp.ne.s32.totalorder %s53, %s54
      %p65 = scmp.eq.s32.totalorder %s15, 0
      %p66 = por %p64, %p65
      %p67 = scmp.ne.s32.totalorder %s53, %s54
      %p68 = scmp.eq.s32.totalorder %s16, 3
      %p69 = por %p67, %p68
      %p71 = scmp.ne.s32.totalorder %s54, %s70
      %p72 = scmp.eq.s32.totalorder %s16, 0
      %p73 = por %p71, %p72
      %s75 = sadd.s32 %s74, 1
      %p78 = scmp.eq.s32.totalorder %s10, 3
      %p79 = scmp.ne.s32.totalorder %s74, %s76
      %p80 = scmp.eq.s32.totalorder %s10, 0
      %p81 = por %p79, %p80
      %p82 = scmp.ne.s32.totalorder %s74, %s76
      %p83 = scmp.eq.s32.totalorder %s15, 3
      %p84 = por %p82, %p83
      %p85 = scmp.ne.s32.totalorder %s76, %s77
      %p86 = scmp.eq.s32.totalorder %s15, 0
      %p87 = por %p85, %p86
      %p88 = scmp.ne.s32.totalorder %s76, %s77
      %p89 = scmp.eq.s32.totalorder %s16, 3
      %p90 = por %p88, %p89
      %p92 = scmp.ne.s32.totalorder %s77, %s91
      %p93 = scmp.eq.s32.totalorder %s16, 0
      %p94 = por %p92, %p93
      %s96 = sadd.s32 %s95, 1
      %p99 = scmp.eq.s32.totalorder %s10, 3
      %p100 = scmp.ne.s32.totalorder %s95, %s97
      %p101 = scmp.eq.s32.totalorder %s10, 0
      %p102 = por %p100, %p101
      %p103 = scmp.ne.s32.totalorder %s95, %s97
      %p104 = scmp.eq.s32.totalorder %s15, 3
      %p105 = por %p103, %p104
      %p106 = scmp.ne.s32.totalorder %s97, %s98
      %p107 = scmp.eq.s32.totalorder %s15, 0
      %p108 = por %p106, %p107
      %p109 = scmp.ne.s32.totalorder %s97, %s98
      %p110 = scmp.eq.s32.totalorder %s16, 3
      %p111 = por %p109, %p110
      %p113 = scmp.ne.s32.totalorder %s98, %s112
      %p114 = scmp.eq.s32.totalorder %s16, 0
      %p115 = por %p113, %p114
      %s116 = ssub.s32 %s10, %s17
      %p117 = scmp.eq.s32.totalorder %s116, 0
      %s119 = sadd.s32 %s118, 1
      %s120 = scalar_select %p117, %s118, %s119
      %p123 = pneg %p117
      %p124 = scmp.eq.s32.totalorder %s10, 3
      %p125 = por %p123, %p124
      %p126 = scmp.ne.s32.totalorder %s118, %s121
      %p127 = scmp.eq.s32.totalorder %s10, 0
      %p128 = por %p126, %p127
      %p129 = scmp.ne.s32.totalorder %s118, %s121
      %p130 = scmp.eq.s32.totalorder %s15, 3
      %p131 = por %p129, %p130
      %p132 = scmp.ne.s32.totalorder %s121, %s122
      %p133 = scmp.eq.s32.totalorder %s15, 0
      %p134 = por %p132, %p133
      %p135 = scmp.ne.s32.totalorder %s121, %s122
      %p136 = scmp.eq.s32.totalorder %s16, 3
      %p137 = por %p135, %p136
      %p139 = scmp.ne.s32.totalorder %s122, %s138
      %p140 = scmp.eq.s32.totalorder %s16, 0
      %p141 = por %p139, %p140
      %p142 = scmp.le.s32.totalorder 1, %s10
      %p143 = scmp.lt.s32.totalorder %s10, 5
      %p144 = pnand %p142, %p143
      %p145 = pneg %p144
      // Predicated region
      $region9: #{tpu_custom_call.1} parent=5 // pred_check
        _
      $region10: #{tpu_custom_call.1} parent=5 // pred_check_branch
        %147 = sbr.rel (%p144) target = $region12
      $region11: #{tpu_custom_call.1} parent=5 // pred_region
        %s148 = ssub.s32 %s10, 1
        // Predicated region
        $region13: #{tpu_custom_call.1} parent=11 // pred_check
          %p149 = pneg %p87
        $region14: #{tpu_custom_call.1} parent=11 // pred_check_branch
          %151 = sbr.rel (%p149) target = $region16
        $region15: #{tpu_custom_call.1} parent=11 // pred_region
          _
        $region16: #{tpu_custom_call.1} parent=11 // pred_fallthru
          _
        // Predicated region
        $region17: #{tpu_custom_call.1} parent=11 // pred_check
          %p152 = pneg %p108
        $region18: #{tpu_custom_call.1} parent=11 // pred_check_branch
          %154 = sbr.rel (%p152) target = $region20
        $region19: #{tpu_custom_call.1} parent=11 // pred_region
          _
        $region20: #{tpu_custom_call.1} parent=11 // pred_fallthru
          _
      $region12: #{tpu_custom_call.1} parent=5 // pred_fallthru
        _
      %p155 = scmp.lt.s32.totalorder %s10, 4
      // Predicated region
      $region21: #{tpu_custom_call.1} parent=5 // pred_check
        %p156 = pneg %p155
      $region22: #{tpu_custom_call.1} parent=5 // pred_check_branch
        %158 = sbr.rel (%p156) target = $region24
      $region23: #{tpu_custom_call.1} parent=5 // pred_region
        // Predicated region
        $region25: #{tpu_custom_call.1} parent=23 // pred_check
          %p159 = pneg %p30
        $region26: #{tpu_custom_call.1} parent=23 // pred_check_branch
          %161 = sbr.rel (%p159) target = $region28
        $region27: #{tpu_custom_call.1} parent=23 // pred_region
          %s162 = sand.u32 %s20, 1
          %s163 = sand.u32 %s20, 1
          %s164 = smul.addr %s163, 256
          %s165 = scalar_lea.vmem [#allocation3], %s164
          %s166 = smul.u32 32, %s10
          %s167 = ssub.s32 130, %s166
          %p168 = scmp.lt.s32.totalorder %s167, 32
          %s169 = scalar_select %p168, %s167, 32
          %s170 = smul.u32 128, %s169
          %p171 = scmp.ne.s32.totalorder 0, %s170
          %s172 = smul.addr %s166, 4
          %s173 = scalar_lea.vmem %s0, %s172
          // Predicated region
          $region29: #{tpu_custom_call.1} parent=27 // pred_check
            %p174 = pneg %p171
          $region30: #{tpu_custom_call.1} parent=27 // pred_check_branch
            %176 = sbr.rel (%p174) target = $region32
          $region31: #{tpu_custom_call.1} parent=27 // pred_region
            // Predicated region
            $region33: #{tpu_custom_call.1} parent=31 // pred_check
              _
            $region34: #{tpu_custom_call.1} parent=31 // pred_check_branch
              %178 = sbr.rel target = $region36
            $region35: #{tpu_custom_call.1} parent=31 // pred_region
              // Predicated region
              $region55: #{tpu_custom_call.1} parent=35 // pred_check
                _
              $region56: #{tpu_custom_call.1} parent=35 // pred_check_branch
                %356 = sbr.rel (0) target = $region58
              $region57: #{tpu_custom_call.1} parent=35 // pred_region
                %s357 = sshrl.u32 %s169, 5
                // While loop
                $region59: #{tpu_custom_call.1} parent=57 // loop_pre_header
                  _
                $region60: #{tpu_custom_call.1} parent=57 // loop_header
                  %s359 = sphi 0, %s361
                  %p360 = scmp.ge.s32.totalorder %s359, %s357
                  %s364 = sphi 0, %s369
                  %s365 = sphi %s173, %s372
                  %s366 = sphi %s165, %s373
                $region61: #{tpu_custom_call.1} parent=57 // loop_header_branch
                  %363 = sbr.rel (%p360) target = $region65
                $region62: #{tpu_custom_call.1} parent=57 // loop_body
                  %s367 = sadd.s32 1, %s364
                  %p368 = scmp.ge.s32.totalorder %s367, %s357
                  %s369 = scalar_select %p368, 0, %s367
                  %s370 = smul.u32 %s369, 128
                  %s371 = smul.u32 %s369, 128
                  %s372 = scalar_lea.vmem %s173, %s370
                  %s373 = scalar_lea.vmem %s165, %s371 [#allocation3]
                $region63: #{tpu_custom_call.1} parent=57 // loop_footer
                  %s361 = sadd.s32 %s359, 1
                $region64: #{tpu_custom_call.1} parent=57 // loop_footer_branch
                  %358 = sbr.rel target = $region60
                $region65: #{tpu_custom_call.1} parent=57 // loop_exit
                  _
                %s374 = sshrl.u32 %s169, 5
                %s375 = sand.u32 %s169, 31
                %s376 = smul.u32 %s374, 32
                %s377 = smul.u32 4, %s376
                %s378 = scalar_lea.vmem %s173, %s377
                %s379 = smul.u32 4, %s376
                %s380 = scalar_lea.vmem %s165, %s379 [#allocation3]
                // While loop
                $region66: #{tpu_custom_call.1} parent=57 // loop_pre_header
                  _
                $region67: #{tpu_custom_call.1} parent=57 // loop_header
                  %s382 = sphi 0, %s384
                  %p383 = scmp.ge.s32.totalorder %s382, %s375
                  %s387 = sphi 0, %s392
                  %s388 = sphi %s378, %s395
                  %s389 = sphi %s380, %s396
                $region68: #{tpu_custom_call.1} parent=57 // loop_header_branch
                  %386 = sbr.rel (%p383) target = $region72
                $region69: #{tpu_custom_call.1} parent=57 // loop_body
                  %s390 = sadd.s32 1, %s387
                  %p391 = scmp.ge.s32.totalorder %s390, %s375
                  %s392 = scalar_select %p391, 0, %s390
                  %s393 = smul.u32 %s392, 4
                  %s394 = smul.u32 %s392, 4
                  %s395 = scalar_lea.vmem %s378, %s393
                  %s396 = scalar_lea.vmem %s380, %s394 [#allocation3]
                $region70: #{tpu_custom_call.1} parent=57 // loop_footer
                  %s384 = sadd.s32 %s382, 1
                $region71: #{tpu_custom_call.1} parent=57 // loop_footer_branch
                  %381 = sbr.rel target = $region67
                $region72: #{tpu_custom_call.1} parent=57 // loop_exit
                  _
                %s398 = ssub.s32 16, 1
                %s399 = sshrl.u32 %s169, 5
                // While loop
                $region73: #{tpu_custom_call.1} parent=57 // loop_pre_header
                  _
                $region74: #{tpu_custom_call.1} parent=57 // loop_header
                  %s401 = sphi 0, %s403
                  %p402 = scmp.ge.s32.totalorder %s401, %s399
                  %s406 = sphi 0, %s539
                  %s407 = sphi %s173, %s542
                  %s408 = sphi %s165, %s543
                $region75: #{tpu_custom_call.1} parent=57 // loop_header_branch
                  %405 = sbr.rel (%p402) target = $region79
                $region76: #{tpu_custom_call.1} parent=57 // loop_body
                  %v409 = vld [vmem:[%s407] sm:%s398]
                  %410 = vst [vmem:[%s408] sm:%s398] %v409
                  %v411 = vld [vmem:[%s407 + $0x4] sm:%s398]
                  %412 = vst [vmem:[%s408 + $0x4] sm:%s398] %v411
                  %v413 = vld [vmem:[%s407 + $0x8] sm:%s398]
                  %414 = vst [vmem:[%s408 + $0x8] sm:%s398] %v413
                  %v415 = vld [vmem:[%s407 + $0xc] sm:%s398]
                  %416 = vst [vmem:[%s408 + $0xc] sm:%s398] %v415
                  %v417 = vld [vmem:[%s407 + $0x10] sm:%s398]
                  %418 = vst [vmem:[%s408 + $0x10] sm:%s398] %v417
                  %v419 = vld [vmem:[%s407 + $0x14] sm:%s398]
                  %420 = vst [vmem:[%s408 + $0x14] sm:%s398] %v419
                  %v421 = vld [vmem:[%s407 + $0x18] sm:%s398]
                  %422 = vst [vmem:[%s408 + $0x18] sm:%s398] %v421
                  %v423 = vld [vmem:[%s407 + $0x1c] sm:%s398]
                  %424 = vst [vmem:[%s408 + $0x1c] sm:%s398] %v423
                  %v425 = vld [vmem:[%s407 + $0x20] sm:%s398]
                  %426 = vst [vmem:[%s408 + $0x20] sm:%s398] %v425
                  %v427 = vld [vmem:[%s407 + $0x24] sm:%s398]
                  %428 = vst [vmem:[%s408 + $0x24] sm:%s398] %v427
                  %v429 = vld [vmem:[%s407 + $0x28] sm:%s398]
                  %430 = vst [vmem:[%s408 + $0x28] sm:%s398] %v429
                  %v431 = vld [vmem:[%s407 + $0x2c] sm:%s398]
                  %432 = vst [vmem:[%s408 + $0x2c] sm:%s398] %v431
                  %v433 = vld [vmem:[%s407 + $0x30] sm:%s398]
                  %434 = vst [vmem:[%s408 + $0x30] sm:%s398] %v433
                  %v435 = vld [vmem:[%s407 + $0x34] sm:%s398]
                  %436 = vst [vmem:[%s408 + $0x34] sm:%s398] %v435
                  %v437 = vld [vmem:[%s407 + $0x38] sm:%s398]
                  %438 = vst [vmem:[%s408 + $0x38] sm:%s398] %v437
                  %v439 = vld [vmem:[%s407 + $0x3c] sm:%s398]
                  %440 = vst [vmem:[%s408 + $0x3c] sm:%s398] %v439
                  %v441 = vld [vmem:[%s407 + $0x40] sm:%s398]
                  %442 = vst [vmem:[%s408 + $0x40] sm:%s398] %v441
                  %v443 = vld [vmem:[%s407 + $0x44] sm:%s398]
                  %444 = vst [vmem:[%s408 + $0x44] sm:%s398] %v443
                  %v445 = vld [vmem:[%s407 + $0x48] sm:%s398]
                  %446 = vst [vmem:[%s408 + $0x48] sm:%s398] %v445
                  %v447 = vld [vmem:[%s407 + $0x4c] sm:%s398]
                  %448 = vst [vmem:[%s408 + $0x4c] sm:%s398] %v447
                  %v449 = vld [vmem:[%s407 + $0x50] sm:%s398]
                  %450 = vst [vmem:[%s408 + $0x50] sm:%s398] %v449
                  %v451 = vld [vmem:[%s407 + $0x54] sm:%s398]
                  %452 = vst [vmem:[%s408 + $0x54] sm:%s398] %v451
                  %v453 = vld [vmem:[%s407 + $0x58] sm:%s398]
                  %454 = vst [vmem:[%s408 + $0x58] sm:%s398] %v453
                  %v455 = vld [vmem:[%s407 + $0x5c] sm:%s398]
                  %456 = vst [vmem:[%s408 + $0x5c] sm:%s398] %v455
                  %v457 = vld [vmem:[%s407 + $0x60] sm:%s398]
                  %458 = vst [vmem:[%s408 + $0x60] sm:%s398] %v457
                  %v459 = vld [vmem:[%s407 + $0x64] sm:%s398]
                  %460 = vst [vmem:[%s408 + $0x64] sm:%s398] %v459
                  %v461 = vld [vmem:[%s407 + $0x68] sm:%s398]
                  %462 = vst [vmem:[%s408 + $0x68] sm:%s398] %v461
                  %v463 = vld [vmem:[%s407 + $0x6c] sm:%s398]
                  %464 = vst [vmem:[%s408 + $0x6c] sm:%s398] %v463
                  %v465 = vld [vmem:[%s407 + $0x70] sm:%s398]
                  %466 = vst [vmem:[%s408 + $0x70] sm:%s398] %v465
                  %v467 = vld [vmem:[%s407 + $0x74] sm:%s398]
                  %468 = vst [vmem:[%s408 + $0x74] sm:%s398] %v467
                  %v469 = vld [vmem:[%s407 + $0x78] sm:%s398]
                  %470 = vst [vmem:[%s408 + $0x78] sm:%s398] %v469
                  %v471 = vld [vmem:[%s407 + $0x7c] sm:%s398]
                  %472 = vst [vmem:[%s408 + $0x7c] sm:%s398] %v471
                  %v473 = vld [vmem:[%s407 + $0x208] sm:%s398]
                  %474 = vst [vmem:[%s408 + $0x80] sm:%s398] %v473
                  %v475 = vld [vmem:[%s407 + $0x20c] sm:%s398]
                  %476 = vst [vmem:[%s408 + $0x84] sm:%s398] %v475
                  %v477 = vld [vmem:[%s407 + $0x210] sm:%s398]
                  %478 = vst [vmem:[%s408 + $0x88] sm:%s398] %v477
                  %v479 = vld [vmem:[%s407 + $0x214] sm:%s398]
                  %480 = vst [vmem:[%s408 + $0x8c] sm:%s398] %v479
                  %v481 = vld [vmem:[%s407 + $0x218] sm:%s398]
                  %482 = vst [vmem:[%s408 + $0x90] sm:%s398] %v481
                  %v483 = vld [vmem:[%s407 + $0x21c] sm:%s398]
                  %484 = vst [vmem:[%s408 + $0x94] sm:%s398] %v483
                  %v485 = vld [vmem:[%s407 + $0x220] sm:%s398]
                  %486 = vst [vmem:[%s408 + $0x98] sm:%s398] %v485
                  %v487 = vld [vmem:[%s407 + $0x224] sm:%s398]
                  %488 = vst [vmem:[%s408 + $0x9c] sm:%s398] %v487
                  %v489 = vld [vmem:[%s407 + $0x228] sm:%s398]
                  %490 = vst [vmem:[%s408 + $0xa0] sm:%s398] %v489
                  %v491 = vld [vmem:[%s407 + $0x22c] sm:%s398]
                  %492 = vst [vmem:[%s408 + $0xa4] sm:%s398] %v491
                  %v493 = vld [vmem:[%s407 + $0x230] sm:%s398]
                  %494 = vst [vmem:[%s408 + $0xa8] sm:%s398] %v493
                  %v495 = vld [vmem:[%s407 + $0x234] sm:%s398]
                  %496 = vst [vmem:[%s408 + $0xac] sm:%s398] %v495
                  %v497 = vld [vmem:[%s407 + $0x238] sm:%s398]
                  %498 = vst [vmem:[%s408 + $0xb0] sm:%s398] %v497
                  %v499 = vld [vmem:[%s407 + $0x23c] sm:%s398]
                  %500 = vst [vmem:[%s408 + $0xb4] sm:%s398] %v499
                  %v501 = vld [vmem:[%s407 + $0x240] sm:%s398]
                  %502 = vst [vmem:[%s408 + $0xb8] sm:%s398] %v501
                  %v503 = vld [vmem:[%s407 + $0x244] sm:%s398]
                  %504 = vst [vmem:[%s408 + $0xbc] sm:%s398] %v503
                  %v505 = vld [vmem:[%s407 + $0x248] sm:%s398]
                  %506 = vst [vmem:[%s408 + $0xc0] sm:%s398] %v505
                  %v507 = vld [vmem:[%s407 + $0x24c] sm:%s398]
                  %508 = vst [vmem:[%s408 + $0xc4] sm:%s398] %v507
                  %v509 = vld [vmem:[%s407 + $0x250] sm:%s398]
                  %510 = vst [vmem:[%s408 + $0xc8] sm:%s398] %v509
                  %v511 = vld [vmem:[%s407 + $0x254] sm:%s398]
                  %512 = vst [vmem:[%s408 + $0xcc] sm:%s398] %v511
                  %v513 = vld [vmem:[%s407 + $0x258] sm:%s398]
                  %514 = vst [vmem:[%s408 + $0xd0] sm:%s398] %v513
                  %v515 = vld [vmem:[%s407 + $0x25c] sm:%s398]
                  %516 = vst [vmem:[%s408 + $0xd4] sm:%s398] %v515
                  %v517 = vld [vmem:[%s407 + $0x260] sm:%s398]
                  %518 = vst [vmem:[%s408 + $0xd8] sm:%s398] %v517
                  %v519 = vld [vmem:[%s407 + $0x264] sm:%s398]
                  %520 = vst [vmem:[%s408 + $0xdc] sm:%s398] %v519
                  %v521 = vld [vmem:[%s407 + $0x268] sm:%s398]
                  %522 = vst [vmem:[%s408 + $0xe0] sm:%s398] %v521
                  %v523 = vld [vmem:[%s407 + $0x26c] sm:%s398]
                  %524 = vst [vmem:[%s408 + $0xe4] sm:%s398] %v523
                  %v525 = vld [vmem:[%s407 + $0x270] sm:%s398]
                  %526 = vst [vmem:[%s408 + $0xe8] sm:%s398] %v525
                  %v527 = vld [vmem:[%s407 + $0x274] sm:%s398]
                  %528 = vst [vmem:[%s408 + $0xec] sm:%s398] %v527
                  %v529 = vld [vmem:[%s407 + $0x278] sm:%s398]
                  %530 = vst [vmem:[%s408 + $0xf0] sm:%s398] %v529
                  %v531 = vld [vmem:[%s407 + $0x27c] sm:%s398]
                  %532 = vst [vmem:[%s408 + $0xf4] sm:%s398] %v531
                  %v533 = vld [vmem:[%s407 + $0x280] sm:%s398]
                  %534 = vst [vmem:[%s408 + $0xf8] sm:%s398] %v533
                  %v535 = vld [vmem:[%s407 + $0x284] sm:%s398]
                  %536 = vst [vmem:[%s408 + $0xfc] sm:%s398] %v535
                  %s537 = sadd.s32 1, %s406
                  %p538 = scmp.ge.s32.totalorder %s537, %s399
                  %s539 = scalar_select %p538, 0, %s537
                  %s540 = smul.u32 %s539, 128
                  %s541 = smul.u32 %s539, 128
                  %s542 = scalar_lea.vmem %s173, %s540
                  %s543 = scalar_lea.vmem %s165, %s541 [#allocation3]
                $region77: #{tpu_custom_call.1} parent=57 // loop_footer
                  %s403 = sadd.s32 %s401, 1
                $region78: #{tpu_custom_call.1} parent=57 // loop_footer_branch
                  %400 = sbr.rel target = $region74
                $region79: #{tpu_custom_call.1} parent=57 // loop_exit
                  _
                %s544 = sshrl.u32 %s169, 5
                %s545 = sand.u32 %s169, 31
                %s546 = smul.u32 %s544, 32
                %s547 = smul.u32 4, %s546
                %s548 = scalar_lea.vmem %s173, %s547
                %s549 = smul.u32 4, %s546
                %s550 = scalar_lea.vmem %s165, %s549 [#allocation3]
                // While loop
                $region80: #{tpu_custom_call.1} parent=57 // loop_pre_header
                  _
                $region81: #{tpu_custom_call.1} parent=57 // loop_header
                  %s552 = sphi 0, %s554
                  %p553 = scmp.ge.s32.totalorder %s552, %s545
                  %s557 = sphi 0, %s566
                  %s558 = sphi %s548, %s569
                  %s559 = sphi %s550, %s570
                $region82: #{tpu_custom_call.1} parent=57 // loop_header_branch
                  %556 = sbr.rel (%p553) target = $region86
                $region83: #{tpu_custom_call.1} parent=57 // loop_body
                  %v560 = vld [vmem:[%s558] sm:%s398]
                  %561 = vst [vmem:[%s559] sm:%s398] %v560
                  %v562 = vld [vmem:[%s558 + $0x208] sm:%s398]
                  %563 = vst [vmem:[%s559 + $0x80] sm:%s398] %v562
                  %s564 = sadd.s32 1, %s557
                  %p565 = scmp.ge.s32.totalorder %s564, %s545
                  %s566 = scalar_select %p565, 0, %s564
                  %s567 = smul.u32 %s566, 4
                  %s568 = smul.u32 %s566, 4
                  %s569 = scalar_lea.vmem %s548, %s567
                  %s570 = scalar_lea.vmem %s550, %s568 [#allocation3]
                $region84: #{tpu_custom_call.1} parent=57 // loop_footer
                  %s554 = sadd.s32 %s552, 1
                $region85: #{tpu_custom_call.1} parent=57 // loop_footer_branch
                  %551 = sbr.rel target = $region81
                $region86: #{tpu_custom_call.1} parent=57 // loop_exit
                  _
              $region58: #{tpu_custom_call.1} parent=35 // pred_fallthru
                _
            $region36: #{tpu_custom_call.1} parent=31 // pred_fallthru
              _
            // Predicated region
            $region37: #{tpu_custom_call.1} parent=31 // pred_check
              _
            $region38: #{tpu_custom_call.1} parent=31 // pred_check_branch
              %180 = sbr.rel (0) target = $region40
            $region39: #{tpu_custom_call.1} parent=31 // pred_region
              %s182 = ssub.s32 16, 1
              %s183 = sshrl.u32 %s169, 5
              // While loop
              $region41: #{tpu_custom_call.1} parent=39 // loop_pre_header
                _
              $region42: #{tpu_custom_call.1} parent=39 // loop_header
                %s185 = sphi 0, %s187
                %p186 = scmp.ge.s32.totalorder %s185, %s183
                %s190 = sphi 0, %s323
                %s191 = sphi %s173, %s326
                %s192 = sphi %s165, %s327
              $region43: #{tpu_custom_call.1} parent=39 // loop_header_branch
                %189 = sbr.rel (%p186) target = $region47
              $region44: #{tpu_custom_call.1} parent=39 // loop_body
                %v193 = vld [vmem:[%s191] sm:%s182]
                %194 = vst [vmem:[%s192] sm:%s182] %v193
                %v195 = vld [vmem:[%s191 + $0x4] sm:%s182]
                %196 = vst [vmem:[%s192 + $0x4] sm:%s182] %v195
                %v197 = vld [vmem:[%s191 + $0x8] sm:%s182]
                %198 = vst [vmem:[%s192 + $0x8] sm:%s182] %v197
                %v199 = vld [vmem:[%s191 + $0xc] sm:%s182]
                %200 = vst [vmem:[%s192 + $0xc] sm:%s182] %v199
                %v201 = vld [vmem:[%s191 + $0x10] sm:%s182]
                %202 = vst [vmem:[%s192 + $0x10] sm:%s182] %v201
                %v203 = vld [vmem:[%s191 + $0x14] sm:%s182]
                %204 = vst [vmem:[%s192 + $0x14] sm:%s182] %v203
                %v205 = vld [vmem:[%s191 + $0x18] sm:%s182]
                %206 = vst [vmem:[%s192 + $0x18] sm:%s182] %v205
                %v207 = vld [vmem:[%s191 + $0x1c] sm:%s182]
                %208 = vst [vmem:[%s192 + $0x1c] sm:%s182] %v207
                %v209 = vld [vmem:[%s191 + $0x20] sm:%s182]
                %210 = vst [vmem:[%s192 + $0x20] sm:%s182] %v209
                %v211 = vld [vmem:[%s191 + $0x24] sm:%s182]
                %212 = vst [vmem:[%s192 + $0x24] sm:%s182] %v211
                %v213 = vld [vmem:[%s191 + $0x28] sm:%s182]
                %214 = vst [vmem:[%s192 + $0x28] sm:%s182] %v213
                %v215 = vld [vmem:[%s191 + $0x2c] sm:%s182]
                %216 = vst [vmem:[%s192 + $0x2c] sm:%s182] %v215
                %v217 = vld [vmem:[%s191 + $0x30] sm:%s182]
                %218 = vst [vmem:[%s192 + $0x30] sm:%s182] %v217
                %v219 = vld [vmem:[%s191 + $0x34] sm:%s182]
                %220 = vst [vmem:[%s192 + $0x34] sm:%s182] %v219
                %v221 = vld [vmem:[%s191 + $0x38] sm:%s182]
                %222 = vst [vmem:[%s192 + $0x38] sm:%s182] %v221
                %v223 = vld [vmem:[%s191 + $0x3c] sm:%s182]
                %224 = vst [vmem:[%s192 + $0x3c] sm:%s182] %v223
                %v225 = vld [vmem:[%s191 + $0x40] sm:%s182]
                %226 = vst [vmem:[%s192 + $0x40] sm:%s182] %v225
                %v227 = vld [vmem:[%s191 + $0x44] sm:%s182]
                %228 = vst [vmem:[%s192 + $0x44] sm:%s182] %v227
                %v229 = vld [vmem:[%s191 + $0x48] sm:%s182]
                %230 = vst [vmem:[%s192 + $0x48] sm:%s182] %v229
                %v231 = vld [vmem:[%s191 + $0x4c] sm:%s182]
                %232 = vst [vmem:[%s192 + $0x4c] sm:%s182] %v231
                %v233 = vld [vmem:[%s191 + $0x50] sm:%s182]
                %234 = vst [vmem:[%s192 + $0x50] sm:%s182] %v233
                %v235 = vld [vmem:[%s191 + $0x54] sm:%s182]
                %236 = vst [vmem:[%s192 + $0x54] sm:%s182] %v235
                %v237 = vld [vmem:[%s191 + $0x58] sm:%s182]
                %238 = vst [vmem:[%s192 + $0x58] sm:%s182] %v237
                %v239 = vld [vmem:[%s191 + $0x5c] sm:%s182]
                %240 = vst [vmem:[%s192 + $0x5c] sm:%s182] %v239
                %v241 = vld [vmem:[%s191 + $0x60] sm:%s182]
                %242 = vst [vmem:[%s192 + $0x60] sm:%s182] %v241
                %v243 = vld [vmem:[%s191 + $0x64] sm:%s182]
                %244 = vst [vmem:[%s192 + $0x64] sm:%s182] %v243
                %v245 = vld [vmem:[%s191 + $0x68] sm:%s182]
                %246 = vst [vmem:[%s192 + $0x68] sm:%s182] %v245
                %v247 = vld [vmem:[%s191 + $0x6c] sm:%s182]
                %248 = vst [vmem:[%s192 + $0x6c] sm:%s182] %v247
                %v249 = vld [vmem:[%s191 + $0x70] sm:%s182]
                %250 = vst [vmem:[%s192 + $0x70] sm:%s182] %v249
                %v251 = vld [vmem:[%s191 + $0x74] sm:%s182]
                %252 = vst [vmem:[%s192 + $0x74] sm:%s182] %v251
                %v253 = vld [vmem:[%s191 + $0x78] sm:%s182]
                %254 = vst [vmem:[%s192 + $0x78] sm:%s182] %v253
                %v255 = vld [vmem:[%s191 + $0x7c] sm:%s182]
                %256 = vst [vmem:[%s192 + $0x7c] sm:%s182] %v255
                %v257 = vld [vmem:[%s191 + $0x208] sm:%s182]
                %258 = vst [vmem:[%s192 + $0x80] sm:%s182] %v257
                %v259 = vld [vmem:[%s191 + $0x20c] sm:%s182]
                %260 = vst [vmem:[%s192 + $0x84] sm:%s182] %v259
                %v261 = vld [vmem:[%s191 + $0x210] sm:%s182]
                %262 = vst [vmem:[%s192 + $0x88] sm:%s182] %v261
                %v263 = vld [vmem:[%s191 + $0x214] sm:%s182]
                %264 = vst [vmem:[%s192 + $0x8c] sm:%s182] %v263
                %v265 = vld [vmem:[%s191 + $0x218] sm:%s182]
                %266 = vst [vmem:[%s192 + $0x90] sm:%s182] %v265
                %v267 = vld [vmem:[%s191 + $0x21c] sm:%s182]
                %268 = vst [vmem:[%s192 + $0x94] sm:%s182] %v267
                %v269 = vld [vmem:[%s191 + $0x220] sm:%s182]
                %270 = vst [vmem:[%s192 + $0x98] sm:%s182] %v269
                %v271 = vld [vmem:[%s191 + $0x224] sm:%s182]
                %272 = vst [vmem:[%s192 + $0x9c] sm:%s182] %v271
                %v273 = vld [vmem:[%s191 + $0x228] sm:%s182]
                %274 = vst [vmem:[%s192 + $0xa0] sm:%s182] %v273
                %v275 = vld [vmem:[%s191 + $0x22c] sm:%s182]
                %276 = vst [vmem:[%s192 + $0xa4] sm:%s182] %v275
                %v277 = vld [vmem:[%s191 + $0x230] sm:%s182]
                %278 = vst [vmem:[%s192 + $0xa8] sm:%s182] %v277
                %v279 = vld [vmem:[%s191 + $0x234] sm:%s182]
                %280 = vst [vmem:[%s192 + $0xac] sm:%s182] %v279
                %v281 = vld [vmem:[%s191 + $0x238] sm:%s182]
                %282 = vst [vmem:[%s192 + $0xb0] sm:%s182] %v281
                %v283 = vld [vmem:[%s191 + $0x23c] sm:%s182]
                %284 = vst [vmem:[%s192 + $0xb4] sm:%s182] %v283
                %v285 = vld [vmem:[%s191 + $0x240] sm:%s182]
                %286 = vst [vmem:[%s192 + $0xb8] sm:%s182] %v285
                %v287 = vld [vmem:[%s191 + $0x244] sm:%s182]
                %288 = vst [vmem:[%s192 + $0xbc] sm:%s182] %v287
                %v289 = vld [vmem:[%s191 + $0x248] sm:%s182]
                %290 = vst [vmem:[%s192 + $0xc0] sm:%s182] %v289
                %v291 = vld [vmem:[%s191 + $0x24c] sm:%s182]
                %292 = vst [vmem:[%s192 + $0xc4] sm:%s182] %v291
                %v293 = vld [vmem:[%s191 + $0x250] sm:%s182]
                %294 = vst [vmem:[%s192 + $0xc8] sm:%s182] %v293
                %v295 = vld [vmem:[%s191 + $0x254] sm:%s182]
                %296 = vst [vmem:[%s192 + $0xcc] sm:%s182] %v295
                %v297 = vld [vmem:[%s191 + $0x258] sm:%s182]
                %298 = vst [vmem:[%s192 + $0xd0] sm:%s182] %v297
                %v299 = vld [vmem:[%s191 + $0x25c] sm:%s182]
                %300 = vst [vmem:[%s192 + $0xd4] sm:%s182] %v299
                %v301 = vld [vmem:[%s191 + $0x260] sm:%s182]
                %302 = vst [vmem:[%s192 + $0xd8] sm:%s182] %v301
                %v303 = vld [vmem:[%s191 + $0x264] sm:%s182]
                %304 = vst [vmem:[%s192 + $0xdc] sm:%s182] %v303
                %v305 = vld [vmem:[%s191 + $0x268] sm:%s182]
                %306 = vst [vmem:[%s192 + $0xe0] sm:%s182] %v305
                %v307 = vld [vmem:[%s191 + $0x26c] sm:%s182]
                %308 = vst [vmem:[%s192 + $0xe4] sm:%s182] %v307
                %v309 = vld [vmem:[%s191 + $0x270] sm:%s182]
                %310 = vst [vmem:[%s192 + $0xe8] sm:%s182] %v309
                %v311 = vld [vmem:[%s191 + $0x274] sm:%s182]
                %312 = vst [vmem:[%s192 + $0xec] sm:%s182] %v311
                %v313 = vld [vmem:[%s191 + $0x278] sm:%s182]
                %314 = vst [vmem:[%s192 + $0xf0] sm:%s182] %v313
                %v315 = vld [vmem:[%s191 + $0x27c] sm:%s182]
                %316 = vst [vmem:[%s192 + $0xf4] sm:%s182] %v315
                %v317 = vld [vmem:[%s191 + $0x280] sm:%s182]
                %318 = vst [vmem:[%s192 + $0xf8] sm:%s182] %v317
                %v319 = vld [vmem:[%s191 + $0x284] sm:%s182]
                %320 = vst [vmem:[%s192 + $0xfc] sm:%s182] %v319
                %s321 = sadd.s32 1, %s190
                %p322 = scmp.ge.s32.totalorder %s321, %s183
                %s323 = scalar_select %p322, 0, %s321
                %s324 = smul.u32 %s323, 128
                %s325 = smul.u32 %s323, 128
                %s326 = scalar_lea.vmem %s173, %s324
                %s327 = scalar_lea.vmem %s165, %s325 [#allocation3]
              $region45: #{tpu_custom_call.1} parent=39 // loop_footer
                %s187 = sadd.s32 %s185, 1
              $region46: #{tpu_custom_call.1} parent=39 // loop_footer_branch
                %184 = sbr.rel target = $region42
              $region47: #{tpu_custom_call.1} parent=39 // loop_exit
                _
              %s328 = sshrl.u32 %s169, 5
              %s329 = sand.u32 %s169, 31
              %s330 = smul.u32 %s328, 32
              %s331 = smul.u32 4, %s330
              %s332 = scalar_lea.vmem %s173, %s331
              %s333 = smul.u32 4, %s330
              %s334 = scalar_lea.vmem %s165, %s333 [#allocation3]
              // While loop
              $region48: #{tpu_custom_call.1} parent=39 // loop_pre_header
                _
              $region49: #{tpu_custom_call.1} parent=39 // loop_header
                %s336 = sphi 0, %s338
                %p337 = scmp.ge.s32.totalorder %s336, %s329
                %s341 = sphi 0, %s350
                %s342 = sphi %s332, %s353
                %s343 = sphi %s334, %s354
              $region50: #{tpu_custom_call.1} parent=39 // loop_header_branch
                %340 = sbr.rel (%p337) target = $region54
              $region51: #{tpu_custom_call.1} parent=39 // loop_body
                %v344 = vld [vmem:[%s342] sm:%s182]
                %345 = vst [vmem:[%s343] sm:%s182] %v344
                %v346 = vld [vmem:[%s342 + $0x208] sm:%s182]
                %347 = vst [vmem:[%s343 + $0x80] sm:%s182] %v346
                %s348 = sadd.s32 1, %s341
                %p349 = scmp.ge.s32.totalorder %s348, %s329
                %s350 = scalar_select %p349, 0, %s348
                %s351 = smul.u32 %s350, 4
                %s352 = smul.u32 %s350, 4
                %s353 = scalar_lea.vmem %s332, %s351
                %s354 = scalar_lea.vmem %s334, %s352 [#allocation3]
              $region52: #{tpu_custom_call.1} parent=39 // loop_footer
                %s338 = sadd.s32 %s336, 1
              $region53: #{tpu_custom_call.1} parent=39 // loop_footer_branch
                %335 = sbr.rel target = $region49
              $region54: #{tpu_custom_call.1} parent=39 // loop_exit
                _
            $region40: #{tpu_custom_call.1} parent=31 // pred_fallthru
              _
          $region32: #{tpu_custom_call.1} parent=27 // pred_fallthru
            _
          %571 = vnop
        $region28: #{tpu_custom_call.1} parent=23 // pred_fallthru
          _
        // Predicated region
        $region87: #{tpu_custom_call.1} parent=23 // pred_check
          %p572 = pneg %p60
        $region88: #{tpu_custom_call.1} parent=23 // pred_check_branch
          %574 = sbr.rel (%p572) target = $region90
        $region89: #{tpu_custom_call.1} parent=23 // pred_region
          %s575 = sand.u32 %s50, 1
          %s576 = sand.u32 %s50, 1
          %s577 = smul.addr %s576, 16
          %s578 = scalar_lea.vmem [#allocation4], %s577
          %s579 = sadd.s32 %s10, 1
          %s580 = smul.u32 %s579, 16
          %s581 = smul.u32 2, %s580
          %s582 = smul.addr %s581, 4
          %s583 = scalar_lea.vmem %s1, %s582
          // Predicated region
          $region91: #{tpu_custom_call.1} parent=89 // pred_check
            _
          $region92: #{tpu_custom_call.1} parent=89 // pred_check_branch
            %585 = sbr.rel (0) target = $region94
          $region93: #{tpu_custom_call.1} parent=89 // pred_region
            // Predicated region
            $region95: #{tpu_custom_call.1} parent=93 // pred_check
              _
            $region96: #{tpu_custom_call.1} parent=93 // pred_check_branch
              %587 = sbr.rel target = $region98
            $region97: #{tpu_custom_call.1} parent=93 // pred_region
              // Predicated region
              $region110: #{tpu_custom_call.1} parent=97 // pred_check
                _
              $region111: #{tpu_custom_call.1} parent=97 // pred_check_branch
                %609 = sbr.rel (0) target = $region113
              $region112: #{tpu_custom_call.1} parent=97 // pred_region
                loop: start=0, step=1, limit=1
                $region114: #{tpu_custom_call.1} parent=112 // loop_pre_header
                  _
                $region115: #{tpu_custom_call.1} parent=112 // loop_header
                  %s611 = sphi 0, %s615
                  %p612 = scmp.ge.s32.totalorder %s611, 1
                  %s616 = sphi %s583, %s583
                  %s617 = sphi %s578, %s578
                $region116: #{tpu_custom_call.1} parent=112 // loop_header_branch
                  %614 = sbr.rel (%p612) target = $region120
                $region117: #{tpu_custom_call.1} parent=112 // loop_body
                  _
                $region118: #{tpu_custom_call.1} parent=112 // loop_footer
                  %s615 = sadd.s32 1, %s611
                $region119: #{tpu_custom_call.1} parent=112 // loop_footer_branch
                  %610 = sbr.rel target = $region115
                $region120: #{tpu_custom_call.1} parent=112 // loop_exit
                  _
                %s619 = ssub.s32 16, 1
                loop: start=0, step=1, limit=1
                $region121: #{tpu_custom_call.1} parent=112 // loop_pre_header
                  _
                $region122: #{tpu_custom_call.1} parent=112 // loop_header
                  %s621 = sphi 0, %s625
                  %p622 = scmp.ge.s32.totalorder %s621, 1
                  %s626 = sphi %s583, %s583
                  %s627 = sphi %s578, %s578
                $region123: #{tpu_custom_call.1} parent=112 // loop_header_branch
                  %624 = sbr.rel (%p622) target = $region127
                $region124: #{tpu_custom_call.1} parent=112 // loop_body
                  %v628 = vld [vmem:[%s626] sm:%s619]
                  %629 = vst [vmem:[%s627] sm:%s619] %v628
                  %v630 = vld [vmem:[%s626 + $0x4] sm:%s619]
                  %631 = vst [vmem:[%s627 + $0x4] sm:%s619] %v630
                  %v632 = vld [vmem:[%s626 + $0x208] sm:%s619]
                  %633 = vst [vmem:[%s627 + $0x8] sm:%s619] %v632
                  %v634 = vld [vmem:[%s626 + $0x20c] sm:%s619]
                  %635 = vst [vmem:[%s627 + $0xc] sm:%s619] %v634
                $region125: #{tpu_custom_call.1} parent=112 // loop_footer
                  %s625 = sadd.s32 1, %s621
                $region126: #{tpu_custom_call.1} parent=112 // loop_footer_branch
                  %620 = sbr.rel target = $region122
                $region127: #{tpu_custom_call.1} parent=112 // loop_exit
                  _
              $region113: #{tpu_custom_call.1} parent=97 // pred_fallthru
                _
            $region98: #{tpu_custom_call.1} parent=93 // pred_fallthru
              _
            // Predicated region
            $region99: #{tpu_custom_call.1} parent=93 // pred_check
              _
            $region100: #{tpu_custom_call.1} parent=93 // pred_check_branch
              %589 = sbr.rel (0) target = $region102
            $region101: #{tpu_custom_call.1} parent=93 // pred_region
              %s591 = ssub.s32 16, 1
              loop: start=0, step=1, limit=1
              $region103: #{tpu_custom_call.1} parent=101 // loop_pre_header
                _
              $region104: #{tpu_custom_call.1} parent=101 // loop_header
                %s593 = sphi 0, %s597
                %p594 = scmp.ge.s32.totalorder %s593, 1
                %s598 = sphi %s583, %s583
                %s599 = sphi %s578, %s578
              $region105: #{tpu_custom_call.1} parent=101 // loop_header_branch
                %596 = sbr.rel (%p594) target = $region109
              $region106: #{tpu_custom_call.1} parent=101 // loop_body
                %v600 = vld [vmem:[%s598] sm:%s591]
                %601 = vst [vmem:[%s599] sm:%s591] %v600
                %v602 = vld [vmem:[%s598 + $0x4] sm:%s591]
                %603 = vst [vmem:[%s599 + $0x4] sm:%s591] %v602
                %v604 = vld [vmem:[%s598 + $0x208] sm:%s591]
                %605 = vst [vmem:[%s599 + $0x8] sm:%s591] %v604
                %v606 = vld [vmem:[%s598 + $0x20c] sm:%s591]
                %607 = vst [vmem:[%s599 + $0xc] sm:%s591] %v606
              $region107: #{tpu_custom_call.1} parent=101 // loop_footer
                %s597 = sadd.s32 1, %s593
              $region108: #{tpu_custom_call.1} parent=101 // loop_footer_branch
                %592 = sbr.rel target = $region104
              $region109: #{tpu_custom_call.1} parent=101 // loop_exit
                _
            $region102: #{tpu_custom_call.1} parent=93 // pred_fallthru
              _
          $region94: #{tpu_custom_call.1} parent=89 // pred_fallthru
            _
          %636 = vnop
        $region90: #{tpu_custom_call.1} parent=23 // pred_fallthru
          _
      $region24: #{tpu_custom_call.1} parent=5 // pred_fallthru
        _
      %p637 = scmp.le.s32.totalorder 1, %s10
      %p638 = scmp.lt.s32.totalorder %s10, 5
      %p639 = pnand %p637, %p638
      %p640 = pneg %p639
      // Predicated region
      $region128: #{tpu_custom_call.1} parent=5 // pred_check
        _
      $region129: #{tpu_custom_call.1} parent=5 // pred_check_branch
        %642 = sbr.rel (%p639) target = $region131
      $region130: #{tpu_custom_call.1} parent=5 // pred_region
        %s643 = ssub.s32 %s10, 1
        %s644 = sand.u32 %s23, 1
        %s645 = sand.u32 %s23, 1
        %s646 = smul.addr %s645, 256
        %s647 = scalar_lea.vmem [#allocation3], %s646
        // Predicated region
        $region132: #{tpu_custom_call.1} parent=130 // pred_check
          %p648 = pneg %p36
        $region133: #{tpu_custom_call.1} parent=130 // pred_check_branch
          %650 = sbr.rel (%p648) target = $region135
        $region134: #{tpu_custom_call.1} parent=130 // pred_region
          _
        $region135: #{tpu_custom_call.1} parent=130 // pred_fallthru
          _
        %s651 = sand.u32 %s53, 1
        %s652 = sand.u32 %s53, 1
        %s653 = smul.addr %s652, 16
        %s654 = scalar_lea.vmem [#allocation4], %s653
        // Predicated region
        $region136: #{tpu_custom_call.1} parent=130 // pred_check
          %p655 = pneg %p66
        $region137: #{tpu_custom_call.1} parent=130 // pred_check_branch
          %657 = sbr.rel (%p655) target = $region139
        $region138: #{tpu_custom_call.1} parent=130 // pred_region
          _
        $region139: #{tpu_custom_call.1} parent=130 // pred_fallthru
          _
        %s658 = sand.u32 %s23, 1
        %s659 = sand.u32 %s23, 1
        %s660 = smul.addr %s659, 256
        %s661 = scalar_lea.vmem [#allocation3], %s660
        %p662 = pneg %p36
        %p663 = pneg %p33
        %s664 = sand.u32 %s53, 1
        %s665 = sand.u32 %s53, 1
        %s666 = smul.addr %s665, 16
        %s667 = scalar_lea.vmem [#allocation4], %s666
        %p668 = pneg %p66
        %p669 = pneg %p63
        %p670 = pneg %p87
        %p671 = pneg %p84
        %p672 = pneg %p108
        %p673 = pneg %p105
        %p674 = pneg %p134
        %p675 = pneg %p131
        %s676 = sand.u32 %s121, 1
        %s677 = sand.u32 %s121, 1
        %s678 = smul.addr %s677, 256
        %s679 = scalar_lea.vmem [#allocation5], %s678
        %s680 = smul.u32 32, %s15
        %s681 = ssub.s32 130, %s680
        %p682 = scmp.lt.s32.totalorder %s681, 32
        %s683 = scalar_select %p682, %s681, 32
        %s684 = smul.u32 128, %s683
        %s685 = sadd.s32 %s15, 1
        %s686 = smul.u32 %s685, 16
        %s687 = smul.u32 2, %s686
        %s688 = smul.u32 32, %s15
        %v690 = vld [vmem:[%s647] sm:$0xf]
        %v691 = vld [vmem:[%s647 + $0x4] sm:$0xf]
        %v692 = vld [vmem:[%s647 + $0x8] sm:$0xf]
        %v693 = vld [vmem:[%s647 + $0xc] sm:$0xf]
        %v694 = vld [vmem:[%s647 + $0x10] sm:$0xf]
        %v695 = vld [vmem:[%s647 + $0x14] sm:$0xf]
        %v696 = vld [vmem:[%s647 + $0x18] sm:$0xf]
        %v697 = vld [vmem:[%s647 + $0x1c] sm:$0xf]
        %v698 = vld [vmem:[%s647 + $0x80] sm:$0xf]
        %v699 = vld [vmem:[%s647 + $0x84] sm:$0xf]
        %v700 = vld [vmem:[%s647 + $0x88] sm:$0xf]
        %v701 = vld [vmem:[%s647 + $0x8c] sm:$0xf]
        %v702 = vld [vmem:[%s647 + $0x90] sm:$0xf]
        %v703 = vld [vmem:[%s647 + $0x94] sm:$0xf]
        %v704 = vld [vmem:[%s647 + $0x98] sm:$0xf]
        %v705 = vld [vmem:[%s647 + $0x9c] sm:$0xf]
        %v706 = vld [vmem:[%s2] sm:$0xf]
        %v707 = vld [vmem:[%s2 + $0x4] sm:$0xf]
        %v708 = vld [vmem:[%s3] sm:$0x1]
        %v710 = vlaneseq
        %v711 = vshrl.u32 %v710, 7
        %v712 = vsub.s32 0, %v711
        %v713 = vrot.slane %v708, %v712
        %v731 = vunpack.c.l.b16 %v690
        %v732 = vunpack.c.l.b16 %v691
        %v733 = vunpack.c.l.b16 %v692
        %v734 = vunpack.c.l.b16 %v693
        %v735 = vunpack.c.l.b16 %v694
        %v736 = vunpack.c.l.b16 %v695
        %v737 = vunpack.c.l.b16 %v696
        %v738 = vunpack.c.l.b16 %v697
        %v739 = vunpack.c.l.b16 %v698
        %v740 = vunpack.c.l.b16 %v699
        %v741 = vunpack.c.l.b16 %v700
        %v742 = vunpack.c.l.b16 %v701
        %v743 = vunpack.c.l.b16 %v702
        %v744 = vunpack.c.l.b16 %v703
        %v745 = vunpack.c.l.b16 %v704
        %v746 = vunpack.c.l.b16 %v705
        %v747 = vpack.c.b16 %v732, %v731
        %v748 = vpack.c.b16 %v734, %v733
        %v749 = vpack.c.b16 %v736, %v735
        %v750 = vpack.c.b16 %v738, %v737
        %v751 = vpack.c.b16 %v740, %v739
        %v752 = vpack.c.b16 %v742, %v741
        %v753 = vpack.c.b16 %v744, %v743
        %v754 = vpack.c.b16 %v746, %v745
        %v757 = vunpack.c.l.b16 %v706
        %v758 = vunpack.c.l.b16 %v707
        %v759 = vpack.c.b16 %v758, %v757
        %vm761 = vcmask 130048
        %v763 = vsel %vm761, %v747, 0
        %v766 = vsel %vm761, %v748, 0
        %v769 = vsel %vm761, %v749, 0
        %v772 = vsel %vm761, %v750, 0
        %v775 = vsel %vm761, %v751, 0
        %v778 = vsel %vm761, %v752, 0
        %v781 = vsel %vm761, %v753, 0
        %v784 = vsel %vm761, %v754, 0
        %786 = vmatprep.subr.bf16.mxu0 0
        %787 = vmatpush1.bf16.msra.mxu0 0
        %788 = vmatprep.subr.bf16.mxu0 0
        %789 = vmatpush1.bf16.msra.mxu0 0
        %790 = vmatprep.subr.bf16.mxu0 0
        %791 = vmatpush1.bf16.msra.mxu0 0
        %792 = vmatprep.subr.bf16.mxu0 0
        %793 = vmatpush1.bf16.msra.mxu0 0
        %794 = vmatprep.subr.bf16.mxu0 0
        %795 = vmatpush1.bf16.msra.mxu0 0
        %796 = vmatprep.subr.bf16.mxu0 0
        %797 = vmatpush1.bf16.msra.mxu0 0
        %798 = vmatprep.subr.bf16.mxu0 0
        %799 = vmatpush1.bf16.msra.mxu0 0
        %800 = vmatprep.subr.bf16.mxu0 0
        %801 = vmatpush1.bf16.msra.mxu0 %v759
        %802 = vmatprep.subr.bf16.mxu0 0
        %803 = vmatpush2.bf16.msra.mxu0 0
        %804 = vmatprep.subr.bf16.mxu0 0
        %805 = vmatpush2.bf16.msra.mxu0 0
        %806 = vmatprep.subr.bf16.mxu0 0
        %807 = vmatpush2.bf16.msra.mxu0 0
        %808 = vmatprep.subr.bf16.mxu0 0
        %809 = vmatpush2.bf16.msra.mxu0 0
        %810 = vmatprep.subr.bf16.mxu0 0
        %811 = vmatpush2.bf16.msra.mxu0 0
        %812 = vmatprep.subr.bf16.mxu0 0
        %813 = vmatpush2.bf16.msra.mxu0 0
        %814 = vmatprep.subr.bf16.mxu0 0
        %815 = vmatpush2.bf16.msra.mxu0 0
        %816 = vmatprep.subr.bf16.mxu0 0
        %817 = vmatpush2.bf16.msra.mxu0 0
        %818 = vmatprep.mubr.bf16.mxu0 0
        %819 = vmatmul.mubr.bf16.gmra.mxu0 %v763
        %v820 = vpop.f32.mrf.mxu0
        %v821 = vadd.f32 %v713, %v820
        %v822 = vpop.f32.mrf.mxu0
        %v823 = vpop.f32.mrf.mxu0
        %v824 = vadd.f32 %v713, %v823
        %v825 = vpop.f32.mrf.mxu0
        %826 = vmatprep.mubr.bf16.mxu0 0
        %827 = vmatmul.mubr.bf16.gmra.mxu0 %v766
        %v828 = vpop.f32.mrf.mxu0
        %v829 = vadd.f32 %v713, %v828
        %v830 = vpop.f32.mrf.mxu0
        %v831 = vpop.f32.mrf.mxu0
        %v832 = vadd.f32 %v713, %v831
        %v833 = vpop.f32.mrf.mxu0
        %834 = vmatprep.mubr.bf16.mxu0 0
        %835 = vmatmul.mubr.bf16.gmra.mxu0 %v769
        %v836 = vpop.f32.mrf.mxu0
        %v837 = vadd.f32 %v713, %v836
        %v838 = vpop.f32.mrf.mxu0
        %v839 = vpop.f32.mrf.mxu0
        %v840 = vadd.f32 %v713, %v839
        %v841 = vpop.f32.mrf.mxu0
        %842 = vmatprep.mubr.bf16.mxu0 0
        %843 = vmatmul.mubr.bf16.gmra.mxu0 %v772
        %v844 = vpop.f32.mrf.mxu0
        %v845 = vadd.f32 %v713, %v844
        %v846 = vpop.f32.mrf.mxu0
        %v847 = vpop.f32.mrf.mxu0
        %v848 = vadd.f32 %v713, %v847
        %v849 = vpop.f32.mrf.mxu0
        %850 = vmatprep.mubr.bf16.mxu0 0
        %851 = vmatmul.mubr.bf16.gmra.mxu0 %v775
        %v852 = vpop.f32.mrf.mxu0
        %v853 = vadd.f32 %v713, %v852
        %v854 = vpop.f32.mrf.mxu0
        %v855 = vpop.f32.mrf.mxu0
        %v856 = vadd.f32 %v713, %v855
        %v857 = vpop.f32.mrf.mxu0
        %858 = vmatprep.mubr.bf16.mxu0 0
        %859 = vmatmul.mubr.bf16.gmra.mxu0 %v778
        %v860 = vpop.f32.mrf.mxu0
        %v861 = vadd.f32 %v713, %v860
        %v862 = vpop.f32.mrf.mxu0
        %v863 = vpop.f32.mrf.mxu0
        %v864 = vadd.f32 %v713, %v863
        %v865 = vpop.f32.mrf.mxu0
        %866 = vmatprep.mubr.bf16.mxu0 0
        %867 = vmatmul.mubr.bf16.gmra.mxu0 %v781
        %v868 = vpop.f32.mrf.mxu0
        %v869 = vadd.f32 %v713, %v868
        %v870 = vpop.f32.mrf.mxu0
        %v871 = vpop.f32.mrf.mxu0
        %v872 = vadd.f32 %v713, %v871
        %v873 = vpop.f32.mrf.mxu0
        %874 = vmatprep.mubr.bf16.mxu0 0
        %875 = vmatmul.mubr.bf16.gmra.mxu0 %v784
        %v876 = vpop.f32.mrf.mxu0
        %v877 = vadd.f32 %v713, %v876
        %v878 = vpop.f32.mrf.mxu0
        %v879 = vpop.f32.mrf.mxu0
        %v880 = vadd.f32 %v713, %v879
        %v881 = vpop.f32.mrf.mxu0
        %882 = vdwg.mxu0
        %vm883 = vcmp.ge.f32.partialorder %v821, 0.0
        %vm884 = vcmp.ge.f32.partialorder %v824, 0.0
        %vm885 = vcmp.ge.f32.partialorder %v829, 0.0
        %vm886 = vcmp.ge.f32.partialorder %v832, 0.0
        %vm887 = vcmp.ge.f32.partialorder %v837, 0.0
        %vm888 = vcmp.ge.f32.partialorder %v840, 0.0
        %vm889 = vcmp.ge.f32.partialorder %v845, 0.0
        %vm890 = vcmp.ge.f32.partialorder %v848, 0.0
        %vm891 = vcmp.ge.f32.partialorder %v853, 0.0
        %vm892 = vcmp.ge.f32.partialorder %v856, 0.0
        %vm893 = vcmp.ge.f32.partialorder %v861, 0.0
        %vm894 = vcmp.ge.f32.partialorder %v864, 0.0
        %vm895 = vcmp.ge.f32.partialorder %v869, 0.0
        %vm896 = vcmp.ge.f32.partialorder %v872, 0.0
        %vm897 = vcmp.ge.f32.partialorder %v877, 0.0
        %vm898 = vcmp.ge.f32.partialorder %v880, 0.0
        %v899 = vmul.f32 %v821, 0.1
        %v900 = vmul.f32 %v824, 0.1
        %v901 = vmul.f32 %v829, 0.1
        %v902 = vmul.f32 %v832, 0.1
        %v903 = vmul.f32 %v837, 0.1
        %v904 = vmul.f32 %v840, 0.1
        %v905 = vmul.f32 %v845, 0.1
        %v906 = vmul.f32 %v848, 0.1
        %v907 = vmul.f32 %v853, 0.1
        %v908 = vmul.f32 %v856, 0.1
        %v909 = vmul.f32 %v861, 0.1
        %v910 = vmul.f32 %v864, 0.1
        %v911 = vmul.f32 %v869, 0.1
        %v912 = vmul.f32 %v872, 0.1
        %v913 = vmul.f32 %v877, 0.1
        %v914 = vmul.f32 %v880, 0.1
        %v915 = vsel %vm883, %v821, %v899
        %v916 = vsel %vm884, %v824, %v900
        %v917 = vsel %vm885, %v829, %v901
        %v918 = vsel %vm886, %v832, %v902
        %v919 = vsel %vm887, %v837, %v903
        %v920 = vsel %vm888, %v840, %v904
        %v921 = vsel %vm889, %v845, %v905
        %v922 = vsel %vm890, %v848, %v906
        %v923 = vsel %vm891, %v853, %v907
        %v924 = vsel %vm892, %v856, %v908
        %v925 = vsel %vm893, %v861, %v909
        %v926 = vsel %vm894, %v864, %v910
        %v927 = vsel %vm895, %v869, %v911
        %v928 = vsel %vm896, %v872, %v912
        %v929 = vsel %vm897, %v877, %v913
        %v930 = vsel %vm898, %v880, %v914
        %v931 = vpack.c.bf16 %v916, %v915
        %v932 = vpack.c.bf16 %v918, %v917
        %v933 = vpack.c.bf16 %v920, %v919
        %v934 = vpack.c.bf16 %v922, %v921
        %v935 = vpack.c.bf16 %v924, %v923
        %v936 = vpack.c.bf16 %v926, %v925
        %v937 = vpack.c.bf16 %v928, %v927
        %v938 = vpack.c.bf16 %v930, %v929
        %v947 = vunpack.c.l.b16 %v931
        %v948 = vunpack.c.h.b16 %v931
        %v949 = vunpack.c.l.b16 %v932
        %v950 = vunpack.c.h.b16 %v932
        %v951 = vunpack.c.l.b16 %v933
        %v952 = vunpack.c.h.b16 %v933
        %v953 = vunpack.c.l.b16 %v934
        %v954 = vunpack.c.h.b16 %v934
        %v955 = vunpack.c.l.b16 %v935
        %v956 = vunpack.c.h.b16 %v935
        %v957 = vunpack.c.l.b16 %v936
        %v958 = vunpack.c.h.b16 %v936
        %v959 = vunpack.c.l.b16 %v937
        %v960 = vunpack.c.h.b16 %v937
        %v961 = vunpack.c.l.b16 %v938
        %v962 = vunpack.c.h.b16 %v938
        %v963 = vpack.c.b16 %v947, %v947
        %v964 = vpack.c.b16 %v948, %v948
        %v965 = vpack.c.b16 %v949, %v949
        %v966 = vpack.c.b16 %v950, %v950
        %v967 = vpack.c.b16 %v951, %v951
        %v968 = vpack.c.b16 %v952, %v952
        %v969 = vpack.c.b16 %v953, %v953
        %v970 = vpack.c.b16 %v954, %v954
        %v971 = vpack.c.b16 %v955, %v955
        %v972 = vpack.c.b16 %v956, %v956
        %v973 = vpack.c.b16 %v957, %v957
        %v974 = vpack.c.b16 %v958, %v958
        %v975 = vpack.c.b16 %v959, %v959
        %v976 = vpack.c.b16 %v960, %v960
        %v977 = vpack.c.b16 %v961, %v961
        %v978 = vpack.c.b16 %v962, %v962
        %vm995 = vcmask 125952
        %996 = vst.msk [vmem:[%s679] sm:$0xf] %vm995, %v963
        %997 = vst.msk [vmem:[%s679 + $0x4] sm:$0xf] %vm995, %v964
        %998 = vst.msk [vmem:[%s679 + $0x8] sm:$0xf] %vm995, %v965
        %999 = vst.msk [vmem:[%s679 + $0xc] sm:$0xf] %vm995, %v966
        %1000 = vst.msk [vmem:[%s679 + $0x10] sm:$0xf] %vm995, %v967
        %1001 = vst.msk [vmem:[%s679 + $0x14] sm:$0xf] %vm995, %v968
        %1002 = vst.msk [vmem:[%s679 + $0x18] sm:$0xf] %vm995, %v969
        %1003 = vst.msk [vmem:[%s679 + $0x1c] sm:$0xf] %vm995, %v970
        %1004 = vst.msk [vmem:[%s679 + $0x80] sm:$0xf] %vm995, %v971
        %1005 = vst.msk [vmem:[%s679 + $0x84] sm:$0xf] %vm995, %v972
        %1006 = vst.msk [vmem:[%s679 + $0x88] sm:$0xf] %vm995, %v973
        %1007 = vst.msk [vmem:[%s679 + $0x8c] sm:$0xf] %vm995, %v974
        %1008 = vst.msk [vmem:[%s679 + $0x90] sm:$0xf] %vm995, %v975
        %1009 = vst.msk [vmem:[%s679 + $0x94] sm:$0xf] %vm995, %v976
        %1010 = vst.msk [vmem:[%s679 + $0x98] sm:$0xf] %vm995, %v977
        %1011 = vst.msk [vmem:[%s679 + $0x9c] sm:$0xf] %vm995, %v978
        %v1012 = vld [vmem:[%s647 + $0x20] sm:$0xf]
        %v1013 = vld [vmem:[%s647 + $0x24] sm:$0xf]
        %v1014 = vld [vmem:[%s647 + $0x28] sm:$0xf]
        %v1015 = vld [vmem:[%s647 + $0x2c] sm:$0xf]
        %v1016 = vld [vmem:[%s647 + $0x30] sm:$0xf]
        %v1017 = vld [vmem:[%s647 + $0x34] sm:$0xf]
        %v1018 = vld [vmem:[%s647 + $0x38] sm:$0xf]
        %v1019 = vld [vmem:[%s647 + $0x3c] sm:$0xf]
        %v1020 = vld [vmem:[%s647 + $0xa0] sm:$0xf]
        %v1021 = vld [vmem:[%s647 + $0xa4] sm:$0xf]
        %v1022 = vld [vmem:[%s647 + $0xa8] sm:$0xf]
        %v1023 = vld [vmem:[%s647 + $0xac] sm:$0xf]
        %v1024 = vld [vmem:[%s647 + $0xb0] sm:$0xf]
        %v1025 = vld [vmem:[%s647 + $0xb4] sm:$0xf]
        %v1026 = vld [vmem:[%s647 + $0xb8] sm:$0xf]
        %v1027 = vld [vmem:[%s647 + $0xbc] sm:$0xf]
        %v1028 = vld [vmem:[%s2] sm:$0xf]
        %v1029 = vld [vmem:[%s2 + $0x4] sm:$0xf]
        %v1030 = vld [vmem:[%s3] sm:$0x1]
        %v1032 = vlaneseq
        %v1033 = vshrl.u32 %v1032, 7
        %v1034 = vsub.s32 0, %v1033
        %v1035 = vrot.slane %v1030, %v1034
        %v1053 = vunpack.c.l.b16 %v1012
        %v1054 = vunpack.c.l.b16 %v1013
        %v1055 = vunpack.c.l.b16 %v1014
        %v1056 = vunpack.c.l.b16 %v1015
        %v1057 = vunpack.c.l.b16 %v1016
        %v1058 = vunpack.c.l.b16 %v1017
        %v1059 = vunpack.c.l.b16 %v1018
        %v1060 = vunpack.c.l.b16 %v1019
        %v1061 = vunpack.c.l.b16 %v1020
        %v1062 = vunpack.c.l.b16 %v1021
        %v1063 = vunpack.c.l.b16 %v1022
        %v1064 = vunpack.c.l.b16 %v1023
        %v1065 = vunpack.c.l.b16 %v1024
        %v1066 = vunpack.c.l.b16 %v1025
        %v1067 = vunpack.c.l.b16 %v1026
        %v1068 = vunpack.c.l.b16 %v1027
        %v1069 = vpack.c.b16 %v1054, %v1053
        %v1070 = vpack.c.b16 %v1056, %v1055
        %v1071 = vpack.c.b16 %v1058, %v1057
        %v1072 = vpack.c.b16 %v1060, %v1059
        %v1073 = vpack.c.b16 %v1062, %v1061
        %v1074 = vpack.c.b16 %v1064, %v1063
        %v1075 = vpack.c.b16 %v1066, %v1065
        %v1076 = vpack.c.b16 %v1068, %v1067
        %v1079 = vunpack.c.l.b16 %v1028
        %v1080 = vunpack.c.l.b16 %v1029
        %v1081 = vpack.c.b16 %v1080, %v1079
        %v1084 = vsel %vm761, %v1069, 0
        %v1087 = vsel %vm761, %v1070, 0
        %v1090 = vsel %vm761, %v1071, 0
        %v1093 = vsel %vm761, %v1072, 0
        %v1096 = vsel %vm761, %v1073, 0
        %v1099 = vsel %vm761, %v1074, 0
        %v1102 = vsel %vm761, %v1075, 0
        %v1105 = vsel %vm761, %v1076, 0
        %1107 = vmatprep.subr.bf16.mxu0 0
        %1108 = vmatpush1.bf16.msra.mxu0 0
        %1109 = vmatprep.subr.bf16.mxu0 0
        %1110 = vmatpush1.bf16.msra.mxu0 0
        %1111 = vmatprep.subr.bf16.mxu0 0
        %1112 = vmatpush1.bf16.msra.mxu0 0
        %1113 = vmatprep.subr.bf16.mxu0 0
        %1114 = vmatpush1.bf16.msra.mxu0 0
        %1115 = vmatprep.subr.bf16.mxu0 0
        %1116 = vmatpush1.bf16.msra.mxu0 0
        %1117 = vmatprep.subr.bf16.mxu0 0
        %1118 = vmatpush1.bf16.msra.mxu0 0
        %1119 = vmatprep.subr.bf16.mxu0 0
        %1120 = vmatpush1.bf16.msra.mxu0 0
        %1121 = vmatprep.subr.bf16.mxu0 0
        %1122 = vmatpush1.bf16.msra.mxu0 %v1081
        %1123 = vmatprep.subr.bf16.mxu0 0
        %1124 = vmatpush2.bf16.msra.mxu0 0
        %1125 = vmatprep.subr.bf16.mxu0 0
        %1126 = vmatpush2.bf16.msra.mxu0 0
        %1127 = vmatprep.subr.bf16.mxu0 0
        %1128 = vmatpush2.bf16.msra.mxu0 0
        %1129 = vmatprep.subr.bf16.mxu0 0
        %1130 = vmatpush2.bf16.msra.mxu0 0
        %1131 = vmatprep.subr.bf16.mxu0 0
        %1132 = vmatpush2.bf16.msra.mxu0 0
        %1133 = vmatprep.subr.bf16.mxu0 0
        %1134 = vmatpush2.bf16.msra.mxu0 0
        %1135 = vmatprep.subr.bf16.mxu0 0
        %1136 = vmatpush2.bf16.msra.mxu0 0
        %1137 = vmatprep.subr.bf16.mxu0 0
        %1138 = vmatpush2.bf16.msra.mxu0 0
        %1139 = vmatprep.mubr.bf16.mxu0 0
        %1140 = vmatmul.mubr.bf16.gmra.mxu0 %v1084
        %v1141 = vpop.f32.mrf.mxu0
        %v1142 = vadd.f32 %v1035, %v1141
        %v1143 = vpop.f32.mrf.mxu0
        %v1144 = vpop.f32.mrf.mxu0
        %v1145 = vadd.f32 %v1035, %v1144
        %v1146 = vpop.f32.mrf.mxu0
        %1147 = vmatprep.mubr.bf16.mxu0 0
        %1148 = vmatmul.mubr.bf16.gmra.mxu0 %v1087
        %v1149 = vpop.f32.mrf.mxu0
        %v1150 = vadd.f32 %v1035, %v1149
        %v1151 = vpop.f32.mrf.mxu0
        %v1152 = vpop.f32.mrf.mxu0
        %v1153 = vadd.f32 %v1035, %v1152
        %v1154 = vpop.f32.mrf.mxu0
        %1155 = vmatprep.mubr.bf16.mxu0 0
        %1156 = vmatmul.mubr.bf16.gmra.mxu0 %v1090
        %v1157 = vpop.f32.mrf.mxu0
        %v1158 = vadd.f32 %v1035, %v1157
        %v1159 = vpop.f32.mrf.mxu0
        %v1160 = vpop.f32.mrf.mxu0
        %v1161 = vadd.f32 %v1035, %v1160
        %v1162 = vpop.f32.mrf.mxu0
        %1163 = vmatprep.mubr.bf16.mxu0 0
        %1164 = vmatmul.mubr.bf16.gmra.mxu0 %v1093
        %v1165 = vpop.f32.mrf.mxu0
        %v1166 = vadd.f32 %v1035, %v1165
        %v1167 = vpop.f32.mrf.mxu0
        %v1168 = vpop.f32.mrf.mxu0
        %v1169 = vadd.f32 %v1035, %v1168
        %v1170 = vpop.f32.mrf.mxu0
        %1171 = vmatprep.mubr.bf16.mxu0 0
        %1172 = vmatmul.mubr.bf16.gmra.mxu0 %v1096
        %v1173 = vpop.f32.mrf.mxu0
        %v1174 = vadd.f32 %v1035, %v1173
        %v1175 = vpop.f32.mrf.mxu0
        %v1176 = vpop.f32.mrf.mxu0
        %v1177 = vadd.f32 %v1035, %v1176
        %v1178 = vpop.f32.mrf.mxu0
        %1179 = vmatprep.mubr.bf16.mxu0 0
        %1180 = vmatmul.mubr.bf16.gmra.mxu0 %v1099
        %v1181 = vpop.f32.mrf.mxu0
        %v1182 = vadd.f32 %v1035, %v1181
        %v1183 = vpop.f32.mrf.mxu0
        %v1184 = vpop.f32.mrf.mxu0
        %v1185 = vadd.f32 %v1035, %v1184
        %v1186 = vpop.f32.mrf.mxu0
        %1187 = vmatprep.mubr.bf16.mxu0 0
        %1188 = vmatmul.mubr.bf16.gmra.mxu0 %v1102
        %v1189 = vpop.f32.mrf.mxu0
        %v1190 = vadd.f32 %v1035, %v1189
        %v1191 = vpop.f32.mrf.mxu0
        %v1192 = vpop.f32.mrf.mxu0
        %v1193 = vadd.f32 %v1035, %v1192
        %v1194 = vpop.f32.mrf.mxu0
        %1195 = vmatprep.mubr.bf16.mxu0 0
        %1196 = vmatmul.mubr.bf16.gmra.mxu0 %v1105
        %v1197 = vpop.f32.mrf.mxu0
        %v1198 = vadd.f32 %v1035, %v1197
        %v1199 = vpop.f32.mrf.mxu0
        %v1200 = vpop.f32.mrf.mxu0
        %v1201 = vadd.f32 %v1035, %v1200
        %v1202 = vpop.f32.mrf.mxu0
        %1203 = vdwg.mxu0
        %vm1204 = vcmp.ge.f32.partialorder %v1142, 0.0
        %vm1205 = vcmp.ge.f32.partialorder %v1145, 0.0
        %vm1206 = vcmp.ge.f32.partialorder %v1150, 0.0
        %vm1207 = vcmp.ge.f32.partialorder %v1153, 0.0
        %vm1208 = vcmp.ge.f32.partialorder %v1158, 0.0
        %vm1209 = vcmp.ge.f32.partialorder %v1161, 0.0
        %vm1210 = vcmp.ge.f32.partialorder %v1166, 0.0
        %vm1211 = vcmp.ge.f32.partialorder %v1169, 0.0
        %vm1212 = vcmp.ge.f32.partialorder %v1174, 0.0
        %vm1213 = vcmp.ge.f32.partialorder %v1177, 0.0
        %vm1214 = vcmp.ge.f32.partialorder %v1182, 0.0
        %vm1215 = vcmp.ge.f32.partialorder %v1185, 0.0
        %vm1216 = vcmp.ge.f32.partialorder %v1190, 0.0
        %vm1217 = vcmp.ge.f32.partialorder %v1193, 0.0
        %vm1218 = vcmp.ge.f32.partialorder %v1198, 0.0
        %vm1219 = vcmp.ge.f32.partialorder %v1201, 0.0
        %v1220 = vmul.f32 %v1142, 0.1
        %v1221 = vmul.f32 %v1145, 0.1
        %v1222 = vmul.f32 %v1150, 0.1
        %v1223 = vmul.f32 %v1153, 0.1
        %v1224 = vmul.f32 %v1158, 0.1
        %v1225 = vmul.f32 %v1161, 0.1
        %v1226 = vmul.f32 %v1166, 0.1
        %v1227 = vmul.f32 %v1169, 0.1
        %v1228 = vmul.f32 %v1174, 0.1
        %v1229 = vmul.f32 %v1177, 0.1
        %v1230 = vmul.f32 %v1182, 0.1
        %v1231 = vmul.f32 %v1185, 0.1
        %v1232 = vmul.f32 %v1190, 0.1
        %v1233 = vmul.f32 %v1193, 0.1
        %v1234 = vmul.f32 %v1198, 0.1
        %v1235 = vmul.f32 %v1201, 0.1
        %v1236 = vsel %vm1204, %v1142, %v1220
        %v1237 = vsel %vm1205, %v1145, %v1221
        %v1238 = vsel %vm1206, %v1150, %v1222
        %v1239 = vsel %vm1207, %v1153, %v1223
        %v1240 = vsel %vm1208, %v1158, %v1224
        %v1241 = vsel %vm1209, %v1161, %v1225
        %v1242 = vsel %vm1210, %v1166, %v1226
        %v1243 = vsel %vm1211, %v1169, %v1227
        %v1244 = vsel %vm1212, %v1174, %v1228
        %v1245 = vsel %vm1213, %v1177, %v1229
        %v1246 = vsel %vm1214, %v1182, %v1230
        %v1247 = vsel %vm1215, %v1185, %v1231
        %v1248 = vsel %vm1216, %v1190, %v1232
        %v1249 = vsel %vm1217, %v1193, %v1233
        %v1250 = vsel %vm1218, %v1198, %v1234
        %v1251 = vsel %vm1219, %v1201, %v1235
        %v1252 = vpack.c.bf16 %v1237, %v1236
        %v1253 = vpack.c.bf16 %v1239, %v1238
        %v1254 = vpack.c.bf16 %v1241, %v1240
        %v1255 = vpack.c.bf16 %v1243, %v1242
        %v1256 = vpack.c.bf16 %v1245, %v1244
        %v1257 = vpack.c.bf16 %v1247, %v1246
        %v1258 = vpack.c.bf16 %v1249, %v1248
        %v1259 = vpack.c.bf16 %v1251, %v1250
        %v1268 = vunpack.c.l.b16 %v1252
        %v1269 = vunpack.c.h.b16 %v1252
        %v1270 = vunpack.c.l.b16 %v1253
        %v1271 = vunpack.c.h.b16 %v1253
        %v1272 = vunpack.c.l.b16 %v1254
        %v1273 = vunpack.c.h.b16 %v1254
        %v1274 = vunpack.c.l.b16 %v1255
        %v1275 = vunpack.c.h.b16 %v1255
        %v1276 = vunpack.c.l.b16 %v1256
        %v1277 = vunpack.c.h.b16 %v1256
        %v1278 = vunpack.c.l.b16 %v1257
        %v1279 = vunpack.c.h.b16 %v1257
        %v1280 = vunpack.c.l.b16 %v1258
        %v1281 = vunpack.c.h.b16 %v1258
        %v1282 = vunpack.c.l.b16 %v1259
        %v1283 = vunpack.c.h.b16 %v1259
        %v1284 = vpack.c.b16 %v1268, %v1268
        %v1285 = vpack.c.b16 %v1269, %v1269
        %v1286 = vpack.c.b16 %v1270, %v1270
        %v1287 = vpack.c.b16 %v1271, %v1271
        %v1288 = vpack.c.b16 %v1272, %v1272
        %v1289 = vpack.c.b16 %v1273, %v1273
        %v1290 = vpack.c.b16 %v1274, %v1274
        %v1291 = vpack.c.b16 %v1275, %v1275
        %v1292 = vpack.c.b16 %v1276, %v1276
        %v1293 = vpack.c.b16 %v1277, %v1277
        %v1294 = vpack.c.b16 %v1278, %v1278
        %v1295 = vpack.c.b16 %v1279, %v1279
        %v1296 = vpack.c.b16 %v1280, %v1280
        %v1297 = vpack.c.b16 %v1281, %v1281
        %v1298 = vpack.c.b16 %v1282, %v1282
        %v1299 = vpack.c.b16 %v1283, %v1283
        %1316 = vst.msk [vmem:[%s679 + $0x20] sm:$0xf] %vm995, %v1284
        %1317 = vst.msk [vmem:[%s679 + $0x24] sm:$0xf] %vm995, %v1285
        %1318 = vst.msk [vmem:[%s679 + $0x28] sm:$0xf] %vm995, %v1286
        %1319 = vst.msk [vmem:[%s679 + $0x2c] sm:$0xf] %vm995, %v1287
        %1320 = vst.msk [vmem:[%s679 + $0x30] sm:$0xf] %vm995, %v1288
        %1321 = vst.msk [vmem:[%s679 + $0x34] sm:$0xf] %vm995, %v1289
        %1322 = vst.msk [vmem:[%s679 + $0x38] sm:$0xf] %vm995, %v1290
        %1323 = vst.msk [vmem:[%s679 + $0x3c] sm:$0xf] %vm995, %v1291
        %1324 = vst.msk [vmem:[%s679 + $0xa0] sm:$0xf] %vm995, %v1292
        %1325 = vst.msk [vmem:[%s679 + $0xa4] sm:$0xf] %vm995, %v1293
        %1326 = vst.msk [vmem:[%s679 + $0xa8] sm:$0xf] %vm995, %v1294
        %1327 = vst.msk [vmem:[%s679 + $0xac] sm:$0xf] %vm995, %v1295
        %1328 = vst.msk [vmem:[%s679 + $0xb0] sm:$0xf] %vm995, %v1296
        %1329 = vst.msk [vmem:[%s679 + $0xb4] sm:$0xf] %vm995, %v1297
        %1330 = vst.msk [vmem:[%s679 + $0xb8] sm:$0xf] %vm995, %v1298
        %1331 = vst.msk [vmem:[%s679 + $0xbc] sm:$0xf] %vm995, %v1299
        %v1332 = vld [vmem:[%s647 + $0x40] sm:$0xf]
        %v1333 = vld [vmem:[%s647 + $0x44] sm:$0xf]
        %v1334 = vld [vmem:[%s647 + $0x48] sm:$0xf]
        %v1335 = vld [vmem:[%s647 + $0x4c] sm:$0xf]
        %v1336 = vld [vmem:[%s647 + $0x50] sm:$0xf]
        %v1337 = vld [vmem:[%s647 + $0x54] sm:$0xf]
        %v1338 = vld [vmem:[%s647 + $0x58] sm:$0xf]
        %v1339 = vld [vmem:[%s647 + $0x5c] sm:$0xf]
        %v1340 = vld [vmem:[%s647 + $0xc0] sm:$0xf]
        %v1341 = vld [vmem:[%s647 + $0xc4] sm:$0xf]
        %v1342 = vld [vmem:[%s647 + $0xc8] sm:$0xf]
        %v1343 = vld [vmem:[%s647 + $0xcc] sm:$0xf]
        %v1344 = vld [vmem:[%s647 + $0xd0] sm:$0xf]
        %v1345 = vld [vmem:[%s647 + $0xd4] sm:$0xf]
        %v1346 = vld [vmem:[%s647 + $0xd8] sm:$0xf]
        %v1347 = vld [vmem:[%s647 + $0xdc] sm:$0xf]
        %v1348 = vld [vmem:[%s2] sm:$0xf]
        %v1349 = vld [vmem:[%s2 + $0x4] sm:$0xf]
        %v1350 = vld [vmem:[%s3] sm:$0x1]
        %v1352 = vlaneseq
        %v1353 = vshrl.u32 %v1352, 7
        %v1354 = vsub.s32 0, %v1353
        %v1355 = vrot.slane %v1350, %v1354
        %v1373 = vunpack.c.l.b16 %v1332
        %v1374 = vunpack.c.l.b16 %v1333
        %v1375 = vunpack.c.l.b16 %v1334
        %v1376 = vunpack.c.l.b16 %v1335
        %v1377 = vunpack.c.l.b16 %v1336
        %v1378 = vunpack.c.l.b16 %v1337
        %v1379 = vunpack.c.l.b16 %v1338
        %v1380 = vunpack.c.l.b16 %v1339
        %v1381 = vunpack.c.l.b16 %v1340
        %v1382 = vunpack.c.l.b16 %v1341
        %v1383 = vunpack.c.l.b16 %v1342
        %v1384 = vunpack.c.l.b16 %v1343
        %v1385 = vunpack.c.l.b16 %v1344
        %v1386 = vunpack.c.l.b16 %v1345
        %v1387 = vunpack.c.l.b16 %v1346
        %v1388 = vunpack.c.l.b16 %v1347
        %v1389 = vpack.c.b16 %v1374, %v1373
        %v1390 = vpack.c.b16 %v1376, %v1375
        %v1391 = vpack.c.b16 %v1378, %v1377
        %v1392 = vpack.c.b16 %v1380, %v1379
        %v1393 = vpack.c.b16 %v1382, %v1381
        %v1394 = vpack.c.b16 %v1384, %v1383
        %v1395 = vpack.c.b16 %v1386, %v1385
        %v1396 = vpack.c.b16 %v1388, %v1387
        %v1399 = vunpack.c.l.b16 %v1348
        %v1400 = vunpack.c.l.b16 %v1349
        %v1401 = vpack.c.b16 %v1400, %v1399
        %v1404 = vsel %vm761, %v1389, 0
        %v1407 = vsel %vm761, %v1390, 0
        %v1410 = vsel %vm761, %v1391, 0
        %v1413 = vsel %vm761, %v1392, 0
        %v1416 = vsel %vm761, %v1393, 0
        %v1419 = vsel %vm761, %v1394, 0
        %v1422 = vsel %vm761, %v1395, 0
        %v1425 = vsel %vm761, %v1396, 0
        %1427 = vmatprep.subr.bf16.mxu0 0
        %1428 = vmatpush1.bf16.msra.mxu0 0
        %1429 = vmatprep.subr.bf16.mxu0 0
        %1430 = vmatpush1.bf16.msra.mxu0 0
        %1431 = vmatprep.subr.bf16.mxu0 0
        %1432 = vmatpush1.bf16.msra.mxu0 0
        %1433 = vmatprep.subr.bf16.mxu0 0
        %1434 = vmatpush1.bf16.msra.mxu0 0
        %1435 = vmatprep.subr.bf16.mxu0 0
        %1436 = vmatpush1.bf16.msra.mxu0 0
        %1437 = vmatprep.subr.bf16.mxu0 0
        %1438 = vmatpush1.bf16.msra.mxu0 0
        %1439 = vmatprep.subr.bf16.mxu0 0
        %1440 = vmatpush1.bf16.msra.mxu0 0
        %1441 = vmatprep.subr.bf16.mxu0 0
        %1442 = vmatpush1.bf16.msra.mxu0 %v1401
        %1443 = vmatprep.subr.bf16.mxu0 0
        %1444 = vmatpush2.bf16.msra.mxu0 0
        %1445 = vmatprep.subr.bf16.mxu0 0
        %1446 = vmatpush2.bf16.msra.mxu0 0
        %1447 = vmatprep.subr.bf16.mxu0 0
        %1448 = vmatpush2.bf16.msra.mxu0 0
        %1449 = vmatprep.subr.bf16.mxu0 0
        %1450 = vmatpush2.bf16.msra.mxu0 0
        %1451 = vmatprep.subr.bf16.mxu0 0
        %1452 = vmatpush2.bf16.msra.mxu0 0
        %1453 = vmatprep.subr.bf16.mxu0 0
        %1454 = vmatpush2.bf16.msra.mxu0 0
        %1455 = vmatprep.subr.bf16.mxu0 0
        %1456 = vmatpush2.bf16.msra.mxu0 0
        %1457 = vmatprep.subr.bf16.mxu0 0
        %1458 = vmatpush2.bf16.msra.mxu0 0
        %1459 = vmatprep.mubr.bf16.mxu0 0
        %1460 = vmatmul.mubr.bf16.gmra.mxu0 %v1404
        %v1461 = vpop.f32.mrf.mxu0
        %v1462 = vadd.f32 %v1355, %v1461
        %v1463 = vpop.f32.mrf.mxu0
        %v1464 = vpop.f32.mrf.mxu0
        %v1465 = vadd.f32 %v1355, %v1464
        %v1466 = vpop.f32.mrf.mxu0
        %1467 = vmatprep.mubr.bf16.mxu0 0
        %1468 = vmatmul.mubr.bf16.gmra.mxu0 %v1407
        %v1469 = vpop.f32.mrf.mxu0
        %v1470 = vadd.f32 %v1355, %v1469
        %v1471 = vpop.f32.mrf.mxu0
        %v1472 = vpop.f32.mrf.mxu0
        %v1473 = vadd.f32 %v1355, %v1472
        %v1474 = vpop.f32.mrf.mxu0
        %1475 = vmatprep.mubr.bf16.mxu0 0
        %1476 = vmatmul.mubr.bf16.gmra.mxu0 %v1410
        %v1477 = vpop.f32.mrf.mxu0
        %v1478 = vadd.f32 %v1355, %v1477
        %v1479 = vpop.f32.mrf.mxu0
        %v1480 = vpop.f32.mrf.mxu0
        %v1481 = vadd.f32 %v1355, %v1480
        %v1482 = vpop.f32.mrf.mxu0
        %1483 = vmatprep.mubr.bf16.mxu0 0
        %1484 = vmatmul.mubr.bf16.gmra.mxu0 %v1413
        %v1485 = vpop.f32.mrf.mxu0
        %v1486 = vadd.f32 %v1355, %v1485
        %v1487 = vpop.f32.mrf.mxu0
        %v1488 = vpop.f32.mrf.mxu0
        %v1489 = vadd.f32 %v1355, %v1488
        %v1490 = vpop.f32.mrf.mxu0
        %1491 = vmatprep.mubr.bf16.mxu0 0
        %1492 = vmatmul.mubr.bf16.gmra.mxu0 %v1416
        %v1493 = vpop.f32.mrf.mxu0
        %v1494 = vadd.f32 %v1355, %v1493
        %v1495 = vpop.f32.mrf.mxu0
        %v1496 = vpop.f32.mrf.mxu0
        %v1497 = vadd.f32 %v1355, %v1496
        %v1498 = vpop.f32.mrf.mxu0
        %1499 = vmatprep.mubr.bf16.mxu0 0
        %1500 = vmatmul.mubr.bf16.gmra.mxu0 %v1419
        %v1501 = vpop.f32.mrf.mxu0
        %v1502 = vadd.f32 %v1355, %v1501
        %v1503 = vpop.f32.mrf.mxu0
        %v1504 = vpop.f32.mrf.mxu0
        %v1505 = vadd.f32 %v1355, %v1504
        %v1506 = vpop.f32.mrf.mxu0
        %1507 = vmatprep.mubr.bf16.mxu0 0
        %1508 = vmatmul.mubr.bf16.gmra.mxu0 %v1422
        %v1509 = vpop.f32.mrf.mxu0
        %v1510 = vadd.f32 %v1355, %v1509
        %v1511 = vpop.f32.mrf.mxu0
        %v1512 = vpop.f32.mrf.mxu0
        %v1513 = vadd.f32 %v1355, %v1512
        %v1514 = vpop.f32.mrf.mxu0
        %1515 = vmatprep.mubr.bf16.mxu0 0
        %1516 = vmatmul.mubr.bf16.gmra.mxu0 %v1425
        %v1517 = vpop.f32.mrf.mxu0
        %v1518 = vadd.f32 %v1355, %v1517
        %v1519 = vpop.f32.mrf.mxu0
        %v1520 = vpop.f32.mrf.mxu0
        %v1521 = vadd.f32 %v1355, %v1520
        %v1522 = vpop.f32.mrf.mxu0
        %1523 = vdwg.mxu0
        %vm1524 = vcmp.ge.f32.partialorder %v1462, 0.0
        %vm1525 = vcmp.ge.f32.partialorder %v1465, 0.0
        %vm1526 = vcmp.ge.f32.partialorder %v1470, 0.0
        %vm1527 = vcmp.ge.f32.partialorder %v1473, 0.0
        %vm1528 = vcmp.ge.f32.partialorder %v1478, 0.0
        %vm1529 = vcmp.ge.f32.partialorder %v1481, 0.0
        %vm1530 = vcmp.ge.f32.partialorder %v1486, 0.0
        %vm1531 = vcmp.ge.f32.partialorder %v1489, 0.0
        %vm1532 = vcmp.ge.f32.partialorder %v1494, 0.0
        %vm1533 = vcmp.ge.f32.partialorder %v1497, 0.0
        %vm1534 = vcmp.ge.f32.partialorder %v1502, 0.0
        %vm1535 = vcmp.ge.f32.partialorder %v1505, 0.0
        %vm1536 = vcmp.ge.f32.partialorder %v1510, 0.0
        %vm1537 = vcmp.ge.f32.partialorder %v1513, 0.0
        %vm1538 = vcmp.ge.f32.partialorder %v1518, 0.0
        %vm1539 = vcmp.ge.f32.partialorder %v1521, 0.0
        %v1540 = vmul.f32 %v1462, 0.1
        %v1541 = vmul.f32 %v1465, 0.1
        %v1542 = vmul.f32 %v1470, 0.1
        %v1543 = vmul.f32 %v1473, 0.1
        %v1544 = vmul.f32 %v1478, 0.1
        %v1545 = vmul.f32 %v1481, 0.1
        %v1546 = vmul.f32 %v1486, 0.1
        %v1547 = vmul.f32 %v1489, 0.1
        %v1548 = vmul.f32 %v1494, 0.1
        %v1549 = vmul.f32 %v1497, 0.1
        %v1550 = vmul.f32 %v1502, 0.1
        %v1551 = vmul.f32 %v1505, 0.1
        %v1552 = vmul.f32 %v1510, 0.1
        %v1553 = vmul.f32 %v1513, 0.1
        %v1554 = vmul.f32 %v1518, 0.1
        %v1555 = vmul.f32 %v1521, 0.1
        %v1556 = vsel %vm1524, %v1462, %v1540
        %v1557 = vsel %vm1525, %v1465, %v1541
        %v1558 = vsel %vm1526, %v1470, %v1542
        %v1559 = vsel %vm1527, %v1473, %v1543
        %v1560 = vsel %vm1528, %v1478, %v1544
        %v1561 = vsel %vm1529, %v1481, %v1545
        %v1562 = vsel %vm1530, %v1486, %v1546
        %v1563 = vsel %vm1531, %v1489, %v1547
        %v1564 = vsel %vm1532, %v1494, %v1548
        %v1565 = vsel %vm1533, %v1497, %v1549
        %v1566 = vsel %vm1534, %v1502, %v1550
        %v1567 = vsel %vm1535, %v1505, %v1551
        %v1568 = vsel %vm1536, %v1510, %v1552
        %v1569 = vsel %vm1537, %v1513, %v1553
        %v1570 = vsel %vm1538, %v1518, %v1554
        %v1571 = vsel %vm1539, %v1521, %v1555
        %v1572 = vpack.c.bf16 %v1557, %v1556
        %v1573 = vpack.c.bf16 %v1559, %v1558
        %v1574 = vpack.c.bf16 %v1561, %v1560
        %v1575 = vpack.c.bf16 %v1563, %v1562
        %v1576 = vpack.c.bf16 %v1565, %v1564
        %v1577 = vpack.c.bf16 %v1567, %v1566
        %v1578 = vpack.c.bf16 %v1569, %v1568
        %v1579 = vpack.c.bf16 %v1571, %v1570
        %v1588 = vunpack.c.l.b16 %v1572
        %v1589 = vunpack.c.h.b16 %v1572
        %v1590 = vunpack.c.l.b16 %v1573
        %v1591 = vunpack.c.h.b16 %v1573
        %v1592 = vunpack.c.l.b16 %v1574
        %v1593 = vunpack.c.h.b16 %v1574
        %v1594 = vunpack.c.l.b16 %v1575
        %v1595 = vunpack.c.h.b16 %v1575
        %v1596 = vunpack.c.l.b16 %v1576
        %v1597 = vunpack.c.h.b16 %v1576
        %v1598 = vunpack.c.l.b16 %v1577
        %v1599 = vunpack.c.h.b16 %v1577
        %v1600 = vunpack.c.l.b16 %v1578
        %v1601 = vunpack.c.h.b16 %v1578
        %v1602 = vunpack.c.l.b16 %v1579
        %v1603 = vunpack.c.h.b16 %v1579
        %v1604 = vpack.c.b16 %v1588, %v1588
        %v1605 = vpack.c.b16 %v1589, %v1589
        %v1606 = vpack.c.b16 %v1590, %v1590
        %v1607 = vpack.c.b16 %v1591, %v1591
        %v1608 = vpack.c.b16 %v1592, %v1592
        %v1609 = vpack.c.b16 %v1593, %v1593
        %v1610 = vpack.c.b16 %v1594, %v1594
        %v1611 = vpack.c.b16 %v1595, %v1595
        %v1612 = vpack.c.b16 %v1596, %v1596
        %v1613 = vpack.c.b16 %v1597, %v1597
        %v1614 = vpack.c.b16 %v1598, %v1598
        %v1615 = vpack.c.b16 %v1599, %v1599
        %v1616 = vpack.c.b16 %v1600, %v1600
        %v1617 = vpack.c.b16 %v1601, %v1601
        %v1618 = vpack.c.b16 %v1602, %v1602
        %v1619 = vpack.c.b16 %v1603, %v1603
        %1636 = vst.msk [vmem:[%s679 + $0x40] sm:$0xf] %vm995, %v1604
        %1637 = vst.msk [vmem:[%s679 + $0x44] sm:$0xf] %vm995, %v1605
        %1638 = vst.msk [vmem:[%s679 + $0x48] sm:$0xf] %vm995, %v1606
        %1639 = vst.msk [vmem:[%s679 + $0x4c] sm:$0xf] %vm995, %v1607
        %1640 = vst.msk [vmem:[%s679 + $0x50] sm:$0xf] %vm995, %v1608
        %1641 = vst.msk [vmem:[%s679 + $0x54] sm:$0xf] %vm995, %v1609
        %1642 = vst.msk [vmem:[%s679 + $0x58] sm:$0xf] %vm995, %v1610
        %1643 = vst.msk [vmem:[%s679 + $0x5c] sm:$0xf] %vm995, %v1611
        %1644 = vst.msk [vmem:[%s679 + $0xc0] sm:$0xf] %vm995, %v1612
        %1645 = vst.msk [vmem:[%s679 + $0xc4] sm:$0xf] %vm995, %v1613
        %1646 = vst.msk [vmem:[%s679 + $0xc8] sm:$0xf] %vm995, %v1614
        %1647 = vst.msk [vmem:[%s679 + $0xcc] sm:$0xf] %vm995, %v1615
        %1648 = vst.msk [vmem:[%s679 + $0xd0] sm:$0xf] %vm995, %v1616
        %1649 = vst.msk [vmem:[%s679 + $0xd4] sm:$0xf] %vm995, %v1617
        %1650 = vst.msk [vmem:[%s679 + $0xd8] sm:$0xf] %vm995, %v1618
        %1651 = vst.msk [vmem:[%s679 + $0xdc] sm:$0xf] %vm995, %v1619
        %v1652 = vld [vmem:[%s647 + $0x60] sm:$0xf]
        %v1653 = vld [vmem:[%s647 + $0x64] sm:$0xf]
        %v1654 = vld [vmem:[%s647 + $0x68] sm:$0xf]
        %v1655 = vld [vmem:[%s647 + $0x6c] sm:$0xf]
        %v1656 = vld [vmem:[%s647 + $0x70] sm:$0xf]
        %v1657 = vld [vmem:[%s647 + $0x74] sm:$0xf]
        %v1658 = vld [vmem:[%s647 + $0x78] sm:$0xf]
        %v1659 = vld [vmem:[%s647 + $0x7c] sm:$0xf]
        %v1660 = vld [vmem:[%s647 + $0xe0] sm:$0xf]
        %v1661 = vld [vmem:[%s647 + $0xe4] sm:$0xf]
        %v1662 = vld [vmem:[%s647 + $0xe8] sm:$0xf]
        %v1663 = vld [vmem:[%s647 + $0xec] sm:$0xf]
        %v1664 = vld [vmem:[%s647 + $0xf0] sm:$0xf]
        %v1665 = vld [vmem:[%s647 + $0xf4] sm:$0xf]
        %v1666 = vld [vmem:[%s647 + $0xf8] sm:$0xf]
        %v1667 = vld [vmem:[%s647 + $0xfc] sm:$0xf]
        %v1668 = vld [vmem:[%s2] sm:$0xf]
        %v1669 = vld [vmem:[%s2 + $0x4] sm:$0xf]
        %v1670 = vld [vmem:[%s3] sm:$0x1]
        %v1672 = vlaneseq
        %v1673 = vshrl.u32 %v1672, 7
        %v1674 = vsub.s32 0, %v1673
        %v1675 = vrot.slane %v1670, %v1674
        %v1693 = vunpack.c.l.b16 %v1652
        %v1694 = vunpack.c.l.b16 %v1653
        %v1695 = vunpack.c.l.b16 %v1654
        %v1696 = vunpack.c.l.b16 %v1655
        %v1697 = vunpack.c.l.b16 %v1656
        %v1698 = vunpack.c.l.b16 %v1657
        %v1699 = vunpack.c.l.b16 %v1658
        %v1700 = vunpack.c.l.b16 %v1659
        %v1701 = vunpack.c.l.b16 %v1660
        %v1702 = vunpack.c.l.b16 %v1661
        %v1703 = vunpack.c.l.b16 %v1662
        %v1704 = vunpack.c.l.b16 %v1663
        %v1705 = vunpack.c.l.b16 %v1664
        %v1706 = vunpack.c.l.b16 %v1665
        %v1707 = vunpack.c.l.b16 %v1666
        %v1708 = vunpack.c.l.b16 %v1667
        %v1709 = vpack.c.b16 %v1694, %v1693
        %v1710 = vpack.c.b16 %v1696, %v1695
        %v1711 = vpack.c.b16 %v1698, %v1697
        %v1712 = vpack.c.b16 %v1700, %v1699
        %v1713 = vpack.c.b16 %v1702, %v1701
        %v1714 = vpack.c.b16 %v1704, %v1703
        %v1715 = vpack.c.b16 %v1706, %v1705
        %v1716 = vpack.c.b16 %v1708, %v1707
        %v1719 = vunpack.c.l.b16 %v1668
        %v1720 = vunpack.c.l.b16 %v1669
        %v1721 = vpack.c.b16 %v1720, %v1719
        %v1724 = vsel %vm761, %v1709, 0
        %v1727 = vsel %vm761, %v1710, 0
        %v1730 = vsel %vm761, %v1711, 0
        %v1733 = vsel %vm761, %v1712, 0
        %v1736 = vsel %vm761, %v1713, 0
        %v1739 = vsel %vm761, %v1714, 0
        %v1742 = vsel %vm761, %v1715, 0
        %v1745 = vsel %vm761, %v1716, 0
        %1747 = vmatprep.subr.bf16.mxu0 0
        %1748 = vmatpush1.bf16.msra.mxu0 0
        %1749 = vmatprep.subr.bf16.mxu0 0
        %1750 = vmatpush1.bf16.msra.mxu0 0
        %1751 = vmatprep.subr.bf16.mxu0 0
        %1752 = vmatpush1.bf16.msra.mxu0 0
        %1753 = vmatprep.subr.bf16.mxu0 0
        %1754 = vmatpush1.bf16.msra.mxu0 0
        %1755 = vmatprep.subr.bf16.mxu0 0
        %1756 = vmatpush1.bf16.msra.mxu0 0
        %1757 = vmatprep.subr.bf16.mxu0 0
        %1758 = vmatpush1.bf16.msra.mxu0 0
        %1759 = vmatprep.subr.bf16.mxu0 0
        %1760 = vmatpush1.bf16.msra.mxu0 0
        %1761 = vmatprep.subr.bf16.mxu0 0
        %1762 = vmatpush1.bf16.msra.mxu0 %v1721
        %1763 = vmatprep.subr.bf16.mxu0 0
        %1764 = vmatpush2.bf16.msra.mxu0 0
        %1765 = vmatprep.subr.bf16.mxu0 0
        %1766 = vmatpush2.bf16.msra.mxu0 0
        %1767 = vmatprep.subr.bf16.mxu0 0
        %1768 = vmatpush2.bf16.msra.mxu0 0
        %1769 = vmatprep.subr.bf16.mxu0 0
        %1770 = vmatpush2.bf16.msra.mxu0 0
        %1771 = vmatprep.subr.bf16.mxu0 0
        %1772 = vmatpush2.bf16.msra.mxu0 0
        %1773 = vmatprep.subr.bf16.mxu0 0
        %1774 = vmatpush2.bf16.msra.mxu0 0
        %1775 = vmatprep.subr.bf16.mxu0 0
        %1776 = vmatpush2.bf16.msra.mxu0 0
        %1777 = vmatprep.subr.bf16.mxu0 0
        %1778 = vmatpush2.bf16.msra.mxu0 0
        %1779 = vmatprep.mubr.bf16.mxu0 0
        %1780 = vmatmul.mubr.bf16.gmra.mxu0 %v1724
        %v1781 = vpop.f32.mrf.mxu0
        %v1782 = vadd.f32 %v1675, %v1781
        %v1783 = vpop.f32.mrf.mxu0
        %v1784 = vpop.f32.mrf.mxu0
        %v1785 = vadd.f32 %v1675, %v1784
        %v1786 = vpop.f32.mrf.mxu0
        %1787 = vmatprep.mubr.bf16.mxu0 0
        %1788 = vmatmul.mubr.bf16.gmra.mxu0 %v1727
        %v1789 = vpop.f32.mrf.mxu0
        %v1790 = vadd.f32 %v1675, %v1789
        %v1791 = vpop.f32.mrf.mxu0
        %v1792 = vpop.f32.mrf.mxu0
        %v1793 = vadd.f32 %v1675, %v1792
        %v1794 = vpop.f32.mrf.mxu0
        %1795 = vmatprep.mubr.bf16.mxu0 0
        %1796 = vmatmul.mubr.bf16.gmra.mxu0 %v1730
        %v1797 = vpop.f32.mrf.mxu0
        %v1798 = vadd.f32 %v1675, %v1797
        %v1799 = vpop.f32.mrf.mxu0
        %v1800 = vpop.f32.mrf.mxu0
        %v1801 = vadd.f32 %v1675, %v1800
        %v1802 = vpop.f32.mrf.mxu0
        %1803 = vmatprep.mubr.bf16.mxu0 0
        %1804 = vmatmul.mubr.bf16.gmra.mxu0 %v1733
        %v1805 = vpop.f32.mrf.mxu0
        %v1806 = vadd.f32 %v1675, %v1805
        %v1807 = vpop.f32.mrf.mxu0
        %v1808 = vpop.f32.mrf.mxu0
        %v1809 = vadd.f32 %v1675, %v1808
        %v1810 = vpop.f32.mrf.mxu0
        %1811 = vmatprep.mubr.bf16.mxu0 0
        %1812 = vmatmul.mubr.bf16.gmra.mxu0 %v1736
        %v1813 = vpop.f32.mrf.mxu0
        %v1814 = vadd.f32 %v1675, %v1813
        %v1815 = vpop.f32.mrf.mxu0
        %v1816 = vpop.f32.mrf.mxu0
        %v1817 = vadd.f32 %v1675, %v1816
        %v1818 = vpop.f32.mrf.mxu0
        %1819 = vmatprep.mubr.bf16.mxu0 0
        %1820 = vmatmul.mubr.bf16.gmra.mxu0 %v1739
        %v1821 = vpop.f32.mrf.mxu0
        %v1822 = vadd.f32 %v1675, %v1821
        %v1823 = vpop.f32.mrf.mxu0
        %v1824 = vpop.f32.mrf.mxu0
        %v1825 = vadd.f32 %v1675, %v1824
        %v1826 = vpop.f32.mrf.mxu0
        %1827 = vmatprep.mubr.bf16.mxu0 0
        %1828 = vmatmul.mubr.bf16.gmra.mxu0 %v1742
        %v1829 = vpop.f32.mrf.mxu0
        %v1830 = vadd.f32 %v1675, %v1829
        %v1831 = vpop.f32.mrf.mxu0
        %v1832 = vpop.f32.mrf.mxu0
        %v1833 = vadd.f32 %v1675, %v1832
        %v1834 = vpop.f32.mrf.mxu0
        %1835 = vmatprep.mubr.bf16.mxu0 0
        %1836 = vmatmul.mubr.bf16.gmra.mxu0 %v1745
        %v1837 = vpop.f32.mrf.mxu0
        %v1838 = vadd.f32 %v1675, %v1837
        %v1839 = vpop.f32.mrf.mxu0
        %v1840 = vpop.f32.mrf.mxu0
        %v1841 = vadd.f32 %v1675, %v1840
        %v1842 = vpop.f32.mrf.mxu0
        %1843 = vdwg.mxu0
        %vm1844 = vcmp.ge.f32.partialorder %v1782, 0.0
        %vm1845 = vcmp.ge.f32.partialorder %v1785, 0.0
        %vm1846 = vcmp.ge.f32.partialorder %v1790, 0.0
        %vm1847 = vcmp.ge.f32.partialorder %v1793, 0.0
        %vm1848 = vcmp.ge.f32.partialorder %v1798, 0.0
        %vm1849 = vcmp.ge.f32.partialorder %v1801, 0.0
        %vm1850 = vcmp.ge.f32.partialorder %v1806, 0.0
        %vm1851 = vcmp.ge.f32.partialorder %v1809, 0.0
        %vm1852 = vcmp.ge.f32.partialorder %v1814, 0.0
        %vm1853 = vcmp.ge.f32.partialorder %v1817, 0.0
        %vm1854 = vcmp.ge.f32.partialorder %v1822, 0.0
        %vm1855 = vcmp.ge.f32.partialorder %v1825, 0.0
        %vm1856 = vcmp.ge.f32.partialorder %v1830, 0.0
        %vm1857 = vcmp.ge.f32.partialorder %v1833, 0.0
        %vm1858 = vcmp.ge.f32.partialorder %v1838, 0.0
        %vm1859 = vcmp.ge.f32.partialorder %v1841, 0.0
        %v1860 = vmul.f32 %v1782, 0.1
        %v1861 = vmul.f32 %v1785, 0.1
        %v1862 = vmul.f32 %v1790, 0.1
        %v1863 = vmul.f32 %v1793, 0.1
        %v1864 = vmul.f32 %v1798, 0.1
        %v1865 = vmul.f32 %v1801, 0.1
        %v1866 = vmul.f32 %v1806, 0.1
        %v1867 = vmul.f32 %v1809, 0.1
        %v1868 = vmul.f32 %v1814, 0.1
        %v1869 = vmul.f32 %v1817, 0.1
        %v1870 = vmul.f32 %v1822, 0.1
        %v1871 = vmul.f32 %v1825, 0.1
        %v1872 = vmul.f32 %v1830, 0.1
        %v1873 = vmul.f32 %v1833, 0.1
        %v1874 = vmul.f32 %v1838, 0.1
        %v1875 = vmul.f32 %v1841, 0.1
        %v1876 = vsel %vm1844, %v1782, %v1860
        %v1877 = vsel %vm1845, %v1785, %v1861
        %v1878 = vsel %vm1846, %v1790, %v1862
        %v1879 = vsel %vm1847, %v1793, %v1863
        %v1880 = vsel %vm1848, %v1798, %v1864
        %v1881 = vsel %vm1849, %v1801, %v1865
        %v1882 = vsel %vm1850, %v1806, %v1866
        %v1883 = vsel %vm1851, %v1809, %v1867
        %v1884 = vsel %vm1852, %v1814, %v1868
        %v1885 = vsel %vm1853, %v1817, %v1869
        %v1886 = vsel %vm1854, %v1822, %v1870
        %v1887 = vsel %vm1855, %v1825, %v1871
        %v1888 = vsel %vm1856, %v1830, %v1872
        %v1889 = vsel %vm1857, %v1833, %v1873
        %v1890 = vsel %vm1858, %v1838, %v1874
        %v1891 = vsel %vm1859, %v1841, %v1875
        %v1892 = vpack.c.bf16 %v1877, %v1876
        %v1893 = vpack.c.bf16 %v1879, %v1878
        %v1894 = vpack.c.bf16 %v1881, %v1880
        %v1895 = vpack.c.bf16 %v1883, %v1882
        %v1896 = vpack.c.bf16 %v1885, %v1884
        %v1897 = vpack.c.bf16 %v1887, %v1886
        %v1898 = vpack.c.bf16 %v1889, %v1888
        %v1899 = vpack.c.bf16 %v1891, %v1890
        %v1908 = vunpack.c.l.b16 %v1892
        %v1909 = vunpack.c.h.b16 %v1892
        %v1910 = vunpack.c.l.b16 %v1893
        %v1911 = vunpack.c.h.b16 %v1893
        %v1912 = vunpack.c.l.b16 %v1894
        %v1913 = vunpack.c.h.b16 %v1894
        %v1914 = vunpack.c.l.b16 %v1895
        %v1915 = vunpack.c.h.b16 %v1895
        %v1916 = vunpack.c.l.b16 %v1896
        %v1917 = vunpack.c.h.b16 %v1896
        %v1918 = vunpack.c.l.b16 %v1897
        %v1919 = vunpack.c.h.b16 %v1897
        %v1920 = vunpack.c.l.b16 %v1898
        %v1921 = vunpack.c.h.b16 %v1898
        %v1922 = vunpack.c.l.b16 %v1899
        %v1923 = vunpack.c.h.b16 %v1899
        %v1924 = vpack.c.b16 %v1908, %v1908
        %v1925 = vpack.c.b16 %v1909, %v1909
        %v1926 = vpack.c.b16 %v1910, %v1910
        %v1927 = vpack.c.b16 %v1911, %v1911
        %v1928 = vpack.c.b16 %v1912, %v1912
        %v1929 = vpack.c.b16 %v1913, %v1913
        %v1930 = vpack.c.b16 %v1914, %v1914
        %v1931 = vpack.c.b16 %v1915, %v1915
        %v1932 = vpack.c.b16 %v1916, %v1916
        %v1933 = vpack.c.b16 %v1917, %v1917
        %v1934 = vpack.c.b16 %v1918, %v1918
        %v1935 = vpack.c.b16 %v1919, %v1919
        %v1936 = vpack.c.b16 %v1920, %v1920
        %v1937 = vpack.c.b16 %v1921, %v1921
        %v1938 = vpack.c.b16 %v1922, %v1922
        %v1939 = vpack.c.b16 %v1923, %v1923
        %1956 = vst.msk [vmem:[%s679 + $0x60] sm:$0xf] %vm995, %v1924
        %1957 = vst.msk [vmem:[%s679 + $0x64] sm:$0xf] %vm995, %v1925
        %1958 = vst.msk [vmem:[%s679 + $0x68] sm:$0xf] %vm995, %v1926
        %1959 = vst.msk [vmem:[%s679 + $0x6c] sm:$0xf] %vm995, %v1927
        %1960 = vst.msk [vmem:[%s679 + $0x70] sm:$0xf] %vm995, %v1928
        %1961 = vst.msk [vmem:[%s679 + $0x74] sm:$0xf] %vm995, %v1929
        %1962 = vst.msk [vmem:[%s679 + $0x78] sm:$0xf] %vm995, %v1930
        %1963 = vst.msk [vmem:[%s679 + $0x7c] sm:$0xf] %vm995, %v1931
        %1964 = vst.msk [vmem:[%s679 + $0xe0] sm:$0xf] %vm995, %v1932
        %1965 = vst.msk [vmem:[%s679 + $0xe4] sm:$0xf] %vm995, %v1933
        %1966 = vst.msk [vmem:[%s679 + $0xe8] sm:$0xf] %vm995, %v1934
        %1967 = vst.msk [vmem:[%s679 + $0xec] sm:$0xf] %vm995, %v1935
        %1968 = vst.msk [vmem:[%s679 + $0xf0] sm:$0xf] %vm995, %v1936
        %1969 = vst.msk [vmem:[%s679 + $0xf4] sm:$0xf] %vm995, %v1937
        %1970 = vst.msk [vmem:[%s679 + $0xf8] sm:$0xf] %vm995, %v1938
        %1971 = vst.msk [vmem:[%s679 + $0xfc] sm:$0xf] %vm995, %v1939
        %s1972 = sand.u32 %s121, 1
        %s1973 = sand.u32 %s121, 1
        %s1974 = smul.addr %s1973, 256
        %s1975 = scalar_lea.vmem [#allocation5], %s1974
        // Predicated region
        $region140: #{tpu_custom_call.1} parent=130 // pred_check
          %p1976 = pneg %p131
        $region141: #{tpu_custom_call.1} parent=130 // pred_check_branch
          %1978 = sbr.rel (%p1976) target = $region143
        $region142: #{tpu_custom_call.1} parent=130 // pred_region
          %s1979 = smul.u32 32, %s15
          %s1980 = smul.addr %s1979, 4
          %s1981 = scalar_lea.vmem %s4, %s1980
          // Predicated region
          $region144: #{tpu_custom_call.1} parent=142 // pred_check
            _
          $region145: #{tpu_custom_call.1} parent=142 // pred_check_branch
            %1983 = sbr.rel (0) target = $region147
          $region146: #{tpu_custom_call.1} parent=142 // pred_region
            // Predicated region
            $region148: #{tpu_custom_call.1} parent=146 // pred_check
              _
            $region149: #{tpu_custom_call.1} parent=146 // pred_check_branch
              %1985 = sbr.rel target = $region151
            $region150: #{tpu_custom_call.1} parent=146 // pred_region
              // Predicated region
              $region163: #{tpu_custom_call.1} parent=150 // pred_check
                _
              $region164: #{tpu_custom_call.1} parent=150 // pred_check_branch
                %2127 = sbr.rel (0) target = $region166
              $region165: #{tpu_custom_call.1} parent=150 // pred_region
                loop: start=0, step=1, limit=1
                $region167: #{tpu_custom_call.1} parent=165 // loop_pre_header
                  _
                $region168: #{tpu_custom_call.1} parent=165 // loop_header
                  %s2129 = sphi 0, %s2133
                  %p2130 = scmp.ge.s32.totalorder %s2129, 1
                  %s2134 = sphi %s1975, %s1975
                  %s2135 = sphi %s1981, %s1981
                $region169: #{tpu_custom_call.1} parent=165 // loop_header_branch
                  %2132 = sbr.rel (%p2130) target = $region173
                $region170: #{tpu_custom_call.1} parent=165 // loop_body
                  _
                $region171: #{tpu_custom_call.1} parent=165 // loop_footer
                  %s2133 = sadd.s32 1, %s2129
                $region172: #{tpu_custom_call.1} parent=165 // loop_footer_branch
                  %2128 = sbr.rel target = $region168
                $region173: #{tpu_custom_call.1} parent=165 // loop_exit
                  _
                %s2137 = ssub.s32 16, 1
                loop: start=0, step=1, limit=1
                $region174: #{tpu_custom_call.1} parent=165 // loop_pre_header
                  _
                $region175: #{tpu_custom_call.1} parent=165 // loop_header
                  %s2139 = sphi 0, %s2143
                  %p2140 = scmp.ge.s32.totalorder %s2139, 1
                  %s2144 = sphi %s1975, %s1975
                  %s2145 = sphi %s1981, %s1981
                $region176: #{tpu_custom_call.1} parent=165 // loop_header_branch
                  %2142 = sbr.rel (%p2140) target = $region180
                $region177: #{tpu_custom_call.1} parent=165 // loop_body
                  %v2146 = vld [vmem:[%s2144] sm:%s2137]
                  %2147 = vst [vmem:[%s2145] sm:%s2137] %v2146
                  %v2148 = vld [vmem:[%s2144 + $0x4] sm:%s2137]
                  %2149 = vst [vmem:[%s2145 + $0x4] sm:%s2137] %v2148
                  %v2150 = vld [vmem:[%s2144 + $0x8] sm:%s2137]
                  %2151 = vst [vmem:[%s2145 + $0x8] sm:%s2137] %v2150
                  %v2152 = vld [vmem:[%s2144 + $0xc] sm:%s2137]
                  %2153 = vst [vmem:[%s2145 + $0xc] sm:%s2137] %v2152
                  %v2154 = vld [vmem:[%s2144 + $0x10] sm:%s2137]
                  %2155 = vst [vmem:[%s2145 + $0x10] sm:%s2137] %v2154
                  %v2156 = vld [vmem:[%s2144 + $0x14] sm:%s2137]
                  %2157 = vst [vmem:[%s2145 + $0x14] sm:%s2137] %v2156
                  %v2158 = vld [vmem:[%s2144 + $0x18] sm:%s2137]
                  %2159 = vst [vmem:[%s2145 + $0x18] sm:%s2137] %v2158
                  %v2160 = vld [vmem:[%s2144 + $0x1c] sm:%s2137]
                  %2161 = vst [vmem:[%s2145 + $0x1c] sm:%s2137] %v2160
                  %v2162 = vld [vmem:[%s2144 + $0x20] sm:%s2137]
                  %2163 = vst [vmem:[%s2145 + $0x20] sm:%s2137] %v2162
                  %v2164 = vld [vmem:[%s2144 + $0x24] sm:%s2137]
                  %2165 = vst [vmem:[%s2145 + $0x24] sm:%s2137] %v2164
                  %v2166 = vld [vmem:[%s2144 + $0x28] sm:%s2137]
                  %2167 = vst [vmem:[%s2145 + $0x28] sm:%s2137] %v2166
                  %v2168 = vld [vmem:[%s2144 + $0x2c] sm:%s2137]
                  %2169 = vst [vmem:[%s2145 + $0x2c] sm:%s2137] %v2168
                  %v2170 = vld [vmem:[%s2144 + $0x30] sm:%s2137]
                  %2171 = vst [vmem:[%s2145 + $0x30] sm:%s2137] %v2170
                  %v2172 = vld [vmem:[%s2144 + $0x34] sm:%s2137]
                  %2173 = vst [vmem:[%s2145 + $0x34] sm:%s2137] %v2172
                  %v2174 = vld [vmem:[%s2144 + $0x38] sm:%s2137]
                  %2175 = vst [vmem:[%s2145 + $0x38] sm:%s2137] %v2174
                  %v2176 = vld [vmem:[%s2144 + $0x3c] sm:%s2137]
                  %2177 = vst [vmem:[%s2145 + $0x3c] sm:%s2137] %v2176
                  %v2178 = vld [vmem:[%s2144 + $0x40] sm:%s2137]
                  %2179 = vst [vmem:[%s2145 + $0x40] sm:%s2137] %v2178
                  %v2180 = vld [vmem:[%s2144 + $0x44] sm:%s2137]
                  %2181 = vst [vmem:[%s2145 + $0x44] sm:%s2137] %v2180
                  %v2182 = vld [vmem:[%s2144 + $0x48] sm:%s2137]
                  %2183 = vst [vmem:[%s2145 + $0x48] sm:%s2137] %v2182
                  %v2184 = vld [vmem:[%s2144 + $0x4c] sm:%s2137]
                  %2185 = vst [vmem:[%s2145 + $0x4c] sm:%s2137] %v2184
                  %v2186 = vld [vmem:[%s2144 + $0x50] sm:%s2137]
                  %2187 = vst [vmem:[%s2145 + $0x50] sm:%s2137] %v2186
                  %v2188 = vld [vmem:[%s2144 + $0x54] sm:%s2137]
                  %2189 = vst [vmem:[%s2145 + $0x54] sm:%s2137] %v2188
                  %v2190 = vld [vmem:[%s2144 + $0x58] sm:%s2137]
                  %2191 = vst [vmem:[%s2145 + $0x58] sm:%s2137] %v2190
                  %v2192 = vld [vmem:[%s2144 + $0x5c] sm:%s2137]
                  %2193 = vst [vmem:[%s2145 + $0x5c] sm:%s2137] %v2192
                  %v2194 = vld [vmem:[%s2144 + $0x60] sm:%s2137]
                  %2195 = vst [vmem:[%s2145 + $0x60] sm:%s2137] %v2194
                  %v2196 = vld [vmem:[%s2144 + $0x64] sm:%s2137]
                  %2197 = vst [vmem:[%s2145 + $0x64] sm:%s2137] %v2196
                  %v2198 = vld [vmem:[%s2144 + $0x68] sm:%s2137]
                  %2199 = vst [vmem:[%s2145 + $0x68] sm:%s2137] %v2198
                  %v2200 = vld [vmem:[%s2144 + $0x6c] sm:%s2137]
                  %2201 = vst [vmem:[%s2145 + $0x6c] sm:%s2137] %v2200
                  %v2202 = vld [vmem:[%s2144 + $0x70] sm:%s2137]
                  %2203 = vst [vmem:[%s2145 + $0x70] sm:%s2137] %v2202
                  %v2204 = vld [vmem:[%s2144 + $0x74] sm:%s2137]
                  %2205 = vst [vmem:[%s2145 + $0x74] sm:%s2137] %v2204
                  %v2206 = vld [vmem:[%s2144 + $0x78] sm:%s2137]
                  %2207 = vst [vmem:[%s2145 + $0x78] sm:%s2137] %v2206
                  %v2208 = vld [vmem:[%s2144 + $0x7c] sm:%s2137]
                  %2209 = vst [vmem:[%s2145 + $0x7c] sm:%s2137] %v2208
                  %v2210 = vld [vmem:[%s2144 + $0x80] sm:%s2137]
                  %2211 = vst [vmem:[%s2145 + $0x200] sm:%s2137] %v2210
                  %v2212 = vld [vmem:[%s2144 + $0x84] sm:%s2137]
                  %2213 = vst [vmem:[%s2145 + $0x204] sm:%s2137] %v2212
                  %v2214 = vld [vmem:[%s2144 + $0x88] sm:%s2137]
                  %2215 = vst [vmem:[%s2145 + $0x208] sm:%s2137] %v2214
                  %v2216 = vld [vmem:[%s2144 + $0x8c] sm:%s2137]
                  %2217 = vst [vmem:[%s2145 + $0x20c] sm:%s2137] %v2216
                  %v2218 = vld [vmem:[%s2144 + $0x90] sm:%s2137]
                  %2219 = vst [vmem:[%s2145 + $0x210] sm:%s2137] %v2218
                  %v2220 = vld [vmem:[%s2144 + $0x94] sm:%s2137]
                  %2221 = vst [vmem:[%s2145 + $0x214] sm:%s2137] %v2220
                  %v2222 = vld [vmem:[%s2144 + $0x98] sm:%s2137]
                  %2223 = vst [vmem:[%s2145 + $0x218] sm:%s2137] %v2222
                  %v2224 = vld [vmem:[%s2144 + $0x9c] sm:%s2137]
                  %2225 = vst [vmem:[%s2145 + $0x21c] sm:%s2137] %v2224
                  %v2226 = vld [vmem:[%s2144 + $0xa0] sm:%s2137]
                  %2227 = vst [vmem:[%s2145 + $0x220] sm:%s2137] %v2226
                  %v2228 = vld [vmem:[%s2144 + $0xa4] sm:%s2137]
                  %2229 = vst [vmem:[%s2145 + $0x224] sm:%s2137] %v2228
                  %v2230 = vld [vmem:[%s2144 + $0xa8] sm:%s2137]
                  %2231 = vst [vmem:[%s2145 + $0x228] sm:%s2137] %v2230
                  %v2232 = vld [vmem:[%s2144 + $0xac] sm:%s2137]
                  %2233 = vst [vmem:[%s2145 + $0x22c] sm:%s2137] %v2232
                  %v2234 = vld [vmem:[%s2144 + $0xb0] sm:%s2137]
                  %2235 = vst [vmem:[%s2145 + $0x230] sm:%s2137] %v2234
                  %v2236 = vld [vmem:[%s2144 + $0xb4] sm:%s2137]
                  %2237 = vst [vmem:[%s2145 + $0x234] sm:%s2137] %v2236
                  %v2238 = vld [vmem:[%s2144 + $0xb8] sm:%s2137]
                  %2239 = vst [vmem:[%s2145 + $0x238] sm:%s2137] %v2238
                  %v2240 = vld [vmem:[%s2144 + $0xbc] sm:%s2137]
                  %2241 = vst [vmem:[%s2145 + $0x23c] sm:%s2137] %v2240
                  %v2242 = vld [vmem:[%s2144 + $0xc0] sm:%s2137]
                  %2243 = vst [vmem:[%s2145 + $0x240] sm:%s2137] %v2242
                  %v2244 = vld [vmem:[%s2144 + $0xc4] sm:%s2137]
                  %2245 = vst [vmem:[%s2145 + $0x244] sm:%s2137] %v2244
                  %v2246 = vld [vmem:[%s2144 + $0xc8] sm:%s2137]
                  %2247 = vst [vmem:[%s2145 + $0x248] sm:%s2137] %v2246
                  %v2248 = vld [vmem:[%s2144 + $0xcc] sm:%s2137]
                  %2249 = vst [vmem:[%s2145 + $0x24c] sm:%s2137] %v2248
                  %v2250 = vld [vmem:[%s2144 + $0xd0] sm:%s2137]
                  %2251 = vst [vmem:[%s2145 + $0x250] sm:%s2137] %v2250
                  %v2252 = vld [vmem:[%s2144 + $0xd4] sm:%s2137]
                  %2253 = vst [vmem:[%s2145 + $0x254] sm:%s2137] %v2252
                  %v2254 = vld [vmem:[%s2144 + $0xd8] sm:%s2137]
                  %2255 = vst [vmem:[%s2145 + $0x258] sm:%s2137] %v2254
                  %v2256 = vld [vmem:[%s2144 + $0xdc] sm:%s2137]
                  %2257 = vst [vmem:[%s2145 + $0x25c] sm:%s2137] %v2256
                  %v2258 = vld [vmem:[%s2144 + $0xe0] sm:%s2137]
                  %2259 = vst [vmem:[%s2145 + $0x260] sm:%s2137] %v2258
                  %v2260 = vld [vmem:[%s2144 + $0xe4] sm:%s2137]
                  %2261 = vst [vmem:[%s2145 + $0x264] sm:%s2137] %v2260
                  %v2262 = vld [vmem:[%s2144 + $0xe8] sm:%s2137]
                  %2263 = vst [vmem:[%s2145 + $0x268] sm:%s2137] %v2262
                  %v2264 = vld [vmem:[%s2144 + $0xec] sm:%s2137]
                  %2265 = vst [vmem:[%s2145 + $0x26c] sm:%s2137] %v2264
                  %v2266 = vld [vmem:[%s2144 + $0xf0] sm:%s2137]
                  %2267 = vst [vmem:[%s2145 + $0x270] sm:%s2137] %v2266
                  %v2268 = vld [vmem:[%s2144 + $0xf4] sm:%s2137]
                  %2269 = vst [vmem:[%s2145 + $0x274] sm:%s2137] %v2268
                  %v2270 = vld [vmem:[%s2144 + $0xf8] sm:%s2137]
                  %2271 = vst [vmem:[%s2145 + $0x278] sm:%s2137] %v2270
                  %v2272 = vld [vmem:[%s2144 + $0xfc] sm:%s2137]
                  %2273 = vst [vmem:[%s2145 + $0x27c] sm:%s2137] %v2272
                $region178: #{tpu_custom_call.1} parent=165 // loop_footer
                  %s2143 = sadd.s32 1, %s2139
                $region179: #{tpu_custom_call.1} parent=165 // loop_footer_branch
                  %2138 = sbr.rel target = $region175
                $region180: #{tpu_custom_call.1} parent=165 // loop_exit
                  _
              $region166: #{tpu_custom_call.1} parent=150 // pred_fallthru
                _
            $region151: #{tpu_custom_call.1} parent=146 // pred_fallthru
              _
            // Predicated region
            $region152: #{tpu_custom_call.1} parent=146 // pred_check
              _
            $region153: #{tpu_custom_call.1} parent=146 // pred_check_branch
              %1987 = sbr.rel (0) target = $region155
            $region154: #{tpu_custom_call.1} parent=146 // pred_region
              %s1989 = ssub.s32 16, 1
              loop: start=0, step=1, limit=1
              $region156: #{tpu_custom_call.1} parent=154 // loop_pre_header
                _
              $region157: #{tpu_custom_call.1} parent=154 // loop_header
                %s1991 = sphi 0, %s1995
                %p1992 = scmp.ge.s32.totalorder %s1991, 1
                %s1996 = sphi %s1975, %s1975
                %s1997 = sphi %s1981, %s1981
              $region158: #{tpu_custom_call.1} parent=154 // loop_header_branch
                %1994 = sbr.rel (%p1992) target = $region162
              $region159: #{tpu_custom_call.1} parent=154 // loop_body
                %v1998 = vld [vmem:[%s1996] sm:%s1989]
                %1999 = vst [vmem:[%s1997] sm:%s1989] %v1998
                %v2000 = vld [vmem:[%s1996 + $0x4] sm:%s1989]
                %2001 = vst [vmem:[%s1997 + $0x4] sm:%s1989] %v2000
                %v2002 = vld [vmem:[%s1996 + $0x8] sm:%s1989]
                %2003 = vst [vmem:[%s1997 + $0x8] sm:%s1989] %v2002
                %v2004 = vld [vmem:[%s1996 + $0xc] sm:%s1989]
                %2005 = vst [vmem:[%s1997 + $0xc] sm:%s1989] %v2004
                %v2006 = vld [vmem:[%s1996 + $0x10] sm:%s1989]
                %2007 = vst [vmem:[%s1997 + $0x10] sm:%s1989] %v2006
                %v2008 = vld [vmem:[%s1996 + $0x14] sm:%s1989]
                %2009 = vst [vmem:[%s1997 + $0x14] sm:%s1989] %v2008
                %v2010 = vld [vmem:[%s1996 + $0x18] sm:%s1989]
                %2011 = vst [vmem:[%s1997 + $0x18] sm:%s1989] %v2010
                %v2012 = vld [vmem:[%s1996 + $0x1c] sm:%s1989]
                %2013 = vst [vmem:[%s1997 + $0x1c] sm:%s1989] %v2012
                %v2014 = vld [vmem:[%s1996 + $0x20] sm:%s1989]
                %2015 = vst [vmem:[%s1997 + $0x20] sm:%s1989] %v2014
                %v2016 = vld [vmem:[%s1996 + $0x24] sm:%s1989]
                %2017 = vst [vmem:[%s1997 + $0x24] sm:%s1989] %v2016
                %v2018 = vld [vmem:[%s1996 + $0x28] sm:%s1989]
                %2019 = vst [vmem:[%s1997 + $0x28] sm:%s1989] %v2018
                %v2020 = vld [vmem:[%s1996 + $0x2c] sm:%s1989]
                %2021 = vst [vmem:[%s1997 + $0x2c] sm:%s1989] %v2020
                %v2022 = vld [vmem:[%s1996 + $0x30] sm:%s1989]
                %2023 = vst [vmem:[%s1997 + $0x30] sm:%s1989] %v2022
                %v2024 = vld [vmem:[%s1996 + $0x34] sm:%s1989]
                %2025 = vst [vmem:[%s1997 + $0x34] sm:%s1989] %v2024
                %v2026 = vld [vmem:[%s1996 + $0x38] sm:%s1989]
                %2027 = vst [vmem:[%s1997 + $0x38] sm:%s1989] %v2026
                %v2028 = vld [vmem:[%s1996 + $0x3c] sm:%s1989]
                %2029 = vst [vmem:[%s1997 + $0x3c] sm:%s1989] %v2028
                %v2030 = vld [vmem:[%s1996 + $0x40] sm:%s1989]
                %2031 = vst [vmem:[%s1997 + $0x40] sm:%s1989] %v2030
                %v2032 = vld [vmem:[%s1996 + $0x44] sm:%s1989]
                %2033 = vst [vmem:[%s1997 + $0x44] sm:%s1989] %v2032
                %v2034 = vld [vmem:[%s1996 + $0x48] sm:%s1989]
                %2035 = vst [vmem:[%s1997 + $0x48] sm:%s1989] %v2034
                %v2036 = vld [vmem:[%s1996 + $0x4c] sm:%s1989]
                %2037 = vst [vmem:[%s1997 + $0x4c] sm:%s1989] %v2036
                %v2038 = vld [vmem:[%s1996 + $0x50] sm:%s1989]
                %2039 = vst [vmem:[%s1997 + $0x50] sm:%s1989] %v2038
                %v2040 = vld [vmem:[%s1996 + $0x54] sm:%s1989]
                %2041 = vst [vmem:[%s1997 + $0x54] sm:%s1989] %v2040
                %v2042 = vld [vmem:[%s1996 + $0x58] sm:%s1989]
                %2043 = vst [vmem:[%s1997 + $0x58] sm:%s1989] %v2042
                %v2044 = vld [vmem:[%s1996 + $0x5c] sm:%s1989]
                %2045 = vst [vmem:[%s1997 + $0x5c] sm:%s1989] %v2044
                %v2046 = vld [vmem:[%s1996 + $0x60] sm:%s1989]
                %2047 = vst [vmem:[%s1997 + $0x60] sm:%s1989] %v2046
                %v2048 = vld [vmem:[%s1996 + $0x64] sm:%s1989]
                %2049 = vst [vmem:[%s1997 + $0x64] sm:%s1989] %v2048
                %v2050 = vld [vmem:[%s1996 + $0x68] sm:%s1989]
                %2051 = vst [vmem:[%s1997 + $0x68] sm:%s1989] %v2050
                %v2052 = vld [vmem:[%s1996 + $0x6c] sm:%s1989]
                %2053 = vst [vmem:[%s1997 + $0x6c] sm:%s1989] %v2052
                %v2054 = vld [vmem:[%s1996 + $0x70] sm:%s1989]
                %2055 = vst [vmem:[%s1997 + $0x70] sm:%s1989] %v2054
                %v2056 = vld [vmem:[%s1996 + $0x74] sm:%s1989]
                %2057 = vst [vmem:[%s1997 + $0x74] sm:%s1989] %v2056
                %v2058 = vld [vmem:[%s1996 + $0x78] sm:%s1989]
                %2059 = vst [vmem:[%s1997 + $0x78] sm:%s1989] %v2058
                %v2060 = vld [vmem:[%s1996 + $0x7c] sm:%s1989]
                %2061 = vst [vmem:[%s1997 + $0x7c] sm:%s1989] %v2060
                %v2062 = vld [vmem:[%s1996 + $0x80] sm:%s1989]
                %2063 = vst [vmem:[%s1997 + $0x200] sm:%s1989] %v2062
                %v2064 = vld [vmem:[%s1996 + $0x84] sm:%s1989]
                %2065 = vst [vmem:[%s1997 + $0x204] sm:%s1989] %v2064
                %v2066 = vld [vmem:[%s1996 + $0x88] sm:%s1989]
                %2067 = vst [vmem:[%s1997 + $0x208] sm:%s1989] %v2066
                %v2068 = vld [vmem:[%s1996 + $0x8c] sm:%s1989]
                %2069 = vst [vmem:[%s1997 + $0x20c] sm:%s1989] %v2068
                %v2070 = vld [vmem:[%s1996 + $0x90] sm:%s1989]
                %2071 = vst [vmem:[%s1997 + $0x210] sm:%s1989] %v2070
                %v2072 = vld [vmem:[%s1996 + $0x94] sm:%s1989]
                %2073 = vst [vmem:[%s1997 + $0x214] sm:%s1989] %v2072
                %v2074 = vld [vmem:[%s1996 + $0x98] sm:%s1989]
                %2075 = vst [vmem:[%s1997 + $0x218] sm:%s1989] %v2074
                %v2076 = vld [vmem:[%s1996 + $0x9c] sm:%s1989]
                %2077 = vst [vmem:[%s1997 + $0x21c] sm:%s1989] %v2076
                %v2078 = vld [vmem:[%s1996 + $0xa0] sm:%s1989]
                %2079 = vst [vmem:[%s1997 + $0x220] sm:%s1989] %v2078
                %v2080 = vld [vmem:[%s1996 + $0xa4] sm:%s1989]
                %2081 = vst [vmem:[%s1997 + $0x224] sm:%s1989] %v2080
                %v2082 = vld [vmem:[%s1996 + $0xa8] sm:%s1989]
                %2083 = vst [vmem:[%s1997 + $0x228] sm:%s1989] %v2082
                %v2084 = vld [vmem:[%s1996 + $0xac] sm:%s1989]
                %2085 = vst [vmem:[%s1997 + $0x22c] sm:%s1989] %v2084
                %v2086 = vld [vmem:[%s1996 + $0xb0] sm:%s1989]
                %2087 = vst [vmem:[%s1997 + $0x230] sm:%s1989] %v2086
                %v2088 = vld [vmem:[%s1996 + $0xb4] sm:%s1989]
                %2089 = vst [vmem:[%s1997 + $0x234] sm:%s1989] %v2088
                %v2090 = vld [vmem:[%s1996 + $0xb8] sm:%s1989]
                %2091 = vst [vmem:[%s1997 + $0x238] sm:%s1989] %v2090
                %v2092 = vld [vmem:[%s1996 + $0xbc] sm:%s1989]
                %2093 = vst [vmem:[%s1997 + $0x23c] sm:%s1989] %v2092
                %v2094 = vld [vmem:[%s1996 + $0xc0] sm:%s1989]
                %2095 = vst [vmem:[%s1997 + $0x240] sm:%s1989] %v2094
                %v2096 = vld [vmem:[%s1996 + $0xc4] sm:%s1989]
                %2097 = vst [vmem:[%s1997 + $0x244] sm:%s1989] %v2096
                %v2098 = vld [vmem:[%s1996 + $0xc8] sm:%s1989]
                %2099 = vst [vmem:[%s1997 + $0x248] sm:%s1989] %v2098
                %v2100 = vld [vmem:[%s1996 + $0xcc] sm:%s1989]
                %2101 = vst [vmem:[%s1997 + $0x24c] sm:%s1989] %v2100
                %v2102 = vld [vmem:[%s1996 + $0xd0] sm:%s1989]
                %2103 = vst [vmem:[%s1997 + $0x250] sm:%s1989] %v2102
                %v2104 = vld [vmem:[%s1996 + $0xd4] sm:%s1989]
                %2105 = vst [vmem:[%s1997 + $0x254] sm:%s1989] %v2104
                %v2106 = vld [vmem:[%s1996 + $0xd8] sm:%s1989]
                %2107 = vst [vmem:[%s1997 + $0x258] sm:%s1989] %v2106
                %v2108 = vld [vmem:[%s1996 + $0xdc] sm:%s1989]
                %2109 = vst [vmem:[%s1997 + $0x25c] sm:%s1989] %v2108
                %v2110 = vld [vmem:[%s1996 + $0xe0] sm:%s1989]
                %2111 = vst [vmem:[%s1997 + $0x260] sm:%s1989] %v2110
                %v2112 = vld [vmem:[%s1996 + $0xe4] sm:%s1989]
                %2113 = vst [vmem:[%s1997 + $0x264] sm:%s1989] %v2112
                %v2114 = vld [vmem:[%s1996 + $0xe8] sm:%s1989]
                %2115 = vst [vmem:[%s1997 + $0x268] sm:%s1989] %v2114
                %v2116 = vld [vmem:[%s1996 + $0xec] sm:%s1989]
                %2117 = vst [vmem:[%s1997 + $0x26c] sm:%s1989] %v2116
                %v2118 = vld [vmem:[%s1996 + $0xf0] sm:%s1989]
                %2119 = vst [vmem:[%s1997 + $0x270] sm:%s1989] %v2118
                %v2120 = vld [vmem:[%s1996 + $0xf4] sm:%s1989]
                %2121 = vst [vmem:[%s1997 + $0x274] sm:%s1989] %v2120
                %v2122 = vld [vmem:[%s1996 + $0xf8] sm:%s1989]
                %2123 = vst [vmem:[%s1997 + $0x278] sm:%s1989] %v2122
                %v2124 = vld [vmem:[%s1996 + $0xfc] sm:%s1989]
                %2125 = vst [vmem:[%s1997 + $0x27c] sm:%s1989] %v2124
              $region160: #{tpu_custom_call.1} parent=154 // loop_footer
                %s1995 = sadd.s32 1, %s1991
              $region161: #{tpu_custom_call.1} parent=154 // loop_footer_branch
                %1990 = sbr.rel target = $region157
              $region162: #{tpu_custom_call.1} parent=154 // loop_exit
                _
            $region155: #{tpu_custom_call.1} parent=146 // pred_fallthru
              _
          $region147: #{tpu_custom_call.1} parent=142 // pred_fallthru
            _
          %2274 = vnop
        $region143: #{tpu_custom_call.1} parent=130 // pred_fallthru
          _
      $region131: #{tpu_custom_call.1} parent=5 // pred_fallthru
        _
      %p2275 = scmp.le.s32.totalorder 2, %s10
      // Predicated region
      $region181: #{tpu_custom_call.1} parent=5 // pred_check
        %p2276 = pneg %p2275
      $region182: #{tpu_custom_call.1} parent=5 // pred_check_branch
        %2278 = sbr.rel (%p2276) target = $region184
      $region183: #{tpu_custom_call.1} parent=5 // pred_region
        %s2279 = ssub.s32 %s10, 2
        // Predicated region
        $region185: #{tpu_custom_call.1} parent=183 // pred_check
          %p2280 = pneg %p137
        $region186: #{tpu_custom_call.1} parent=183 // pred_check_branch
          %2282 = sbr.rel (%p2280) target = $region188
        $region187: #{tpu_custom_call.1} parent=183 // pred_region
          %s2283 = sand.u32 %s122, 1
          %s2284 = sand.u32 %s122, 1
          %s2285 = smul.addr %s2284, 256
          %s2286 = scalar_lea.vmem [#allocation5], %s2285
        $region188: #{tpu_custom_call.1} parent=183 // pred_fallthru
          _
      $region184: #{tpu_custom_call.1} parent=5 // pred_fallthru
        _
    $region6: #{tpu_custom_call.1} parent=1 // loop_footer
      %s14 = sadd.s32 1, %s10
    $region7: #{tpu_custom_call.1} parent=1 // loop_footer_branch
      %9 = sbr.rel target = $region3
    $region8: #{tpu_custom_call.1} parent=1 // loop_exit
      _

</llo_original>
